<compile_context>
chip_gen: v7x
topology: tpu7x:2x2x1
jax: 0.10.0
libtpu: 0.0.40
codegen_flags: <defaults>
</compile_context>

<pallas_src>
import numpy as np
import jax
import jax.numpy as jnp
from jax.experimental import pallas as pl
from jax.experimental.pallas import tpu as pltpu

_VMEM = pl.BlockSpec(memory_space=pltpu.MemorySpace.VMEM)
_EPS = 1e-5
_F32 = jnp.float32
_BF16 = jnp.bfloat16
_LANES = 128   # padded lane width of every intermediate activation


# --------------------------- in-kernel building blocks ---------------------------

def _conv_taps(a, r_ref, m_ref):
    """conv / convT of a (rows, lanes) activation.

    a:     (B*Hin, in_lanes) f32   rows = batch*height, lanes = width*chan (padded)
    r_ref: (3, B*Ho, B*Hin)  f32   0/1 row-gather matrices (one per kernel row)
    m_ref: (in_lanes, 3*blk) bf16  hstacked column-select x channel-mix matrices
    returns (B*Ho, blk) f32 with  y = sum_d R_d @ (a @ M_d)
    """
    blk = m_ref.shape[1] // 3
    v = jnp.dot(a.astype(_BF16), m_ref[...], preferred_element_type=_F32)
    y = jnp.dot(r_ref[0], v[:, 0:blk], preferred_element_type=_F32)
    y = y + jnp.dot(r_ref[1], v[:, blk:2 * blk], preferred_element_type=_F32)
    y = y + jnp.dot(r_ref[2], v[:, 2 * blk:3 * blk], preferred_element_type=_F32)
    return y


def _conv_block(a, r_ref, m_ref, aff_ref, q_ref=None, relu=True):
    """conv (+BatchNorm with batch stats) (+ReLU); all values VMEM-resident."""
    y = _conv_taps(a, r_ref, m_ref) + aff_ref[0:1, :]            # + lane-tiled bias
    if q_ref is not None:
        # single stacked (2, N) @ Q matmul pools lanes of the same channel and
        # divides by N = B*Ho*Wo (baked into Q)  ->  per-channel mean / E[y^2].
        stats = jnp.concatenate([jnp.sum(y, axis=0, keepdims=True),
                                 jnp.sum(y * y, axis=0, keepdims=True)], axis=0)
        pooled = jnp.dot(stats, q_ref[...], preferred_element_type=_F32)
        mean = pooled[0:1, :]
        var = jnp.maximum(pooled[1:2, :] - mean * mean, 0.0)      # biased, clamped
        y = (y - mean) * jax.lax.rsqrt(var + _EPS)
        y = y * aff_ref[1:2, :] + aff_ref[2:3, :]                 # gamma, beta
    if relu:
        y = jnp.maximum(y, 0.0)
    return y


# --------------------------- the single fused kernel ---------------------------

def _autoencoder_kernel(
        x_ref, n_ref,
        c1_r, c1_m, c1_a,
        c2_r, c2_m, c2_a, c2_q,
        c3_r, c3_m, c3_a, c3_q,
        rsel, w1, b1, w2, b2, w3, b3, w34, b34,
        rselt, w5, b5,
        t1_r, t1_m, t1_a, t1_q,
        t2_r, t2_m, t2_a, t2_q,
        t3_r, t3_m, t3_a,
        enc_ref, dec_ref):
    # ----- encoder convs -----
    a0 = x_ref[...] + 0.2 * n_ref[...]                  # fused add_noise
    h = _conv_block(a0, c1_r, c1_m, c1_a)                # Conv(1->8,s2,p1)+ReLU      (B*14,128)
    h = _conv_block(h, c2_r, c2_m, c2_a, c2_q)           # Conv(8->16,s2,p1)+BN+ReLU  (B*7, 128)
    h = _conv_block(h, c3_r, c3_m, c3_a, c3_q)           # Conv(16->32,s2,p0)+BN+ReLU (B*3, 128)

    # ----- Flatten + fc1 (folded):  z1[b] = sum_hh h[3b+hh] @ W1[hh-block] -----
    y1 = jnp.dot(h.astype(_BF16), w1[...], preferred_element_type=_F32)   # (B*3, 384)
    z1 = jnp.dot(rsel[0], y1[:, 0:128], preferred_element_type=_F32)
    z1 = z1 + jnp.dot(rsel[1], y1[:, 128:256], preferred_element_type=_F32)
    z1 = z1 + jnp.dot(rsel[2], y1[:, 256:384], preferred_element_type=_F32)
    z1 = jnp.maximum(z1 + b1[...], 0.0)                                   # (B, 128)

    # ----- fc2 / fc3 (encoding) / folded fc3@dfc1 -----
    z2 = jnp.maximum(
        jnp.dot(z1.astype(_BF16), w2[...], preferred_element_type=_F32) + b2[...], 0.0)
    enc_ref[...] = jnp.dot(z2.astype(_BF16), w3[...],
                           preferred_element_type=_F32) + b3[...]          # (B, 16)
    d1 = jnp.maximum(
        jnp.dot(z2.astype(_BF16), w34[...], preferred_element_type=_F32) + b34[...], 0.0)

    # ----- dfc2 + Unflatten (folded): rows (b,hh) of the decoder conv input -----
    dd = jnp.maximum(
        jnp.dot(d1.astype(_BF16), w5[...], preferred_element_type=_F32) + b5[...], 0.0)
    d3 = jnp.dot(rselt[0], dd[:, 0:128], preferred_element_type=_F32)
    d3 = d3 + jnp.dot(rselt[1], dd[:, 128:256], preferred_element_type=_F32)
    d3 = d3 + jnp.dot(rselt[2], dd[:, 256:384], preferred_element_type=_F32)  # (B*3,128)

    # ----- decoder transposed convs -----
    g = _conv_block(d3, t1_r, t1_m, t1_a, t1_q)          # ConvT(32->16,s2)+BN+ReLU       (B*7, 128)
    g = _conv_block(g, t2_r, t2_m, t2_a, t2_q)           # ConvT(16->8,s2,p1,op1)+BN+ReLU (B*14,128)
    y = _conv_taps(g, t3_r, t3_m) + t3_a[0:1, :]         # ConvT(8->1,s2,p1,op1)          (B*28,128)
    y = y[:, :dec_ref.shape[1]]                          # drop padded lanes -> (B*28, 28)
    dec_ref[...] = jax.nn.sigmoid(y)


# --------------------------- pallas_call wrapper ---------------------------

def autoencoder_call(prep, x2, n2):
    c1, c2, c3 = prep["conv1"], prep["conv2"], prep["conv3"]
    t1, t2, t3 = prep["t1"], prep["t2"], prep["t3"]
    f = prep["fc"]
    batch = x2.shape[0] // 28

    operands = (
        x2, n2,
        c1["R"], c1["M"], c1["aff"],
        c2["R"], c2["M"], c2["aff"], c2["Q"],
        c3["R"], c3["M"], c3["aff"], c3["Q"],
        f["rsel"], f["w1"], f["b1"], f["w2"], f["b2"], f["w3"], f["b3"],
        f["w34"], f["b34"], f["rselt"], f["w5"], f["b5"],
        t1["R"], t1["M"], t1["aff"], t1["Q"],
        t2["R"], t2["M"], t2["aff"], t2["Q"],
        t3["R"], t3["M"], t3["aff"],
    )
    enc_shape = jax.ShapeDtypeStruct((batch, 16), jnp.float32)
    dec_shape = jax.ShapeDtypeStruct((batch * 28, 28), jnp.float32)

    # advisory cost estimate
    flops = 0
    for plan in (c1, c2, c3, t1, t2, t3):
        r, m = plan["R"], plan["M"]
        flops += 2 * r.shape[2] * m.shape[0] * m.shape[1]                    # stacked tap matmul
        flops += 2 * 3 * r.shape[1] * r.shape[2] * (m.shape[1] // 3)         # row-gather matmuls
        if "Q" in plan:
            flops += 2 * 2 * plan["Q"].shape[0] * plan["Q"].shape[1]
            flops += 10 * r.shape[1] * (m.shape[1] // 3)
    flops += 2 * (3 * batch) * f["w1"].shape[0] * f["w1"].shape[1]
    flops += 2 * batch * (f["w2"].shape[0] * f["w2"].shape[1]
                          + f["w3"].shape[0] * f["w3"].shape[1]
                          + f["w34"].shape[0] * f["w34"].shape[1]
                          + f["w5"].shape[0] * f["w5"].shape[1])
    transcendentals = 4 * _LANES + batch * 28 * 28 + 256
    bytes_accessed = sum(int(np.prod(o.shape)) * np.dtype(o.dtype).itemsize
                         for o in operands)
    bytes_accessed += sum(int(np.prod(s.shape)) * np.dtype(s.dtype).itemsize
                          for s in (enc_shape, dec_shape))

    return pl.pallas_call(
        _autoencoder_kernel,
        out_shape=(enc_shape, dec_shape),
        in_specs=[_VMEM] * len(operands),
        out_specs=(_VMEM, _VMEM),
        compiler_params=pltpu.CompilerParams(vmem_limit_bytes=32 * 1024 * 1024),
        cost_estimate=pl.CostEstimate(flops=int(flops),
                                      transcendentals=int(transcendentals),
                                      bytes_accessed=int(bytes_accessed)),
    )(*operands)


# --------------------------- one-time parameter preparation ---------------------------

def _sel(out_size, in_size, d, stride, pad, transposed):
    """0/1 selection matrix: output position o reads input position i (or zero-pad)."""
    m = np.zeros((out_size, in_size), np.float32)
    for o in range(out_size):
        if transposed:
            t = o + pad - d
            if t % stride != 0:
                continue
            i = t // stride
        else:
            i = stride * o + d - pad
        if 0 <= i < in_size:
            m[o, i] = 1.0
    return m


def _conv_plan(w, b, hin, win, stride, pad, out_pad, transposed, batch,
               gamma=None, beta=None, in_lanes=None, out_blk=_LANES):
    w = np.asarray(w, np.float32)
    b = np.asarray(b, np.float32)
    if transposed:                                   # torch ConvT weight (Cin, Cout, kH, kW)
        cin, cout = w.shape[0], w.shape[1]
        ho = (hin - 1) * stride - 2 * pad + 3 + out_pad
        wo = (win - 1) * stride - 2 * pad + 3 + out_pad
        tap = lambda di, dj: w[:, :, di, dj]                         # (Cin, Cout)
    else:                                            # torch Conv weight (Cout, Cin, kH, kW)
        cout, cin = w.shape[0], w.shape[1]
        ho = (hin + 2 * pad - 3) // stride + 1
        wo = (win + 2 * pad - 3) // stride + 1
        tap = lambda di, dj: w[:, :, di, dj].T                       # (Cin, Cout)

    kin = win * cin
    nout = wo * cout
    in_lanes = kin if in_lanes is None else in_lanes
    assert nout <= out_blk and kin <= in_lanes

    # (3, B*Ho, B*Hin) 0/1 row-gather matrices (O(B^2): grid over batch if B grows)
    eye_b = np.eye(batch, dtype=np.float32)
    r = np.stack([np.kron(eye_b, _sel(ho, hin, di, stride, pad, transposed))
                  for di in range(3)]).astype(np.float32)

    # hstacked column-select x channel-mix matrices, one 128-wide block per tap.
    m = np.zeros((in_lanes, 3 * out_blk), np.float32)
    for di in range(3):
        m_d = sum(np.kron(_sel(wo, win, dj, stride, pad, transposed).T, tap(di, dj))
                  for dj in range(3))                                # (kin, nout)
        m[:kin, di * out_blk: di * out_blk + nout] = m_d

    def lane_row(v):
        row = np.zeros(out_blk, np.float32)
        row[:nout] = np.tile(np.asarray(v, np.float32), wo)
        return row

    rows = [lane_row(b)]                                             # bias
    if gamma is not None:
        rows += [lane_row(gamma), lane_row(beta)]
    aff = np.stack(rows).astype(np.float32)

    plan = {"R": jnp.asarray(r, jnp.float32),
            "M": jnp.asarray(m, jnp.bfloat16),
            "aff": jnp.asarray(aff, jnp.float32)}
    if gamma is not None:
        q = np.zeros((out_blk, out_blk), np.float32)
        q[:nout, :nout] = (np.kron(np.ones((wo, wo), np.float32),
                                   np.eye(cout, dtype=np.float32))
                           / np.float32(batch * ho * wo))
        plan["Q"] = jnp.asarray(q)
    return plan


def prepare_params(params, batch_size):
    """Fold every weight-layout transform into a one-time prep step (outside jit)."""
    p = params
    prep = {
        "conv1": _conv_plan(p["c1_w"], p["c1_b"], 28, 28, 2, 1, 0, False, batch_size,
                            in_lanes=28),
        "conv2": _conv_plan(p["c2_w"], p["c2_b"], 14, 14, 2, 1, 0, False, batch_size,
                            p["bn2_g"], p["bn2_b"], in_lanes=_LANES),
        "conv3": _conv_plan(p["c3_w"], p["c3_b"], 7, 7, 2, 0, 0, False, batch_size,
                            p["bn3_g"], p["bn3_b"], in_lanes=_LANES),
        "t1": _conv_plan(p["t1_w"], p["t1_b"], 3, 3, 2, 0, 0, True, batch_size,
                         p["bt1_g"], p["bt1_b"], in_lanes=_LANES),
        "t2": _conv_plan(p["t2_w"], p["t2_b"], 7, 7, 2, 1, 1, True, batch_size,
                         p["bt2_g"], p["bt2_b"], in_lanes=_LANES),
        "t3": _conv_plan(p["t3_w"], p["t3_b"], 14, 14, 2, 1, 1, True, batch_size,
                         in_lanes=_LANES),
    }

    # fc1 folded with the NCHW Flatten: one (H-row)-block of W1 per 128-lane slab.
    w1_t = np.asarray(p["fc1_w"], np.float32)                              # (128, 288), in = c*9+h*3+w
    w1_f = w1_t.reshape(128, 32, 3, 3).transpose(2, 3, 1, 0).reshape(288, 128)  # row = h*96+w*32+c
    w1cat = np.zeros((_LANES, 3 * _LANES), np.float32)
    for hh in range(3):
        w1cat[:96, hh * _LANES: hh * _LANES + 128] = w1_f[hh * 96:(hh + 1) * 96, :]

    # dfc2 folded with the Unflatten: per-H-row 128-lane slabs in (w*32+c) order.
    w5_t = np.asarray(p["dfc2_w"], np.float32)                             # (288, 64), out = c*9+h*3+w
    w5_f = w5_t.reshape(32, 3, 3, 64).transpose(1, 2, 0, 3).reshape(288, 64)
    b5_f = np.asarray(p["dfc2_b"], np.float32).reshape(32, 3, 3).transpose(1, 2, 0).reshape(288)
    w5cat = np.zeros((64, 3 * _LANES), np.float32)
    b5cat = np.zeros((1, 3 * _LANES), np.float32)
    for hh in range(3):
        w5cat[:, hh * _LANES: hh * _LANES + 96] = w5_f[hh * 96:(hh + 1) * 96, :].T
        b5cat[0, hh * _LANES: hh * _LANES + 96] = b5_f[hh * 96:(hh + 1) * 96]

    # row-select (flatten) / row-place (unflatten) matrices
    rsel = np.zeros((3, batch_size, 3 * batch_size), np.float32)
    for hh in range(3):
        for bb in range(batch_size):
            rsel[hh, bb, 3 * bb + hh] = 1.0
    rselt = np.transpose(rsel, (0, 2, 1)).copy()

    w2 = np.asarray(p["fc2_w"], np.float32).T                              # (128, 64)
    w3 = np.asarray(p["fc3_w"], np.float32).T                              # (64, 16)
    w4 = np.asarray(p["dfc1_w"], np.float32).T                             # (16, 64)
    b3 = np.asarray(p["fc3_b"], np.float32)
    b4 = np.asarray(p["dfc1_b"], np.float32)
    w34 = w3 @ w4                                                          # fold fc3 -> dfc1
    b34 = b3 @ w4 + b4

    prep["fc"] = {
        "rsel": jnp.asarray(rsel, jnp.float32),
        "w1": jnp.asarray(w1cat, jnp.bfloat16),
        "b1": jnp.asarray(np.asarray(p["fc1_b"], np.float32)[None, :]),
        "w2": jnp.asarray(w2, jnp.bfloat16),
        "b2": jnp.asarray(np.asarray(p["fc2_b"], np.float32)[None, :]),
        "w3": jnp.asarray(w3, jnp.bfloat16),
        "b3": jnp.asarray(b3[None, :]),
        "w34": jnp.asarray(w34, jnp.bfloat16),
        "b34": jnp.asarray(b34[None, :]),
        "rselt": jnp.asarray(rselt, jnp.float32),
        "w5": jnp.asarray(w5cat, jnp.bfloat16),
        "b5": jnp.asarray(b5cat),
    }
    return prep


# --------------------------- parameters (torch layout) ---------------------------

def init_params(key):
    def u(k_, shape, fan_in):
        bound = 1.0 / float(fan_in) ** 0.5
        return jax.random.uniform(k_, shape, jnp.float32, -bound, bound)

    ks = iter(jax.random.split(key, 32))
    p = {}
    # encoder convs
    p["c1_w"] = u(next(ks), (8, 1, 3, 3), 1 * 9);    p["c1_b"] = u(next(ks), (8,), 1 * 9)
    p["c2_w"] = u(next(ks), (16, 8, 3, 3), 8 * 9);   p["c2_b"] = u(next(ks), (16,), 8 * 9)
    p["bn2_g"] = jnp.ones((16,), jnp.float32);       p["bn2_b"] = jnp.zeros((16,), jnp.float32)
    p["c3_w"] = u(next(ks), (32, 16, 3, 3), 16 * 9); p["c3_b"] = u(next(ks), (32,), 16 * 9)
    p["bn3_g"] = jnp.ones((32,), jnp.float32);       p["bn3_b"] = jnp.zeros((32,), jnp.float32)
    # encoder linears (torch layout (out, in))
    p["fc1_w"] = u(next(ks), (128, 288), 288);       p["fc1_b"] = u(next(ks), (128,), 288)
    p["fc2_w"] = u(next(ks), (64, 128), 128);        p["fc2_b"] = u(next(ks), (64,), 128)
    p["fc3_w"] = u(next(ks), (16, 64), 64);          p["fc3_b"] = u(next(ks), (16,), 64)
    # decoder linears
    p["dfc1_w"] = u(next(ks), (64, 16), 16);         p["dfc1_b"] = u(next(ks), (64,), 16)
    p["dfc2_w"] = u(next(ks), (288, 64), 64);        p["dfc2_b"] = u(next(ks), (288,), 64)
    # decoder transposed convs (torch layout (in, out, k, k))
    p["t1_w"] = u(next(ks), (32, 16, 3, 3), 16 * 9); p["t1_b"] = u(next(ks), (16,), 16 * 9)
    p["bt1_g"] = jnp.ones((16,), jnp.float32);       p["bt1_b"] = jnp.zeros((16,), jnp.float32)
    p["t2_w"] = u(next(ks), (16, 8, 3, 3), 8 * 9);   p["t2_b"] = u(next(ks), (8,), 8 * 9)
    p["bt2_g"] = jnp.ones((8,), jnp.float32);        p["bt2_b"] = jnp.zeros((8,), jnp.float32)
    p["t3_w"] = u(next(ks), (8, 1, 3, 3), 1 * 9);    p["t3_b"] = u(next(ks), (1,), 1 * 9)
    return p


# --------------------------- forward ---------------------------

def forward(prep, x, noise):
    b, _, h, w = x.shape
    x2 = x.reshape(b * h, w)                    # NCHW (C=1): rows = b*H + h, lanes = w
    n2 = noise.reshape(b * h, w)
    encoding, dec = autoencoder_call(prep, x2, n2)
    decoding = dec.reshape(b, 1, h, w)          # back to NCHW
    return encoding, decoding


# TODO(synk): BatchNorm running-stat updates (a training-time side effect of the
# PyTorch module) are not reproduced; normalization itself uses batch stats.

if __name__ == "__main__":
    key = jax.random.PRNGKey(0)
    pkey, xkey, nkey = jax.random.split(key, 3)
    params = init_params(pkey)
    prep = prepare_params(params, batch_size=2)          # one-time weight relayout

    x = jax.random.uniform(xkey, (2, 1, 28, 28), jnp.float32)   # NCHW, like PyTorch
    noise = jax.random.normal(nkey, x.shape, jnp.float32)       # stands in for torch.randn

    enc, dec = jax.jit(forward)(prep, x, noise)
    jax.block_until_ready((enc, dec))

    assert enc.shape == (2, 16), enc.shape
    assert dec.shape == (2, 1, 28, 28), dec.shape
    assert bool(jnp.all(jnp.isfinite(enc))) and bool(jnp.all(jnp.isfinite(dec)))
    assert bool(jnp.all(dec >= 0.0)) and bool(jnp.all(dec <= 1.0))   # sigmoid output
    print("KERNEL_OK")
</pallas_src>

<mosaic_0001>
module attributes {stable_mosaic.version = 11 : i64} {
  func.func @_autoencoder_kernel(%arg0: memref<56x28xf32, #tpu.memory_space<vmem>>, %arg1: memref<56x28xf32, #tpu.memory_space<vmem>>, %arg2: memref<3x28x56xf32, #tpu.memory_space<vmem>>, %arg3: memref<28x384xbf16, #tpu.memory_space<vmem>>, %arg4: memref<1x128xf32, #tpu.memory_space<vmem>>, %arg5: memref<3x14x28xf32, #tpu.memory_space<vmem>>, %arg6: memref<128x384xbf16, #tpu.memory_space<vmem>>, %arg7: memref<3x128xf32, #tpu.memory_space<vmem>>, %arg8: memref<128x128xf32, #tpu.memory_space<vmem>>, %arg9: memref<3x6x14xf32, #tpu.memory_space<vmem>>, %arg10: memref<128x384xbf16, #tpu.memory_space<vmem>>, %arg11: memref<3x128xf32, #tpu.memory_space<vmem>>, %arg12: memref<128x128xf32, #tpu.memory_space<vmem>>, %arg13: memref<3x2x6xf32, #tpu.memory_space<vmem>>, %arg14: memref<128x384xbf16, #tpu.memory_space<vmem>>, %arg15: memref<1x128xf32, #tpu.memory_space<vmem>>, %arg16: memref<128x64xbf16, #tpu.memory_space<vmem>>, %arg17: memref<1x64xf32, #tpu.memory_space<vmem>>, %arg18: memref<64x16xbf16, #tpu.memory_space<vmem>>, %arg19: memref<1x16xf32, #tpu.memory_space<vmem>>, %arg20: memref<64x64xbf16, #tpu.memory_space<vmem>>, %arg21: memref<1x64xf32, #tpu.memory_space<vmem>>, %arg22: memref<3x6x2xf32, #tpu.memory_space<vmem>>, %arg23: memref<64x384xbf16, #tpu.memory_space<vmem>>, %arg24: memref<1x384xf32, #tpu.memory_space<vmem>>, %arg25: memref<3x14x6xf32, #tpu.memory_space<vmem>>, %arg26: memref<128x384xbf16, #tpu.memory_space<vmem>>, %arg27: memref<3x128xf32, #tpu.memory_space<vmem>>, %arg28: memref<128x128xf32, #tpu.memory_space<vmem>>, %arg29: memref<3x28x14xf32, #tpu.memory_space<vmem>>, %arg30: memref<128x384xbf16, #tpu.memory_space<vmem>>, %arg31: memref<3x128xf32, #tpu.memory_space<vmem>>, %arg32: memref<128x128xf32, #tpu.memory_space<vmem>>, %arg33: memref<3x56x28xf32, #tpu.memory_space<vmem>>, %arg34: memref<128x384xbf16, #tpu.memory_space<vmem>>, %arg35: memref<1x128xf32, #tpu.memory_space<vmem>>, %arg36: memref<2x16xf32, #tpu.memory_space<vmem>>, %arg37: memref<56x28xf32, #tpu.memory_space<vmem>>) attributes {dimension_semantics = [], scalar_prefetch = 0 : i64, scratch_operands = 0 : i64, tpu.core_type = #tpu.core_type<tc>} {
    %c0 = arith.constant 0 : index
    %c0_0 = arith.constant 0 : index
    %0 = vector.load %arg0[%c0, %c0_0] : memref<56x28xf32, #tpu.memory_space<vmem>>, vector<56x28xf32>
    %c0_1 = arith.constant 0 : index
    %c0_2 = arith.constant 0 : index
    %1 = vector.load %arg1[%c0_1, %c0_2] : memref<56x28xf32, #tpu.memory_space<vmem>>, vector<56x28xf32>
    %cst = arith.constant 2.000000e-01 : f32
    %2 = vector.broadcast %cst : f32 to vector<56x28xf32>
    %3 = arith.mulf %2, %1 : vector<56x28xf32>
    %4 = arith.addf %0, %3 : vector<56x28xf32>
    %5 = arith.truncf %4 : vector<56x28xf32> to vector<56x28xbf16>
    %c0_3 = arith.constant 0 : index
    %c0_4 = arith.constant 0 : index
    %6 = vector.load %arg3[%c0_3, %c0_4] : memref<28x384xbf16, #tpu.memory_space<vmem>>, vector<28x384xbf16>
    %cst_5 = arith.constant dense<0.000000e+00> : vector<56x384xf32>
    %7 = tpu.matmul %5, %6, %cst_5 {dimension_numbers = #tpu.dot_dimension_numbers<[1], [0], [0], [1], [0, 0, 1, 1], [], []>} : vector<56x28xbf16>, vector<28x384xbf16>, vector<56x384xf32> -> vector<56x384xf32>
    %c0_6 = arith.constant 0 : index
    %c0_7 = arith.constant 0 : index
    %c0_8 = arith.constant 0 : index
    %8 = vector.load %arg2[%c0_6, %c0_7, %c0_8] : memref<3x28x56xf32, #tpu.memory_space<vmem>>, vector<1x28x56xf32>
    %9 = vector.shape_cast %8 : vector<1x28x56xf32> to vector<28x56xf32>
    %10 = vector.extract_strided_slice %7 {offsets = [0, 0], sizes = [56, 128], strides = [1, 1]} : vector<56x384xf32> to vector<56x128xf32>
    %cst_9 = arith.constant dense<0.000000e+00> : vector<28x128xf32>
    %11 = tpu.matmul %9, %10, %cst_9 {dimension_numbers = #tpu.dot_dimension_numbers<[1], [0], [0], [1], [0, 0, 1, 1], [], []>} : vector<28x56xf32>, vector<56x128xf32>, vector<28x128xf32> -> vector<28x128xf32>
    %c1 = arith.constant 1 : index
    %c0_10 = arith.constant 0 : index
    %c0_11 = arith.constant 0 : index
    %12 = vector.load %arg2[%c1, %c0_10, %c0_11] : memref<3x28x56xf32, #tpu.memory_space<vmem>>, vector<1x28x56xf32>
    %13 = vector.shape_cast %12 : vector<1x28x56xf32> to vector<28x56xf32>
    %14 = vector.extract_strided_slice %7 {offsets = [0, 128], sizes = [56, 128], strides = [1, 1]} : vector<56x384xf32> to vector<56x128xf32>
    %cst_12 = arith.constant dense<0.000000e+00> : vector<28x128xf32>
    %15 = tpu.matmul %13, %14, %cst_12 {dimension_numbers = #tpu.dot_dimension_numbers<[1], [0], [0], [1], [0, 0, 1, 1], [], []>} : vector<28x56xf32>, vector<56x128xf32>, vector<28x128xf32> -> vector<28x128xf32>
    %16 = arith.addf %11, %15 : vector<28x128xf32>
    %c2 = arith.constant 2 : index
    %c0_13 = arith.constant 0 : index
    %c0_14 = arith.constant 0 : index
    %17 = vector.load %arg2[%c2, %c0_13, %c0_14] : memref<3x28x56xf32, #tpu.memory_space<vmem>>, vector<1x28x56xf32>
    %18 = vector.shape_cast %17 : vector<1x28x56xf32> to vector<28x56xf32>
    %19 = vector.extract_strided_slice %7 {offsets = [0, 256], sizes = [56, 128], strides = [1, 1]} : vector<56x384xf32> to vector<56x128xf32>
    %cst_15 = arith.constant dense<0.000000e+00> : vector<28x128xf32>
    %20 = tpu.matmul %18, %19, %cst_15 {dimension_numbers = #tpu.dot_dimension_numbers<[1], [0], [0], [1], [0, 0, 1, 1], [], []>} : vector<28x56xf32>, vector<56x128xf32>, vector<28x128xf32> -> vector<28x128xf32>
    %21 = arith.addf %16, %20 : vector<28x128xf32>
    %c0_16 = arith.constant 0 : index
    %c0_17 = arith.constant 0 : index
    %22 = vector.load %arg4[%c0_16, %c0_17] : memref<1x128xf32, #tpu.memory_space<vmem>>, vector<1x128xf32>
    %23 = vector.broadcast %22 : vector<1x128xf32> to vector<28x128xf32>
    %24 = arith.addf %21, %23 : vector<28x128xf32>
    %cst_18 = arith.constant 0.000000e+00 : f32
    %25 = vector.broadcast %cst_18 : f32 to vector<28x128xf32>
    %26 = arith.maximumf %24, %25 : vector<28x128xf32>
    %27 = arith.truncf %26 : vector<28x128xf32> to vector<28x128xbf16>
    %c0_19 = arith.constant 0 : index
    %c0_20 = arith.constant 0 : index
    %28 = vector.load %arg6[%c0_19, %c0_20] : memref<128x384xbf16, #tpu.memory_space<vmem>>, vector<128x384xbf16>
    %cst_21 = arith.constant dense<0.000000e+00> : vector<28x384xf32>
    %29 = tpu.matmul %27, %28, %cst_21 {dimension_numbers = #tpu.dot_dimension_numbers<[1], [0], [0], [1], [0, 0, 1, 1], [], []>} : vector<28x128xbf16>, vector<128x384xbf16>, vector<28x384xf32> -> vector<28x384xf32>
    %c0_22 = arith.constant 0 : index
    %c0_23 = arith.constant 0 : index
    %c0_24 = arith.constant 0 : index
    %30 = vector.load %arg5[%c0_22, %c0_23, %c0_24] : memref<3x14x28xf32, #tpu.memory_space<vmem>>, vector<1x14x28xf32>
    %31 = vector.shape_cast %30 : vector<1x14x28xf32> to vector<14x28xf32>
    %32 = vector.extract_strided_slice %29 {offsets = [0, 0], sizes = [28, 128], strides = [1, 1]} : vector<28x384xf32> to vector<28x128xf32>
    %cst_25 = arith.constant dense<0.000000e+00> : vector<14x128xf32>
    %33 = tpu.matmul %31, %32, %cst_25 {dimension_numbers = #tpu.dot_dimension_numbers<[1], [0], [0], [1], [0, 0, 1, 1], [], []>} : vector<14x28xf32>, vector<28x128xf32>, vector<14x128xf32> -> vector<14x128xf32>
    %c1_26 = arith.constant 1 : index
    %c0_27 = arith.constant 0 : index
    %c0_28 = arith.constant 0 : index
    %34 = vector.load %arg5[%c1_26, %c0_27, %c0_28] : memref<3x14x28xf32, #tpu.memory_space<vmem>>, vector<1x14x28xf32>
    %35 = vector.shape_cast %34 : vector<1x14x28xf32> to vector<14x28xf32>
    %36 = vector.extract_strided_slice %29 {offsets = [0, 128], sizes = [28, 128], strides = [1, 1]} : vector<28x384xf32> to vector<28x128xf32>
    %cst_29 = arith.constant dense<0.000000e+00> : vector<14x128xf32>
    %37 = tpu.matmul %35, %36, %cst_29 {dimension_numbers = #tpu.dot_dimension_numbers<[1], [0], [0], [1], [0, 0, 1, 1], [], []>} : vector<14x28xf32>, vector<28x128xf32>, vector<14x128xf32> -> vector<14x128xf32>
    %38 = arith.addf %33, %37 : vector<14x128xf32>
    %c2_30 = arith.constant 2 : index
    %c0_31 = arith.constant 0 : index
    %c0_32 = arith.constant 0 : index
    %39 = vector.load %arg5[%c2_30, %c0_31, %c0_32] : memref<3x14x28xf32, #tpu.memory_space<vmem>>, vector<1x14x28xf32>
    %40 = vector.shape_cast %39 : vector<1x14x28xf32> to vector<14x28xf32>
    %41 = vector.extract_strided_slice %29 {offsets = [0, 256], sizes = [28, 128], strides = [1, 1]} : vector<28x384xf32> to vector<28x128xf32>
    %cst_33 = arith.constant dense<0.000000e+00> : vector<14x128xf32>
    %42 = tpu.matmul %40, %41, %cst_33 {dimension_numbers = #tpu.dot_dimension_numbers<[1], [0], [0], [1], [0, 0, 1, 1], [], []>} : vector<14x28xf32>, vector<28x128xf32>, vector<14x128xf32> -> vector<14x128xf32>
    %43 = arith.addf %38, %42 : vector<14x128xf32>
    %c0_34 = arith.constant 0 : index
    %c0_35 = arith.constant 0 : index
    %44 = vector.load %arg7[%c0_34, %c0_35] : memref<3x128xf32, #tpu.memory_space<vmem>>, vector<1x128xf32>
    %45 = vector.broadcast %44 : vector<1x128xf32> to vector<14x128xf32>
    %46 = arith.addf %43, %45 : vector<14x128xf32>
    %cst_36 = arith.constant dense<0.000000e+00> : vector<128xf32>
    %47 = vector.multi_reduction <add>, %46, %cst_36 [0] : vector<14x128xf32> to vector<128xf32>
    %48 = vector.shape_cast %47 : vector<128xf32> to vector<1x128xf32>
    %49 = arith.mulf %46, %46 : vector<14x128xf32>
    %cst_37 = arith.constant dense<0.000000e+00> : vector<128xf32>
    %50 = vector.multi_reduction <add>, %49, %cst_37 [0] : vector<14x128xf32> to vector<128xf32>
    %51 = vector.shape_cast %50 : vector<128xf32> to vector<1x128xf32>
    %52 = tpu.concatenate %48, %51 in 0 : vector<1x128xf32>, vector<1x128xf32> -> vector<2x128xf32>
    %c0_38 = arith.constant 0 : index
    %c0_39 = arith.constant 0 : index
    %53 = vector.load %arg8[%c0_38, %c0_39] : memref<128x128xf32, #tpu.memory_space<vmem>>, vector<128x128xf32>
    %cst_40 = arith.constant dense<0.000000e+00> : vector<2x128xf32>
    %54 = tpu.matmul %52, %53, %cst_40 {dimension_numbers = #tpu.dot_dimension_numbers<[1], [0], [0], [1], [0, 0, 1, 1], [], []>} : vector<2x128xf32>, vector<128x128xf32>, vector<2x128xf32> -> vector<2x128xf32>
    %55 = vector.extract_strided_slice %54 {offsets = [0, 0], sizes = [1, 128], strides = [1, 1]} : vector<2x128xf32> to vector<1x128xf32>
    %56 = vector.extract_strided_slice %54 {offsets = [1, 0], sizes = [1, 128], strides = [1, 1]} : vector<2x128xf32> to vector<1x128xf32>
    %57 = arith.mulf %55, %55 : vector<1x128xf32>
    %58 = arith.subf %56, %57 : vector<1x128xf32>
    %cst_41 = arith.constant 0.000000e+00 : f32
    %59 = vector.broadcast %cst_41 : f32 to vector<1x128xf32>
    %60 = arith.maximumf %58, %59 : vector<1x128xf32>
    %61 = vector.broadcast %55 : vector<1x128xf32> to vector<14x128xf32>
    %62 = arith.subf %46, %61 : vector<14x128xf32>
    %cst_42 = arith.constant 9.99999974E-6 : f32
    %63 = vector.broadcast %cst_42 : f32 to vector<1x128xf32>
    %64 = arith.addf %60, %63 : vector<1x128xf32>
    %65 = math.rsqrt %64 : vector<1x128xf32>
    %66 = vector.broadcast %65 : vector<1x128xf32> to vector<14x128xf32>
    %67 = arith.mulf %62, %66 : vector<14x128xf32>
    %c1_43 = arith.constant 1 : index
    %c0_44 = arith.constant 0 : index
    %68 = vector.load %arg7[%c1_43, %c0_44] : memref<3x128xf32, #tpu.memory_space<vmem>>, vector<1x128xf32>
    %69 = vector.broadcast %68 : vector<1x128xf32> to vector<14x128xf32>
    %70 = arith.mulf %67, %69 : vector<14x128xf32>
    %c2_45 = arith.constant 2 : index
    %c0_46 = arith.constant 0 : index
    %71 = vector.load %arg7[%c2_45, %c0_46] : memref<3x128xf32, #tpu.memory_space<vmem>>, vector<1x128xf32>
    %72 = vector.broadcast %71 : vector<1x128xf32> to vector<14x128xf32>
    %73 = arith.addf %70, %72 : vector<14x128xf32>
    %cst_47 = arith.constant 0.000000e+00 : f32
    %74 = vector.broadcast %cst_47 : f32 to vector<14x128xf32>
    %75 = arith.maximumf %73, %74 : vector<14x128xf32>
    %76 = arith.truncf %75 : vector<14x128xf32> to vector<14x128xbf16>
    %c0_48 = arith.constant 0 : index
    %c0_49 = arith.constant 0 : index
    %77 = vector.load %arg10[%c0_48, %c0_49] : memref<128x384xbf16, #tpu.memory_space<vmem>>, vector<128x384xbf16>
    %cst_50 = arith.constant dense<0.000000e+00> : vector<14x384xf32>
    %78 = tpu.matmul %76, %77, %cst_50 {dimension_numbers = #tpu.dot_dimension_numbers<[1], [0], [0], [1], [0, 0, 1, 1], [], []>} : vector<14x128xbf16>, vector<128x384xbf16>, vector<14x384xf32> -> vector<14x384xf32>
    %c0_51 = arith.constant 0 : index
    %c0_52 = arith.constant 0 : index
    %c0_53 = arith.constant 0 : index
    %79 = vector.load %arg9[%c0_51, %c0_52, %c0_53] : memref<3x6x14xf32, #tpu.memory_space<vmem>>, vector<1x6x14xf32>
    %80 = vector.shape_cast %79 : vector<1x6x14xf32> to vector<6x14xf32>
    %81 = vector.extract_strided_slice %78 {offsets = [0, 0], sizes = [14, 128], strides = [1, 1]} : vector<14x384xf32> to vector<14x128xf32>
    %cst_54 = arith.constant dense<0.000000e+00> : vector<6x128xf32>
    %82 = tpu.matmul %80, %81, %cst_54 {dimension_numbers = #tpu.dot_dimension_numbers<[1], [0], [0], [1], [0, 0, 1, 1], [], []>} : vector<6x14xf32>, vector<14x128xf32>, vector<6x128xf32> -> vector<6x128xf32>
    %c1_55 = arith.constant 1 : index
    %c0_56 = arith.constant 0 : index
    %c0_57 = arith.constant 0 : index
    %83 = vector.load %arg9[%c1_55, %c0_56, %c0_57] : memref<3x6x14xf32, #tpu.memory_space<vmem>>, vector<1x6x14xf32>
    %84 = vector.shape_cast %83 : vector<1x6x14xf32> to vector<6x14xf32>
    %85 = vector.extract_strided_slice %78 {offsets = [0, 128], sizes = [14, 128], strides = [1, 1]} : vector<14x384xf32> to vector<14x128xf32>
    %cst_58 = arith.constant dense<0.000000e+00> : vector<6x128xf32>
    %86 = tpu.matmul %84, %85, %cst_58 {dimension_numbers = #tpu.dot_dimension_numbers<[1], [0], [0], [1], [0, 0, 1, 1], [], []>} : vector<6x14xf32>, vector<14x128xf32>, vector<6x128xf32> -> vector<6x128xf32>
    %87 = arith.addf %82, %86 : vector<6x128xf32>
    %c2_59 = arith.constant 2 : index
    %c0_60 = arith.constant 0 : index
    %c0_61 = arith.constant 0 : index
    %88 = vector.load %arg9[%c2_59, %c0_60, %c0_61] : memref<3x6x14xf32, #tpu.memory_space<vmem>>, vector<1x6x14xf32>
    %89 = vector.shape_cast %88 : vector<1x6x14xf32> to vector<6x14xf32>
    %90 = vector.extract_strided_slice %78 {offsets = [0, 256], sizes = [14, 128], strides = [1, 1]} : vector<14x384xf32> to vector<14x128xf32>
    %cst_62 = arith.constant dense<0.000000e+00> : vector<6x128xf32>
    %91 = tpu.matmul %89, %90, %cst_62 {dimension_numbers = #tpu.dot_dimension_numbers<[1], [0], [0], [1], [0, 0, 1, 1], [], []>} : vector<6x14xf32>, vector<14x128xf32>, vector<6x128xf32> -> vector<6x128xf32>
    %92 = arith.addf %87, %91 : vector<6x128xf32>
    %c0_63 = arith.constant 0 : index
    %c0_64 = arith.constant 0 : index
    %93 = vector.load %arg11[%c0_63, %c0_64] : memref<3x128xf32, #tpu.memory_space<vmem>>, vector<1x128xf32>
    %94 = vector.broadcast %93 : vector<1x128xf32> to vector<6x128xf32>
    %95 = arith.addf %92, %94 : vector<6x128xf32>
    %cst_65 = arith.constant dense<0.000000e+00> : vector<128xf32>
    %96 = vector.multi_reduction <add>, %95, %cst_65 [0] : vector<6x128xf32> to vector<128xf32>
    %97 = vector.shape_cast %96 : vector<128xf32> to vector<1x128xf32>
    %98 = arith.mulf %95, %95 : vector<6x128xf32>
    %cst_66 = arith.constant dense<0.000000e+00> : vector<128xf32>
    %99 = vector.multi_reduction <add>, %98, %cst_66 [0] : vector<6x128xf32> to vector<128xf32>
    %100 = vector.shape_cast %99 : vector<128xf32> to vector<1x128xf32>
    %101 = tpu.concatenate %97, %100 in 0 : vector<1x128xf32>, vector<1x128xf32> -> vector<2x128xf32>
    %c0_67 = arith.constant 0 : index
    %c0_68 = arith.constant 0 : index
    %102 = vector.load %arg12[%c0_67, %c0_68] : memref<128x128xf32, #tpu.memory_space<vmem>>, vector<128x128xf32>
    %cst_69 = arith.constant dense<0.000000e+00> : vector<2x128xf32>
    %103 = tpu.matmul %101, %102, %cst_69 {dimension_numbers = #tpu.dot_dimension_numbers<[1], [0], [0], [1], [0, 0, 1, 1], [], []>} : vector<2x128xf32>, vector<128x128xf32>, vector<2x128xf32> -> vector<2x128xf32>
    %104 = vector.extract_strided_slice %103 {offsets = [0, 0], sizes = [1, 128], strides = [1, 1]} : vector<2x128xf32> to vector<1x128xf32>
    %105 = vector.extract_strided_slice %103 {offsets = [1, 0], sizes = [1, 128], strides = [1, 1]} : vector<2x128xf32> to vector<1x128xf32>
    %106 = arith.mulf %104, %104 : vector<1x128xf32>
    %107 = arith.subf %105, %106 : vector<1x128xf32>
    %cst_70 = arith.constant 0.000000e+00 : f32
    %108 = vector.broadcast %cst_70 : f32 to vector<1x128xf32>
    %109 = arith.maximumf %107, %108 : vector<1x128xf32>
    %110 = vector.broadcast %104 : vector<1x128xf32> to vector<6x128xf32>
    %111 = arith.subf %95, %110 : vector<6x128xf32>
    %cst_71 = arith.constant 9.99999974E-6 : f32
    %112 = vector.broadcast %cst_71 : f32 to vector<1x128xf32>
    %113 = arith.addf %109, %112 : vector<1x128xf32>
    %114 = math.rsqrt %113 : vector<1x128xf32>
    %115 = vector.broadcast %114 : vector<1x128xf32> to vector<6x128xf32>
    %116 = arith.mulf %111, %115 : vector<6x128xf32>
    %c1_72 = arith.constant 1 : index
    %c0_73 = arith.constant 0 : index
    %117 = vector.load %arg11[%c1_72, %c0_73] : memref<3x128xf32, #tpu.memory_space<vmem>>, vector<1x128xf32>
    %118 = vector.broadcast %117 : vector<1x128xf32> to vector<6x128xf32>
    %119 = arith.mulf %116, %118 : vector<6x128xf32>
    %c2_74 = arith.constant 2 : index
    %c0_75 = arith.constant 0 : index
    %120 = vector.load %arg11[%c2_74, %c0_75] : memref<3x128xf32, #tpu.memory_space<vmem>>, vector<1x128xf32>
    %121 = vector.broadcast %120 : vector<1x128xf32> to vector<6x128xf32>
    %122 = arith.addf %119, %121 : vector<6x128xf32>
    %cst_76 = arith.constant 0.000000e+00 : f32
    %123 = vector.broadcast %cst_76 : f32 to vector<6x128xf32>
    %124 = arith.maximumf %122, %123 : vector<6x128xf32>
    %125 = arith.truncf %124 : vector<6x128xf32> to vector<6x128xbf16>
    %c0_77 = arith.constant 0 : index
    %c0_78 = arith.constant 0 : index
    %126 = vector.load %arg14[%c0_77, %c0_78] : memref<128x384xbf16, #tpu.memory_space<vmem>>, vector<128x384xbf16>
    %cst_79 = arith.constant dense<0.000000e+00> : vector<6x384xf32>
    %127 = tpu.matmul %125, %126, %cst_79 {dimension_numbers = #tpu.dot_dimension_numbers<[1], [0], [0], [1], [0, 0, 1, 1], [], []>} : vector<6x128xbf16>, vector<128x384xbf16>, vector<6x384xf32> -> vector<6x384xf32>
    %c0_80 = arith.constant 0 : index
    %c0_81 = arith.constant 0 : index
    %c0_82 = arith.constant 0 : index
    %128 = vector.load %arg13[%c0_80, %c0_81, %c0_82] : memref<3x2x6xf32, #tpu.memory_space<vmem>>, vector<1x2x6xf32>
    %129 = vector.shape_cast %128 : vector<1x2x6xf32> to vector<2x6xf32>
    %130 = vector.extract_strided_slice %127 {offsets = [0, 0], sizes = [6, 128], strides = [1, 1]} : vector<6x384xf32> to vector<6x128xf32>
    %cst_83 = arith.constant dense<0.000000e+00> : vector<2x128xf32>
    %131 = tpu.matmul %129, %130, %cst_83 {dimension_numbers = #tpu.dot_dimension_numbers<[1], [0], [0], [1], [0, 0, 1, 1], [], []>} : vector<2x6xf32>, vector<6x128xf32>, vector<2x128xf32> -> vector<2x128xf32>
    %c1_84 = arith.constant 1 : index
    %c0_85 = arith.constant 0 : index
    %c0_86 = arith.constant 0 : index
    %132 = vector.load %arg13[%c1_84, %c0_85, %c0_86] : memref<3x2x6xf32, #tpu.memory_space<vmem>>, vector<1x2x6xf32>
    %133 = vector.shape_cast %132 : vector<1x2x6xf32> to vector<2x6xf32>
    %134 = vector.extract_strided_slice %127 {offsets = [0, 128], sizes = [6, 128], strides = [1, 1]} : vector<6x384xf32> to vector<6x128xf32>
    %cst_87 = arith.constant dense<0.000000e+00> : vector<2x128xf32>
    %135 = tpu.matmul %133, %134, %cst_87 {dimension_numbers = #tpu.dot_dimension_numbers<[1], [0], [0], [1], [0, 0, 1, 1], [], []>} : vector<2x6xf32>, vector<6x128xf32>, vector<2x128xf32> -> vector<2x128xf32>
    %136 = arith.addf %131, %135 : vector<2x128xf32>
    %c2_88 = arith.constant 2 : index
    %c0_89 = arith.constant 0 : index
    %c0_90 = arith.constant 0 : index
    %137 = vector.load %arg13[%c2_88, %c0_89, %c0_90] : memref<3x2x6xf32, #tpu.memory_space<vmem>>, vector<1x2x6xf32>
    %138 = vector.shape_cast %137 : vector<1x2x6xf32> to vector<2x6xf32>
    %139 = vector.extract_strided_slice %127 {offsets = [0, 256], sizes = [6, 128], strides = [1, 1]} : vector<6x384xf32> to vector<6x128xf32>
    %cst_91 = arith.constant dense<0.000000e+00> : vector<2x128xf32>
    %140 = tpu.matmul %138, %139, %cst_91 {dimension_numbers = #tpu.dot_dimension_numbers<[1], [0], [0], [1], [0, 0, 1, 1], [], []>} : vector<2x6xf32>, vector<6x128xf32>, vector<2x128xf32> -> vector<2x128xf32>
    %141 = arith.addf %136, %140 : vector<2x128xf32>
    %c0_92 = arith.constant 0 : index
    %c0_93 = arith.constant 0 : index
    %142 = vector.load %arg15[%c0_92, %c0_93] : memref<1x128xf32, #tpu.memory_space<vmem>>, vector<1x128xf32>
    %143 = vector.broadcast %142 : vector<1x128xf32> to vector<2x128xf32>
    %144 = arith.addf %141, %143 : vector<2x128xf32>
    %cst_94 = arith.constant 0.000000e+00 : f32
    %145 = vector.broadcast %cst_94 : f32 to vector<2x128xf32>
    %146 = arith.maximumf %144, %145 : vector<2x128xf32>
    %147 = arith.truncf %146 : vector<2x128xf32> to vector<2x128xbf16>
    %c0_95 = arith.constant 0 : index
    %c0_96 = arith.constant 0 : index
    %148 = vector.load %arg16[%c0_95, %c0_96] : memref<128x64xbf16, #tpu.memory_space<vmem>>, vector<128x64xbf16>
    %cst_97 = arith.constant dense<0.000000e+00> : vector<2x64xf32>
    %149 = tpu.matmul %147, %148, %cst_97 {dimension_numbers = #tpu.dot_dimension_numbers<[1], [0], [0], [1], [0, 0, 1, 1], [], []>} : vector<2x128xbf16>, vector<128x64xbf16>, vector<2x64xf32> -> vector<2x64xf32>
    %c0_98 = arith.constant 0 : index
    %c0_99 = arith.constant 0 : index
    %150 = vector.load %arg17[%c0_98, %c0_99] : memref<1x64xf32, #tpu.memory_space<vmem>>, vector<1x64xf32>
    %151 = vector.broadcast %150 : vector<1x64xf32> to vector<2x64xf32>
    %152 = arith.addf %149, %151 : vector<2x64xf32>
    %cst_100 = arith.constant 0.000000e+00 : f32
    %153 = vector.broadcast %cst_100 : f32 to vector<2x64xf32>
    %154 = arith.maximumf %152, %153 : vector<2x64xf32>
    %155 = arith.truncf %154 : vector<2x64xf32> to vector<2x64xbf16>
    %c0_101 = arith.constant 0 : index
    %c0_102 = arith.constant 0 : index
    %156 = vector.load %arg18[%c0_101, %c0_102] : memref<64x16xbf16, #tpu.memory_space<vmem>>, vector<64x16xbf16>
    %cst_103 = arith.constant dense<0.000000e+00> : vector<2x16xf32>
    %157 = tpu.matmul %155, %156, %cst_103 {dimension_numbers = #tpu.dot_dimension_numbers<[1], [0], [0], [1], [0, 0, 1, 1], [], []>} : vector<2x64xbf16>, vector<64x16xbf16>, vector<2x16xf32> -> vector<2x16xf32>
    %c0_104 = arith.constant 0 : index
    %c0_105 = arith.constant 0 : index
    %158 = vector.load %arg19[%c0_104, %c0_105] : memref<1x16xf32, #tpu.memory_space<vmem>>, vector<1x16xf32>
    %159 = vector.broadcast %158 : vector<1x16xf32> to vector<2x16xf32>
    %160 = arith.addf %157, %159 : vector<2x16xf32>
    %c0_106 = arith.constant 0 : index
    %c0_107 = arith.constant 0 : index
    %161 = vector.load %arg36[%c0_106, %c0_107] : memref<2x16xf32, #tpu.memory_space<vmem>>, vector<2x16xf32>
    tpu.vector_store %arg36[%c0_106, %c0_107], %160 {strides = array<i32>} : memref<2x16xf32, #tpu.memory_space<vmem>>, vector<2x16xf32>,
    %162 = arith.truncf %154 : vector<2x64xf32> to vector<2x64xbf16>
    %c0_108 = arith.constant 0 : index
    %c0_109 = arith.constant 0 : index
    %163 = vector.load %arg20[%c0_108, %c0_109] : memref<64x64xbf16, #tpu.memory_space<vmem>>, vector<64x64xbf16>
    %cst_110 = arith.constant dense<0.000000e+00> : vector<2x64xf32>
    %164 = tpu.matmul %162, %163, %cst_110 {dimension_numbers = #tpu.dot_dimension_numbers<[1], [0], [0], [1], [0, 0, 1, 1], [], []>} : vector<2x64xbf16>, vector<64x64xbf16>, vector<2x64xf32> -> vector<2x64xf32>
    %c0_111 = arith.constant 0 : index
    %c0_112 = arith.constant 0 : index
    %165 = vector.load %arg21[%c0_111, %c0_112] : memref<1x64xf32, #tpu.memory_space<vmem>>, vector<1x64xf32>
    %166 = vector.broadcast %165 : vector<1x64xf32> to vector<2x64xf32>
    %167 = arith.addf %164, %166 : vector<2x64xf32>
    %cst_113 = arith.constant 0.000000e+00 : f32
    %168 = vector.broadcast %cst_113 : f32 to vector<2x64xf32>
    %169 = arith.maximumf %167, %168 : vector<2x64xf32>
    %170 = arith.truncf %169 : vector<2x64xf32> to vector<2x64xbf16>
    %c0_114 = arith.constant 0 : index
    %c0_115 = arith.constant 0 : index
    %171 = vector.load %arg23[%c0_114, %c0_115] : memref<64x384xbf16, #tpu.memory_space<vmem>>, vector<64x384xbf16>
    %cst_116 = arith.constant dense<0.000000e+00> : vector<2x384xf32>
    %172 = tpu.matmul %170, %171, %cst_116 {dimension_numbers = #tpu.dot_dimension_numbers<[1], [0], [0], [1], [0, 0, 1, 1], [], []>} : vector<2x64xbf16>, vector<64x384xbf16>, vector<2x384xf32> -> vector<2x384xf32>
    %c0_117 = arith.constant 0 : index
    %c0_118 = arith.constant 0 : index
    %173 = vector.load %arg24[%c0_117, %c0_118] : memref<1x384xf32, #tpu.memory_space<vmem>>, vector<1x384xf32>
    %174 = vector.broadcast %173 : vector<1x384xf32> to vector<2x384xf32>
    %175 = arith.addf %172, %174 : vector<2x384xf32>
    %cst_119 = arith.constant 0.000000e+00 : f32
    %176 = vector.broadcast %cst_119 : f32 to vector<2x384xf32>
    %177 = arith.maximumf %175, %176 : vector<2x384xf32>
    %c0_120 = arith.constant 0 : index
    %c0_121 = arith.constant 0 : index
    %c0_122 = arith.constant 0 : index
    %178 = vector.load %arg22[%c0_120, %c0_121, %c0_122] : memref<3x6x2xf32, #tpu.memory_space<vmem>>, vector<1x6x2xf32>
    %179 = vector.shape_cast %178 : vector<1x6x2xf32> to vector<6x2xf32>
    %180 = vector.extract_strided_slice %177 {offsets = [0, 0], sizes = [2, 128], strides = [1, 1]} : vector<2x384xf32> to vector<2x128xf32>
    %cst_123 = arith.constant dense<0.000000e+00> : vector<6x128xf32>
    %181 = tpu.matmul %179, %180, %cst_123 {dimension_numbers = #tpu.dot_dimension_numbers<[1], [0], [0], [1], [0, 0, 1, 1], [], []>} : vector<6x2xf32>, vector<2x128xf32>, vector<6x128xf32> -> vector<6x128xf32>
    %c1_124 = arith.constant 1 : index
    %c0_125 = arith.constant 0 : index
    %c0_126 = arith.constant 0 : index
    %182 = vector.load %arg22[%c1_124, %c0_125, %c0_126] : memref<3x6x2xf32, #tpu.memory_space<vmem>>, vector<1x6x2xf32>
    %183 = vector.shape_cast %182 : vector<1x6x2xf32> to vector<6x2xf32>
    %184 = vector.extract_strided_slice %177 {offsets = [0, 128], sizes = [2, 128], strides = [1, 1]} : vector<2x384xf32> to vector<2x128xf32>
    %cst_127 = arith.constant dense<0.000000e+00> : vector<6x128xf32>
    %185 = tpu.matmul %183, %184, %cst_127 {dimension_numbers = #tpu.dot_dimension_numbers<[1], [0], [0], [1], [0, 0, 1, 1], [], []>} : vector<6x2xf32>, vector<2x128xf32>, vector<6x128xf32> -> vector<6x128xf32>
    %186 = arith.addf %181, %185 : vector<6x128xf32>
    %c2_128 = arith.constant 2 : index
    %c0_129 = arith.constant 0 : index
    %c0_130 = arith.constant 0 : index
    %187 = vector.load %arg22[%c2_128, %c0_129, %c0_130] : memref<3x6x2xf32, #tpu.memory_space<vmem>>, vector<1x6x2xf32>
    %188 = vector.shape_cast %187 : vector<1x6x2xf32> to vector<6x2xf32>
    %189 = vector.extract_strided_slice %177 {offsets = [0, 256], sizes = [2, 128], strides = [1, 1]} : vector<2x384xf32> to vector<2x128xf32>
    %cst_131 = arith.constant dense<0.000000e+00> : vector<6x128xf32>
    %190 = tpu.matmul %188, %189, %cst_131 {dimension_numbers = #tpu.dot_dimension_numbers<[1], [0], [0], [1], [0, 0, 1, 1], [], []>} : vector<6x2xf32>, vector<2x128xf32>, vector<6x128xf32> -> vector<6x128xf32>
    %191 = arith.addf %186, %190 : vector<6x128xf32>
    %192 = arith.truncf %191 : vector<6x128xf32> to vector<6x128xbf16>
    %c0_132 = arith.constant 0 : index
    %c0_133 = arith.constant 0 : index
    %193 = vector.load %arg26[%c0_132, %c0_133] : memref<128x384xbf16, #tpu.memory_space<vmem>>, vector<128x384xbf16>
    %cst_134 = arith.constant dense<0.000000e+00> : vector<6x384xf32>
    %194 = tpu.matmul %192, %193, %cst_134 {dimension_numbers = #tpu.dot_dimension_numbers<[1], [0], [0], [1], [0, 0, 1, 1], [], []>} : vector<6x128xbf16>, vector<128x384xbf16>, vector<6x384xf32> -> vector<6x384xf32>
    %c0_135 = arith.constant 0 : index
    %c0_136 = arith.constant 0 : index
    %c0_137 = arith.constant 0 : index
    %195 = vector.load %arg25[%c0_135, %c0_136, %c0_137] : memref<3x14x6xf32, #tpu.memory_space<vmem>>, vector<1x14x6xf32>
    %196 = vector.shape_cast %195 : vector<1x14x6xf32> to vector<14x6xf32>
    %197 = vector.extract_strided_slice %194 {offsets = [0, 0], sizes = [6, 128], strides = [1, 1]} : vector<6x384xf32> to vector<6x128xf32>
    %cst_138 = arith.constant dense<0.000000e+00> : vector<14x128xf32>
    %198 = tpu.matmul %196, %197, %cst_138 {dimension_numbers = #tpu.dot_dimension_numbers<[1], [0], [0], [1], [0, 0, 1, 1], [], []>} : vector<14x6xf32>, vector<6x128xf32>, vector<14x128xf32> -> vector<14x128xf32>
    %c1_139 = arith.constant 1 : index
    %c0_140 = arith.constant 0 : index
    %c0_141 = arith.constant 0 : index
    %199 = vector.load %arg25[%c1_139, %c0_140, %c0_141] : memref<3x14x6xf32, #tpu.memory_space<vmem>>, vector<1x14x6xf32>
    %200 = vector.shape_cast %199 : vector<1x14x6xf32> to vector<14x6xf32>
    %201 = vector.extract_strided_slice %194 {offsets = [0, 128], sizes = [6, 128], strides = [1, 1]} : vector<6x384xf32> to vector<6x128xf32>
    %cst_142 = arith.constant dense<0.000000e+00> : vector<14x128xf32>
    %202 = tpu.matmul %200, %201, %cst_142 {dimension_numbers = #tpu.dot_dimension_numbers<[1], [0], [0], [1], [0, 0, 1, 1], [], []>} : vector<14x6xf32>, vector<6x128xf32>, vector<14x128xf32> -> vector<14x128xf32>
    %203 = arith.addf %198, %202 : vector<14x128xf32>
    %c2_143 = arith.constant 2 : index
    %c0_144 = arith.constant 0 : index
    %c0_145 = arith.constant 0 : index
    %204 = vector.load %arg25[%c2_143, %c0_144, %c0_145] : memref<3x14x6xf32, #tpu.memory_space<vmem>>, vector<1x14x6xf32>
    %205 = vector.shape_cast %204 : vector<1x14x6xf32> to vector<14x6xf32>
    %206 = vector.extract_strided_slice %194 {offsets = [0, 256], sizes = [6, 128], strides = [1, 1]} : vector<6x384xf32> to vector<6x128xf32>
    %cst_146 = arith.constant dense<0.000000e+00> : vector<14x128xf32>
    %207 = tpu.matmul %205, %206, %cst_146 {dimension_numbers = #tpu.dot_dimension_numbers<[1], [0], [0], [1], [0, 0, 1, 1], [], []>} : vector<14x6xf32>, vector<6x128xf32>, vector<14x128xf32> -> vector<14x128xf32>
    %208 = arith.addf %203, %207 : vector<14x128xf32>
    %c0_147 = arith.constant 0 : index
    %c0_148 = arith.constant 0 : index
    %209 = vector.load %arg27[%c0_147, %c0_148] : memref<3x128xf32, #tpu.memory_space<vmem>>, vector<1x128xf32>
    %210 = vector.broadcast %209 : vector<1x128xf32> to vector<14x128xf32>
    %211 = arith.addf %208, %210 : vector<14x128xf32>
    %cst_149 = arith.constant dense<0.000000e+00> : vector<128xf32>
    %212 = vector.multi_reduction <add>, %211, %cst_149 [0] : vector<14x128xf32> to vector<128xf32>
    %213 = vector.shape_cast %212 : vector<128xf32> to vector<1x128xf32>
    %214 = arith.mulf %211, %211 : vector<14x128xf32>
    %cst_150 = arith.constant dense<0.000000e+00> : vector<128xf32>
    %215 = vector.multi_reduction <add>, %214, %cst_150 [0] : vector<14x128xf32> to vector<128xf32>
    %216 = vector.shape_cast %215 : vector<128xf32> to vector<1x128xf32>
    %217 = tpu.concatenate %213, %216 in 0 : vector<1x128xf32>, vector<1x128xf32> -> vector<2x128xf32>
    %c0_151 = arith.constant 0 : index
    %c0_152 = arith.constant 0 : index
    %218 = vector.load %arg28[%c0_151, %c0_152] : memref<128x128xf32, #tpu.memory_space<vmem>>, vector<128x128xf32>
    %cst_153 = arith.constant dense<0.000000e+00> : vector<2x128xf32>
    %219 = tpu.matmul %217, %218, %cst_153 {dimension_numbers = #tpu.dot_dimension_numbers<[1], [0], [0], [1], [0, 0, 1, 1], [], []>} : vector<2x128xf32>, vector<128x128xf32>, vector<2x128xf32> -> vector<2x128xf32>
    %220 = vector.extract_strided_slice %219 {offsets = [0, 0], sizes = [1, 128], strides = [1, 1]} : vector<2x128xf32> to vector<1x128xf32>
    %221 = vector.extract_strided_slice %219 {offsets = [1, 0], sizes = [1, 128], strides = [1, 1]} : vector<2x128xf32> to vector<1x128xf32>
    %222 = arith.mulf %220, %220 : vector<1x128xf32>
    %223 = arith.subf %221, %222 : vector<1x128xf32>
    %cst_154 = arith.constant 0.000000e+00 : f32
    %224 = vector.broadcast %cst_154 : f32 to vector<1x128xf32>
    %225 = arith.maximumf %223, %224 : vector<1x128xf32>
    %226 = vector.broadcast %220 : vector<1x128xf32> to vector<14x128xf32>
    %227 = arith.subf %211, %226 : vector<14x128xf32>
    %cst_155 = arith.constant 9.99999974E-6 : f32
    %228 = vector.broadcast %cst_155 : f32 to vector<1x128xf32>
    %229 = arith.addf %225, %228 : vector<1x128xf32>
    %230 = math.rsqrt %229 : vector<1x128xf32>
    %231 = vector.broadcast %230 : vector<1x128xf32> to vector<14x128xf32>
    %232 = arith.mulf %227, %231 : vector<14x128xf32>
    %c1_156 = arith.constant 1 : index
    %c0_157 = arith.constant 0 : index
    %233 = vector.load %arg27[%c1_156, %c0_157] : memref<3x128xf32, #tpu.memory_space<vmem>>, vector<1x128xf32>
    %234 = vector.broadcast %233 : vector<1x128xf32> to vector<14x128xf32>
    %235 = arith.mulf %232, %234 : vector<14x128xf32>
    %c2_158 = arith.constant 2 : index
    %c0_159 = arith.constant 0 : index
    %236 = vector.load %arg27[%c2_158, %c0_159] : memref<3x128xf32, #tpu.memory_space<vmem>>, vector<1x128xf32>
    %237 = vector.broadcast %236 : vector<1x128xf32> to vector<14x128xf32>
    %238 = arith.addf %235, %237 : vector<14x128xf32>
    %cst_160 = arith.constant 0.000000e+00 : f32
    %239 = vector.broadcast %cst_160 : f32 to vector<14x128xf32>
    %240 = arith.maximumf %238, %239 : vector<14x128xf32>
    %241 = arith.truncf %240 : vector<14x128xf32> to vector<14x128xbf16>
    %c0_161 = arith.constant 0 : index
    %c0_162 = arith.constant 0 : index
    %242 = vector.load %arg30[%c0_161, %c0_162] : memref<128x384xbf16, #tpu.memory_space<vmem>>, vector<128x384xbf16>
    %cst_163 = arith.constant dense<0.000000e+00> : vector<14x384xf32>
    %243 = tpu.matmul %241, %242, %cst_163 {dimension_numbers = #tpu.dot_dimension_numbers<[1], [0], [0], [1], [0, 0, 1, 1], [], []>} : vector<14x128xbf16>, vector<128x384xbf16>, vector<14x384xf32> -> vector<14x384xf32>
    %c0_164 = arith.constant 0 : index
    %c0_165 = arith.constant 0 : index
    %c0_166 = arith.constant 0 : index
    %244 = vector.load %arg29[%c0_164, %c0_165, %c0_166] : memref<3x28x14xf32, #tpu.memory_space<vmem>>, vector<1x28x14xf32>
    %245 = vector.shape_cast %244 : vector<1x28x14xf32> to vector<28x14xf32>
    %246 = vector.extract_strided_slice %243 {offsets = [0, 0], sizes = [14, 128], strides = [1, 1]} : vector<14x384xf32> to vector<14x128xf32>
    %cst_167 = arith.constant dense<0.000000e+00> : vector<28x128xf32>
    %247 = tpu.matmul %245, %246, %cst_167 {dimension_numbers = #tpu.dot_dimension_numbers<[1], [0], [0], [1], [0, 0, 1, 1], [], []>} : vector<28x14xf32>, vector<14x128xf32>, vector<28x128xf32> -> vector<28x128xf32>
    %c1_168 = arith.constant 1 : index
    %c0_169 = arith.constant 0 : index
    %c0_170 = arith.constant 0 : index
    %248 = vector.load %arg29[%c1_168, %c0_169, %c0_170] : memref<3x28x14xf32, #tpu.memory_space<vmem>>, vector<1x28x14xf32>
    %249 = vector.shape_cast %248 : vector<1x28x14xf32> to vector<28x14xf32>
    %250 = vector.extract_strided_slice %243 {offsets = [0, 128], sizes = [14, 128], strides = [1, 1]} : vector<14x384xf32> to vector<14x128xf32>
    %cst_171 = arith.constant dense<0.000000e+00> : vector<28x128xf32>
    %251 = tpu.matmul %249, %250, %cst_171 {dimension_numbers = #tpu.dot_dimension_numbers<[1], [0], [0], [1], [0, 0, 1, 1], [], []>} : vector<28x14xf32>, vector<14x128xf32>, vector<28x128xf32> -> vector<28x128xf32>
    %252 = arith.addf %247, %251 : vector<28x128xf32>
    %c2_172 = arith.constant 2 : index
    %c0_173 = arith.constant 0 : index
    %c0_174 = arith.constant 0 : index
    %253 = vector.load %arg29[%c2_172, %c0_173, %c0_174] : memref<3x28x14xf32, #tpu.memory_space<vmem>>, vector<1x28x14xf32>
    %254 = vector.shape_cast %253 : vector<1x28x14xf32> to vector<28x14xf32>
    %255 = vector.extract_strided_slice %243 {offsets = [0, 256], sizes = [14, 128], strides = [1, 1]} : vector<14x384xf32> to vector<14x128xf32>
    %cst_175 = arith.constant dense<0.000000e+00> : vector<28x128xf32>
    %256 = tpu.matmul %254, %255, %cst_175 {dimension_numbers = #tpu.dot_dimension_numbers<[1], [0], [0], [1], [0, 0, 1, 1], [], []>} : vector<28x14xf32>, vector<14x128xf32>, vector<28x128xf32> -> vector<28x128xf32>
    %257 = arith.addf %252, %256 : vector<28x128xf32>
    %c0_176 = arith.constant 0 : index
    %c0_177 = arith.constant 0 : index
    %258 = vector.load %arg31[%c0_176, %c0_177] : memref<3x128xf32, #tpu.memory_space<vmem>>, vector<1x128xf32>
    %259 = vector.broadcast %258 : vector<1x128xf32> to vector<28x128xf32>
    %260 = arith.addf %257, %259 : vector<28x128xf32>
    %cst_178 = arith.constant dense<0.000000e+00> : vector<128xf32>
    %261 = vector.multi_reduction <add>, %260, %cst_178 [0] : vector<28x128xf32> to vector<128xf32>
    %262 = vector.shape_cast %261 : vector<128xf32> to vector<1x128xf32>
    %263 = arith.mulf %260, %260 : vector<28x128xf32>
    %cst_179 = arith.constant dense<0.000000e+00> : vector<128xf32>
    %264 = vector.multi_reduction <add>, %263, %cst_179 [0] : vector<28x128xf32> to vector<128xf32>
    %265 = vector.shape_cast %264 : vector<128xf32> to vector<1x128xf32>
    %266 = tpu.concatenate %262, %265 in 0 : vector<1x128xf32>, vector<1x128xf32> -> vector<2x128xf32>
    %c0_180 = arith.constant 0 : index
    %c0_181 = arith.constant 0 : index
    %267 = vector.load %arg32[%c0_180, %c0_181] : memref<128x128xf32, #tpu.memory_space<vmem>>, vector<128x128xf32>
    %cst_182 = arith.constant dense<0.000000e+00> : vector<2x128xf32>
    %268 = tpu.matmul %266, %267, %cst_182 {dimension_numbers = #tpu.dot_dimension_numbers<[1], [0], [0], [1], [0, 0, 1, 1], [], []>} : vector<2x128xf32>, vector<128x128xf32>, vector<2x128xf32> -> vector<2x128xf32>
    %269 = vector.extract_strided_slice %268 {offsets = [0, 0], sizes = [1, 128], strides = [1, 1]} : vector<2x128xf32> to vector<1x128xf32>
    %270 = vector.extract_strided_slice %268 {offsets = [1, 0], sizes = [1, 128], strides = [1, 1]} : vector<2x128xf32> to vector<1x128xf32>
    %271 = arith.mulf %269, %269 : vector<1x128xf32>
    %272 = arith.subf %270, %271 : vector<1x128xf32>
    %cst_183 = arith.constant 0.000000e+00 : f32
    %273 = vector.broadcast %cst_183 : f32 to vector<1x128xf32>
    %274 = arith.maximumf %272, %273 : vector<1x128xf32>
    %275 = vector.broadcast %269 : vector<1x128xf32> to vector<28x128xf32>
    %276 = arith.subf %260, %275 : vector<28x128xf32>
    %cst_184 = arith.constant 9.99999974E-6 : f32
    %277 = vector.broadcast %cst_184 : f32 to vector<1x128xf32>
    %278 = arith.addf %274, %277 : vector<1x128xf32>
    %279 = math.rsqrt %278 : vector<1x128xf32>
    %280 = vector.broadcast %279 : vector<1x128xf32> to vector<28x128xf32>
    %281 = arith.mulf %276, %280 : vector<28x128xf32>
    %c1_185 = arith.constant 1 : index
    %c0_186 = arith.constant 0 : index
    %282 = vector.load %arg31[%c1_185, %c0_186] : memref<3x128xf32, #tpu.memory_space<vmem>>, vector<1x128xf32>
    %283 = vector.broadcast %282 : vector<1x128xf32> to vector<28x128xf32>
    %284 = arith.mulf %281, %283 : vector<28x128xf32>
    %c2_187 = arith.constant 2 : index
    %c0_188 = arith.constant 0 : index
    %285 = vector.load %arg31[%c2_187, %c0_188] : memref<3x128xf32, #tpu.memory_space<vmem>>, vector<1x128xf32>
    %286 = vector.broadcast %285 : vector<1x128xf32> to vector<28x128xf32>
    %287 = arith.addf %284, %286 : vector<28x128xf32>
    %cst_189 = arith.constant 0.000000e+00 : f32
    %288 = vector.broadcast %cst_189 : f32 to vector<28x128xf32>
    %289 = arith.maximumf %287, %288 : vector<28x128xf32>
    %290 = arith.truncf %289 : vector<28x128xf32> to vector<28x128xbf16>
    %c0_190 = arith.constant 0 : index
    %c0_191 = arith.constant 0 : index
    %291 = vector.load %arg34[%c0_190, %c0_191] : memref<128x384xbf16, #tpu.memory_space<vmem>>, vector<128x384xbf16>
    %cst_192 = arith.constant dense<0.000000e+00> : vector<28x384xf32>
    %292 = tpu.matmul %290, %291, %cst_192 {dimension_numbers = #tpu.dot_dimension_numbers<[1], [0], [0], [1], [0, 0, 1, 1], [], []>} : vector<28x128xbf16>, vector<128x384xbf16>, vector<28x384xf32> -> vector<28x384xf32>
    %c0_193 = arith.constant 0 : index
    %c0_194 = arith.constant 0 : index
    %c0_195 = arith.constant 0 : index
    %293 = vector.load %arg33[%c0_193, %c0_194, %c0_195] : memref<3x56x28xf32, #tpu.memory_space<vmem>>, vector<1x56x28xf32>
    %294 = vector.shape_cast %293 : vector<1x56x28xf32> to vector<56x28xf32>
    %295 = vector.extract_strided_slice %292 {offsets = [0, 0], sizes = [28, 128], strides = [1, 1]} : vector<28x384xf32> to vector<28x128xf32>
    %cst_196 = arith.constant dense<0.000000e+00> : vector<56x128xf32>
    %296 = tpu.matmul %294, %295, %cst_196 {dimension_numbers = #tpu.dot_dimension_numbers<[1], [0], [0], [1], [0, 0, 1, 1], [], []>} : vector<56x28xf32>, vector<28x128xf32>, vector<56x128xf32> -> vector<56x128xf32>
    %c1_197 = arith.constant 1 : index
    %c0_198 = arith.constant 0 : index
    %c0_199 = arith.constant 0 : index
    %297 = vector.load %arg33[%c1_197, %c0_198, %c0_199] : memref<3x56x28xf32, #tpu.memory_space<vmem>>, vector<1x56x28xf32>
    %298 = vector.shape_cast %297 : vector<1x56x28xf32> to vector<56x28xf32>
    %299 = vector.extract_strided_slice %292 {offsets = [0, 128], sizes = [28, 128], strides = [1, 1]} : vector<28x384xf32> to vector<28x128xf32>
    %cst_200 = arith.constant dense<0.000000e+00> : vector<56x128xf32>
    %300 = tpu.matmul %298, %299, %cst_200 {dimension_numbers = #tpu.dot_dimension_numbers<[1], [0], [0], [1], [0, 0, 1, 1], [], []>} : vector<56x28xf32>, vector<28x128xf32>, vector<56x128xf32> -> vector<56x128xf32>
    %301 = arith.addf %296, %300 : vector<56x128xf32>
    %c2_201 = arith.constant 2 : index
    %c0_202 = arith.constant 0 : index
    %c0_203 = arith.constant 0 : index
    %302 = vector.load %arg33[%c2_201, %c0_202, %c0_203] : memref<3x56x28xf32, #tpu.memory_space<vmem>>, vector<1x56x28xf32>
    %303 = vector.shape_cast %302 : vector<1x56x28xf32> to vector<56x28xf32>
    %304 = vector.extract_strided_slice %292 {offsets = [0, 256], sizes = [28, 128], strides = [1, 1]} : vector<28x384xf32> to vector<28x128xf32>
    %cst_204 = arith.constant dense<0.000000e+00> : vector<56x128xf32>
    %305 = tpu.matmul %303, %304, %cst_204 {dimension_numbers = #tpu.dot_dimension_numbers<[1], [0], [0], [1], [0, 0, 1, 1], [], []>} : vector<56x28xf32>, vector<28x128xf32>, vector<56x128xf32> -> vector<56x128xf32>
    %306 = arith.addf %301, %305 : vector<56x128xf32>
    %c0_205 = arith.constant 0 : index
    %c0_206 = arith.constant 0 : index
    %307 = vector.load %arg35[%c0_205, %c0_206] : memref<1x128xf32, #tpu.memory_space<vmem>>, vector<1x128xf32>
    %308 = vector.broadcast %307 : vector<1x128xf32> to vector<56x128xf32>
    %309 = arith.addf %306, %308 : vector<56x128xf32>
    %310 = vector.extract_strided_slice %309 {offsets = [0, 0], sizes = [56, 28], strides = [1, 1]} : vector<56x128xf32> to vector<56x28xf32>
    %311 = arith.negf %310 : vector<56x28xf32>
    %312 = math.exp %311 : vector<56x28xf32>
    %cst_207 = arith.constant 1.000000e+00 : f32
    %313 = vector.broadcast %cst_207 : f32 to vector<56x28xf32>
    %314 = arith.addf %313, %312 : vector<56x28xf32>
    %315 = arith.divf %313, %314 : vector<56x28xf32>
    %c0_208 = arith.constant 0 : index
    %c0_209 = arith.constant 0 : index
    %316 = vector.load %arg37[%c0_208, %c0_209] : memref<56x28xf32, #tpu.memory_space<vmem>>, vector<56x28xf32>
    tpu.vector_store %arg37[%c0_208, %c0_209], %315 {strides = array<i32>} : memref<56x28xf32, #tpu.memory_space<vmem>>, vector<56x28xf32>,
    return
  }
}

</mosaic_0001>

<llo_original>
// kernel: forward.1
$region0: #{forward.1}
  #allocation0 [shape = 'u32[]', space=smem, size = 0x4, offset = 0x4, fixed_abs, tag = 'smem constant byte address 0x4 - core index']
  #allocation1 [shape = 'u32[144,128]{1,0:T(1,128)}', space=vmem, size = 0x12000, scoped, tag = 'internal scratch']
  %s0 = inlined_call_operand.smem [shape: u32[38], index: -1, kind: input, shape index: {}]
  %s1 = sld [smem:[%s0]]
  %s2 = scalar_lea.smem %s0, 1
  %s3 = sld [smem:[%s2]]
  %s4 = scalar_lea.smem %s0, 2
  %s5 = sld [smem:[%s4]]
  %s6 = scalar_lea.smem %s0, 3
  %s7 = sld [smem:[%s6]]
  %s8 = scalar_lea.smem %s0, 4
  %s9 = sld [smem:[%s8]]
  %s10 = scalar_lea.smem %s0, 5
  %s11 = sld [smem:[%s10]]
  %s12 = scalar_lea.smem %s0, 6
  %s13 = sld [smem:[%s12]]
  %s14 = scalar_lea.smem %s0, 7
  %s15 = sld [smem:[%s14]]
  %s16 = scalar_lea.smem %s0, 8
  %s17 = sld [smem:[%s16]]
  %s18 = scalar_lea.smem %s0, 9
  %s19 = sld [smem:[%s18]]
  %s20 = scalar_lea.smem %s0, 10
  %s21 = sld [smem:[%s20]]
  %s22 = scalar_lea.smem %s0, 11
  %s23 = sld [smem:[%s22]]
  %s24 = scalar_lea.smem %s0, 12
  %s25 = sld [smem:[%s24]]
  %s26 = scalar_lea.smem %s0, 13
  %s27 = sld [smem:[%s26]]
  %s28 = scalar_lea.smem %s0, 14
  %s29 = sld [smem:[%s28]]
  %s30 = scalar_lea.smem %s0, 15
  %s31 = sld [smem:[%s30]]
  %s32 = scalar_lea.smem %s0, 16
  %s33 = sld [smem:[%s32]]
  %s34 = scalar_lea.smem %s0, 17
  %s35 = sld [smem:[%s34]]
  %s36 = scalar_lea.smem %s0, 18
  %s37 = sld [smem:[%s36]]
  %s38 = scalar_lea.smem %s0, 19
  %s39 = sld [smem:[%s38]]
  %s40 = scalar_lea.smem %s0, 20
  %s41 = sld [smem:[%s40]]
  %s42 = scalar_lea.smem %s0, 21
  %s43 = sld [smem:[%s42]]
  %s44 = scalar_lea.smem %s0, 22
  %s45 = sld [smem:[%s44]]
  %s46 = scalar_lea.smem %s0, 23
  %s47 = sld [smem:[%s46]]
  %s48 = scalar_lea.smem %s0, 24
  %s49 = sld [smem:[%s48]]
  %s50 = scalar_lea.smem %s0, 25
  %s51 = sld [smem:[%s50]]
  %s52 = scalar_lea.smem %s0, 26
  %s53 = sld [smem:[%s52]]
  %s54 = scalar_lea.smem %s0, 27
  %s55 = sld [smem:[%s54]]
  %s56 = scalar_lea.smem %s0, 28
  %s57 = sld [smem:[%s56]]
  %s58 = scalar_lea.smem %s0, 29
  %s59 = sld [smem:[%s58]]
  %s60 = scalar_lea.smem %s0, 30
  %s61 = sld [smem:[%s60]]
  %s62 = scalar_lea.smem %s0, 31
  %s63 = sld [smem:[%s62]]
  %s64 = scalar_lea.smem %s0, 32
  %s65 = sld [smem:[%s64]]
  %s66 = scalar_lea.smem %s0, 33
  %s67 = sld [smem:[%s66]]
  %s68 = scalar_lea.smem %s0, 34
  %s69 = sld [smem:[%s68]]
  %s70 = scalar_lea.smem %s0, 35
  %s71 = sld [smem:[%s70]]
  %s72 = scalar_lea.smem %s0, 36
  %s73 = sld [smem:[%s72]]
  %s74 = scalar_lea.smem %s0, 37
  %s75 = sld [smem:[%s74]]
  %76 = xla_tuple %s73, %s75
  %s77 = sld [smem:[#allocation0]]
  $region258: #{forward.1} parent=0
    _
  %s79 = ssub.s32 1, %s77
  %s80 = scalar_select 0, %s79, %s77
  $region1: #{forward.1} parent=0
    #allocation2 [shape = 'u8[28672]{0}', space=vmem, size = 0x7000, scoped, tag = 'input window, operand 0, single buffered']
    #allocation3 [shape = 's32[1]{0}', space=sflag, size = 0x4, scoped, tag = 'scoped memory for forward.1']
    #allocation4 [shape = 's32[1]{0}', space=sflag, size = 0x4, scoped, tag = 'scoped memory for forward.1']
    #allocation5 [shape = 'u8[28672]{0}', space=vmem, size = 0x7000, scoped, tag = 'input window, operand 1, single buffered']
    #allocation6 [shape = 's32[1]{0}', space=sflag, size = 0x4, scoped, tag = 'scoped memory for forward.1']
    #allocation7 [shape = 'u8[49152]{0}', space=vmem, size = 0xc000, scoped, tag = 'input window, operand 2, single buffered']
    #allocation8 [shape = 'u8[24576]{0}', space=vmem, size = 0x6000, scoped, tag = 'input window, operand 3, single buffered']
    #allocation9 [shape = 's32[1]{0}', space=sflag, size = 0x4, scoped, tag = 'scoped memory for forward.1']
    #allocation10 [shape = 'u8[24576]{0}', space=vmem, size = 0x6000, scoped, tag = 'input window, operand 5, single buffered']
    #allocation11 [shape = 'u8[2048]{0}', space=vmem, size = 0x800, scoped, tag = 'input window, operand 7, single buffered']
    #allocation12 [shape = 's32[1]{0}', space=sflag, size = 0x4, scoped, tag = 'scoped memory for forward.1']
    #allocation13 [shape = 'u8[65536]{0}', space=vmem, size = 0x10000, scoped, tag = 'input window, operand 8, single buffered']
    #allocation14 [shape = 'u8[12288]{0}', space=vmem, size = 0x3000, scoped, tag = 'input window, operand 9, single buffered']
    #allocation15 [shape = 's32[1]{0}', space=sflag, size = 0x4, scoped, tag = 'scoped memory for forward.1']
    #allocation16 [shape = 'u8[2048]{0}', space=vmem, size = 0x800, scoped, tag = 'input window, operand 11, single buffered']
    #allocation17 [shape = 'u8[65536]{0}', space=vmem, size = 0x10000, scoped, tag = 'input window, operand 12, single buffered']
    #allocation18 [shape = 's32[1]{0}', space=sflag, size = 0x4, scoped, tag = 'scoped memory for forward.1']
    #allocation19 [shape = 'u8[3072]{0}', space=vmem, size = 0xc00, scoped, tag = 'input window, operand 13, single buffered']
    #allocation20 [shape = 'u8[512]{0}', space=vmem, size = 0x400, scoped, tag = 'input window, operand 17, single buffered']
    #allocation21 [shape = 's32[1]{0}', space=sflag, size = 0x4, scoped, tag = 'scoped memory for forward.1']
    #allocation22 [shape = 'u8[512]{0}', space=vmem, size = 0x400, scoped, tag = 'input window, operand 19, single buffered']
    #allocation23 [shape = 'u8[16384]{0}', space=vmem, size = 0x4000, scoped, tag = 'input window, operand 20, single buffered']
    #allocation24 [shape = 's32[1]{0}', space=sflag, size = 0x4, scoped, tag = 'scoped memory for forward.1']
    #allocation25 [shape = 'u8[512]{0}', space=vmem, size = 0x400, scoped, tag = 'input window, operand 21, single buffered']
    #allocation26 [shape = 'u8[49152]{0}', space=vmem, size = 0xc000, scoped, tag = 'input window, operand 23, single buffered']
    #allocation27 [shape = 's32[1]{0}', space=sflag, size = 0x4, scoped, tag = 'scoped memory for forward.1']
    #allocation28 [shape = 'u8[1536]{0}', space=vmem, size = 0x800, scoped, tag = 'input window, operand 24, single buffered']
    #allocation29 [shape = 'u8[98304]{0}', space=vmem, size = 0x18000, scoped, tag = 'input window, operand 26, single buffered']
    #allocation30 [shape = 's32[1]{0}', space=sflag, size = 0x4, scoped, tag = 'scoped memory for forward.1']
    #allocation31 [shape = 'u8[2048]{0}', space=vmem, size = 0x800, scoped, tag = 'input window, operand 27, single buffered']
    #allocation32 [shape = 'u8[65536]{0}', space=vmem, size = 0x10000, scoped, tag = 'input window, operand 28, single buffered']
    #allocation33 [shape = 's32[1]{0}', space=sflag, size = 0x4, scoped, tag = 'scoped memory for forward.1']
    #allocation34 [shape = 'u8[98304]{0}', space=vmem, size = 0x18000, scoped, tag = 'input window, operand 30, single buffered']
    #allocation35 [shape = 'u8[2048]{0}', space=vmem, size = 0x800, scoped, tag = 'input window, operand 31, single buffered']
    #allocation36 [shape = 's32[1]{0}', space=sflag, size = 0x4, scoped, tag = 'scoped memory for forward.1']
    #allocation37 [shape = 'u8[65536]{0}', space=vmem, size = 0x10000, scoped, tag = 'input window, operand 32, single buffered']
    #allocation38 [shape = 'u8[512]{0}', space=vmem, size = 0x400, scoped, tag = 'input window, operand 35, single buffered']
    #allocation39 [shape = 's32[1]{0}', space=sflag, size = 0x4, scoped, tag = 'scoped memory for forward.1']
    #allocation40 [shape = 'u8[1024]{0}', space=vmem, size = 0x400, scoped, tag = 'output window, operand 0, single buffered']
    #allocation41 [shape = 'u8[28672]{0}', space=vmem, size = 0x7000, scoped, tag = 'output window, operand 1, single buffered']
    #allocation42 [shape = 's32[1]{0}', space=sflag, size = 0x4, scoped, tag = 'scoped memory for forward.1']
    %81 = vsyncpa [#allocation3], 0
    %82 = vsyncpa [#allocation6], 0
    %83 = vsyncpa [#allocation9], 0
    %84 = vsyncpa [#allocation12], 0
    %85 = vsyncpa [#allocation15], 0
    %86 = vsyncpa [#allocation18], 0
    %87 = vsyncpa [#allocation21], 0
    %88 = vsyncpa [#allocation24], 0
    %89 = vsyncpa [#allocation27], 0
    %90 = vsyncpa [#allocation30], 0
    %91 = vsyncpa [#allocation33], 0
    %92 = vsyncpa [#allocation36], 0
    %93 = vsyncpa [#allocation39], 0
    %94 = vsyncpa [#allocation4], 0
    %95 = vsyncpa [#allocation42], 0
    // Predicated region
    $region2: #{forward.1} parent=1 // pred_check
      _
    $region3: #{forward.1} parent=1 // pred_check_branch
      %97 = sbr.rel (0) target = $region5
    $region4: #{forward.1} parent=1 // pred_region
      %s99 = ssub.s32 896, 896
      %100 = vsyncadd [#allocation3], %s99
      %s101 = sshll.u32 [#allocation2], 4
      %s102 = int_to_ptr.vmem [resolvable:$true] %s101
      %107 = dma.hbm_to_vmem [thread:$0]  %s1, 896, %s102, [#allocation3], 128, 128, 8
    $region5: #{forward.1} parent=1 // pred_fallthru
      _
    // Predicated region
    $region6: #{forward.1} parent=1 // pred_check
      _
    $region7: #{forward.1} parent=1 // pred_check_branch
      %109 = sbr.rel (0) target = $region9
    $region8: #{forward.1} parent=1 // pred_region
      %s111 = ssub.s32 896, 896
      %112 = vsyncadd [#allocation6], %s111
      %s113 = sshll.u32 [#allocation5], 4
      %s114 = int_to_ptr.vmem [resolvable:$true] %s113
      %119 = dma.hbm_to_vmem [thread:$0]  %s3, 896, %s114, [#allocation6], 128, 128, 8
    $region9: #{forward.1} parent=1 // pred_fallthru
      _
    // Predicated region
    $region10: #{forward.1} parent=1 // pred_check
      _
    $region11: #{forward.1} parent=1 // pred_check_branch
      %121 = sbr.rel (0) target = $region13
    $region12: #{forward.1} parent=1 // pred_region
      %s123 = ssub.s32 1536, 1536
      %124 = vsyncadd [#allocation6], %s123
      %s125 = sshll.u32 [#allocation7], 4
      %s126 = int_to_ptr.vmem [resolvable:$true] %s125
      %131 = dma.hbm_to_vmem [thread:$0]  %s5, 1536, %s126, [#allocation6], 128, 128, 8
    $region13: #{forward.1} parent=1 // pred_fallthru
      _
    // Predicated region
    $region14: #{forward.1} parent=1 // pred_check
      _
    $region15: #{forward.1} parent=1 // pred_check_branch
      %133 = sbr.rel (0) target = $region17
    $region16: #{forward.1} parent=1 // pred_region
      %s135 = ssub.s32 768, 768
      %136 = vsyncadd [#allocation9], %s135
      %s137 = sshll.u32 [#allocation8], 4
      %s138 = int_to_ptr.vmem [resolvable:$true] %s137
      %143 = dma.hbm_to_vmem [thread:$0]  %s7, 768, %s138, [#allocation9], 192, 192, 12
    $region17: #{forward.1} parent=1 // pred_fallthru
      _
    // Predicated region
    $region18: #{forward.1} parent=1 // pred_check
      _
    $region19: #{forward.1} parent=1 // pred_check_branch
      %145 = sbr.rel (0) target = $region21
    $region20: #{forward.1} parent=1 // pred_region
      _
    $region21: #{forward.1} parent=1 // pred_fallthru
      _
    // Predicated region
    $region22: #{forward.1} parent=1 // pred_check
      _
    $region23: #{forward.1} parent=1 // pred_check_branch
      %147 = sbr.rel (0) target = $region25
    $region24: #{forward.1} parent=1 // pred_region
      %s149 = ssub.s32 768, 768
      %150 = vsyncadd [#allocation9], %s149
      %s151 = sshll.u32 [#allocation10], 4
      %s152 = int_to_ptr.vmem [resolvable:$true] %s151
      %157 = dma.hbm_to_vmem [thread:$0]  %s11, 768, %s152, [#allocation9], 128, 128, 8
    $region25: #{forward.1} parent=1 // pred_fallthru
      _
    // Predicated region
    $region26: #{forward.1} parent=1 // pred_check
      _
    $region27: #{forward.1} parent=1 // pred_check_branch
      %159 = sbr.rel (0) target = $region29
    $region28: #{forward.1} parent=1 // pred_region
      _
    $region29: #{forward.1} parent=1 // pred_fallthru
      _
    // Predicated region
    $region30: #{forward.1} parent=1 // pred_check
      _
    $region31: #{forward.1} parent=1 // pred_check_branch
      %161 = sbr.rel (0) target = $region33
    $region32: #{forward.1} parent=1 // pred_region
      %s163 = ssub.s32 64, 64
      %164 = vsyncadd [#allocation12], %s163
      %s166 = sshll.u32 [#allocation11], 4
      %s167 = int_to_ptr.vmem [resolvable:$true] %s166
      %169 = dma.hbm_to_vmem [thread:$0]  %s15, 64, %s167, [#allocation12]
    $region33: #{forward.1} parent=1 // pred_fallthru
      _
    // Predicated region
    $region34: #{forward.1} parent=1 // pred_check
      _
    $region35: #{forward.1} parent=1 // pred_check_branch
      %171 = sbr.rel (0) target = $region37
    $region36: #{forward.1} parent=1 // pred_region
      %s173 = ssub.s32 2048, 2048
      %174 = vsyncadd [#allocation12], %s173
      %s175 = sshll.u32 [#allocation13], 4
      %s176 = int_to_ptr.vmem [resolvable:$true] %s175
      %181 = dma.hbm_to_vmem [thread:$0]  %s17, 2048, %s176, [#allocation12], 128, 128, 8
    $region37: #{forward.1} parent=1 // pred_fallthru
      _
    // Predicated region
    $region38: #{forward.1} parent=1 // pred_check
      _
    $region39: #{forward.1} parent=1 // pred_check_branch
      %183 = sbr.rel (0) target = $region41
    $region40: #{forward.1} parent=1 // pred_region
      %s185 = ssub.s32 384, 384
      %186 = vsyncadd [#allocation15], %s185
      %s187 = sshll.u32 [#allocation14], 4
      %s188 = int_to_ptr.vmem [resolvable:$true] %s187
      %193 = dma.hbm_to_vmem [thread:$0]  %s19, 384, %s188, [#allocation15], 128, 128, 8
    $region41: #{forward.1} parent=1 // pred_fallthru
      _
    // Predicated region
    $region42: #{forward.1} parent=1 // pred_check
      _
    $region43: #{forward.1} parent=1 // pred_check_branch
      %195 = sbr.rel (0) target = $region45
    $region44: #{forward.1} parent=1 // pred_region
      _
    $region45: #{forward.1} parent=1 // pred_fallthru
      _
    // Predicated region
    $region46: #{forward.1} parent=1 // pred_check
      _
    $region47: #{forward.1} parent=1 // pred_check_branch
      %197 = sbr.rel (0) target = $region49
    $region48: #{forward.1} parent=1 // pred_region
      %s199 = ssub.s32 64, 64
      %200 = vsyncadd [#allocation15], %s199
      %s202 = sshll.u32 [#allocation16], 4
      %s203 = int_to_ptr.vmem [resolvable:$true] %s202
      %205 = dma.hbm_to_vmem [thread:$0]  %s23, 64, %s203, [#allocation15]
    $region49: #{forward.1} parent=1 // pred_fallthru
      _
    // Predicated region
    $region50: #{forward.1} parent=1 // pred_check
      _
    $region51: #{forward.1} parent=1 // pred_check_branch
      %207 = sbr.rel (0) target = $region53
    $region52: #{forward.1} parent=1 // pred_region
      %s209 = ssub.s32 2048, 2048
      %210 = vsyncadd [#allocation18], %s209
      %s211 = sshll.u32 [#allocation17], 4
      %s212 = int_to_ptr.vmem [resolvable:$true] %s211
      %217 = dma.hbm_to_vmem [thread:$0]  %s25, 2048, %s212, [#allocation18], 128, 128, 8
    $region53: #{forward.1} parent=1 // pred_fallthru
      _
    // Predicated region
    $region54: #{forward.1} parent=1 // pred_check
      _
    $region55: #{forward.1} parent=1 // pred_check_branch
      %219 = sbr.rel (0) target = $region57
    $region56: #{forward.1} parent=1 // pred_region
      %s221 = ssub.s32 96, 96
      %222 = vsyncadd [#allocation18], %s221
      %s223 = sshll.u32 [#allocation19], 4
      %s224 = int_to_ptr.vmem [resolvable:$true] %s223
      %229 = dma.hbm_to_vmem [thread:$0]  %s27, 96, %s224, [#allocation18], 32, 32, 2
    $region57: #{forward.1} parent=1 // pred_fallthru
      _
    // Predicated region
    $region58: #{forward.1} parent=1 // pred_check
      _
    $region59: #{forward.1} parent=1 // pred_check_branch
      %231 = sbr.rel (0) target = $region61
    $region60: #{forward.1} parent=1 // pred_region
      _
    $region61: #{forward.1} parent=1 // pred_fallthru
      _
    // Predicated region
    $region62: #{forward.1} parent=1 // pred_check
      _
    $region63: #{forward.1} parent=1 // pred_check_branch
      %233 = sbr.rel (0) target = $region65
    $region64: #{forward.1} parent=1 // pred_region
      _
    $region65: #{forward.1} parent=1 // pred_fallthru
      _
    // Predicated region
    $region66: #{forward.1} parent=1 // pred_check
      _
    $region67: #{forward.1} parent=1 // pred_check_branch
      %235 = sbr.rel (0) target = $region69
    $region68: #{forward.1} parent=1 // pred_region
      _
    $region69: #{forward.1} parent=1 // pred_fallthru
      _
    // Predicated region
    $region70: #{forward.1} parent=1 // pred_check
      _
    $region71: #{forward.1} parent=1 // pred_check_branch
      %237 = sbr.rel (0) target = $region73
    $region72: #{forward.1} parent=1 // pred_region
      %s239 = ssub.s32 16, 16
      %240 = vsyncadd [#allocation21], %s239
      %s242 = sshll.u32 [#allocation20], 4
      %s243 = int_to_ptr.vmem [resolvable:$true] %s242
      %245 = dma.hbm_to_vmem [thread:$0]  %s35, 16, %s243, [#allocation21]
    $region73: #{forward.1} parent=1 // pred_fallthru
      _
    // Predicated region
    $region74: #{forward.1} parent=1 // pred_check
      _
    $region75: #{forward.1} parent=1 // pred_check_branch
      %247 = sbr.rel (0) target = $region77
    $region76: #{forward.1} parent=1 // pred_region
      _
    $region77: #{forward.1} parent=1 // pred_fallthru
      _
    // Predicated region
    $region78: #{forward.1} parent=1 // pred_check
      _
    $region79: #{forward.1} parent=1 // pred_check_branch
      %249 = sbr.rel (0) target = $region81
    $region80: #{forward.1} parent=1 // pred_region
      %s251 = ssub.s32 16, 16
      %252 = vsyncadd [#allocation21], %s251
      %s254 = sshll.u32 [#allocation22], 4
      %s255 = int_to_ptr.vmem [resolvable:$true] %s254
      %257 = dma.hbm_to_vmem [thread:$0]  %s39, 16, %s255, [#allocation21]
    $region81: #{forward.1} parent=1 // pred_fallthru
      _
    // Predicated region
    $region82: #{forward.1} parent=1 // pred_check
      _
    $region83: #{forward.1} parent=1 // pred_check_branch
      %259 = sbr.rel (0) target = $region85
    $region84: #{forward.1} parent=1 // pred_region
      %s261 = ssub.s32 512, 512
      %262 = vsyncadd [#allocation24], %s261
      %s263 = sshll.u32 [#allocation23], 4
      %s264 = int_to_ptr.vmem [resolvable:$true] %s263
      %269 = dma.hbm_to_vmem [thread:$0]  %s41, 512, %s264, [#allocation24], 64, 64, 4
    $region85: #{forward.1} parent=1 // pred_fallthru
      _
    // Predicated region
    $region86: #{forward.1} parent=1 // pred_check
      _
    $region87: #{forward.1} parent=1 // pred_check_branch
      %271 = sbr.rel (0) target = $region89
    $region88: #{forward.1} parent=1 // pred_region
      %s273 = ssub.s32 16, 16
      %274 = vsyncadd [#allocation24], %s273
      %s276 = sshll.u32 [#allocation25], 4
      %s277 = int_to_ptr.vmem [resolvable:$true] %s276
      %279 = dma.hbm_to_vmem [thread:$0]  %s43, 16, %s277, [#allocation24]
    $region89: #{forward.1} parent=1 // pred_fallthru
      _
    // Predicated region
    $region90: #{forward.1} parent=1 // pred_check
      _
    $region91: #{forward.1} parent=1 // pred_check_branch
      %281 = sbr.rel (0) target = $region93
    $region92: #{forward.1} parent=1 // pred_region
      _
    $region93: #{forward.1} parent=1 // pred_fallthru
      _
    // Predicated region
    $region94: #{forward.1} parent=1 // pred_check
      _
    $region95: #{forward.1} parent=1 // pred_check_branch
      %283 = sbr.rel (0) target = $region97
    $region96: #{forward.1} parent=1 // pred_region
      %s285 = ssub.s32 1536, 1536
      %286 = vsyncadd [#allocation27], %s285
      %s287 = sshll.u32 [#allocation26], 4
      %s288 = int_to_ptr.vmem [resolvable:$true] %s287
      %293 = dma.hbm_to_vmem [thread:$0]  %s47, 1536, %s288, [#allocation27], 192, 192, 12
    $region97: #{forward.1} parent=1 // pred_fallthru
      _
    // Predicated region
    $region98: #{forward.1} parent=1 // pred_check
      _
    $region99: #{forward.1} parent=1 // pred_check_branch
      %295 = sbr.rel (0) target = $region101
    $region100: #{forward.1} parent=1 // pred_region
      %s297 = ssub.s32 48, 48
      %298 = vsyncadd [#allocation27], %s297
      %s300 = sshll.u32 [#allocation28], 4
      %s301 = int_to_ptr.vmem [resolvable:$true] %s300
      %303 = dma.hbm_to_vmem [thread:$0]  %s49, 48, %s301, [#allocation27]
    $region101: #{forward.1} parent=1 // pred_fallthru
      _
    // Predicated region
    $region102: #{forward.1} parent=1 // pred_check
      _
    $region103: #{forward.1} parent=1 // pred_check_branch
      %305 = sbr.rel (0) target = $region105
    $region104: #{forward.1} parent=1 // pred_region
      _
    $region105: #{forward.1} parent=1 // pred_fallthru
      _
    // Predicated region
    $region106: #{forward.1} parent=1 // pred_check
      _
    $region107: #{forward.1} parent=1 // pred_check_branch
      %307 = sbr.rel (0) target = $region109
    $region108: #{forward.1} parent=1 // pred_region
      %s309 = ssub.s32 3072, 3072
      %310 = vsyncadd [#allocation30], %s309
      %s311 = sshll.u32 [#allocation29], 4
      %s312 = int_to_ptr.vmem [resolvable:$true] %s311
      %317 = dma.hbm_to_vmem [thread:$0]  %s53, 3072, %s312, [#allocation30], 192, 192, 12
    $region109: #{forward.1} parent=1 // pred_fallthru
      _
    // Predicated region
    $region110: #{forward.1} parent=1 // pred_check
      _
    $region111: #{forward.1} parent=1 // pred_check_branch
      %319 = sbr.rel (0) target = $region113
    $region112: #{forward.1} parent=1 // pred_region
      %s321 = ssub.s32 64, 64
      %322 = vsyncadd [#allocation30], %s321
      %s324 = sshll.u32 [#allocation31], 4
      %s325 = int_to_ptr.vmem [resolvable:$true] %s324
      %327 = dma.hbm_to_vmem [thread:$0]  %s55, 64, %s325, [#allocation30]
    $region113: #{forward.1} parent=1 // pred_fallthru
      _
    // Predicated region
    $region114: #{forward.1} parent=1 // pred_check
      _
    $region115: #{forward.1} parent=1 // pred_check_branch
      %329 = sbr.rel (0) target = $region117
    $region116: #{forward.1} parent=1 // pred_region
      %s331 = ssub.s32 2048, 2048
      %332 = vsyncadd [#allocation33], %s331
      %s333 = sshll.u32 [#allocation32], 4
      %s334 = int_to_ptr.vmem [resolvable:$true] %s333
      %339 = dma.hbm_to_vmem [thread:$0]  %s57, 2048, %s334, [#allocation33], 128, 128, 8
    $region117: #{forward.1} parent=1 // pred_fallthru
      _
    // Predicated region
    $region118: #{forward.1} parent=1 // pred_check
      _
    $region119: #{forward.1} parent=1 // pred_check_branch
      %341 = sbr.rel (0) target = $region121
    $region120: #{forward.1} parent=1 // pred_region
      _
    $region121: #{forward.1} parent=1 // pred_fallthru
      _
    // Predicated region
    $region122: #{forward.1} parent=1 // pred_check
      _
    $region123: #{forward.1} parent=1 // pred_check_branch
      %343 = sbr.rel (0) target = $region125
    $region124: #{forward.1} parent=1 // pred_region
      %s345 = ssub.s32 3072, 3072
      %346 = vsyncadd [#allocation33], %s345
      %s347 = sshll.u32 [#allocation34], 4
      %s348 = int_to_ptr.vmem [resolvable:$true] %s347
      %353 = dma.hbm_to_vmem [thread:$0]  %s61, 3072, %s348, [#allocation33], 192, 192, 12
    $region125: #{forward.1} parent=1 // pred_fallthru
      _
    // Predicated region
    $region126: #{forward.1} parent=1 // pred_check
      _
    $region127: #{forward.1} parent=1 // pred_check_branch
      %355 = sbr.rel (0) target = $region129
    $region128: #{forward.1} parent=1 // pred_region
      %s357 = ssub.s32 64, 64
      %358 = vsyncadd [#allocation36], %s357
      %s360 = sshll.u32 [#allocation35], 4
      %s361 = int_to_ptr.vmem [resolvable:$true] %s360
      %363 = dma.hbm_to_vmem [thread:$0]  %s63, 64, %s361, [#allocation36]
    $region129: #{forward.1} parent=1 // pred_fallthru
      _
    // Predicated region
    $region130: #{forward.1} parent=1 // pred_check
      _
    $region131: #{forward.1} parent=1 // pred_check_branch
      %365 = sbr.rel (0) target = $region133
    $region132: #{forward.1} parent=1 // pred_region
      %s367 = ssub.s32 2048, 2048
      %368 = vsyncadd [#allocation36], %s367
      %s369 = sshll.u32 [#allocation37], 4
      %s370 = int_to_ptr.vmem [resolvable:$true] %s369
      %375 = dma.hbm_to_vmem [thread:$0]  %s65, 2048, %s370, [#allocation36], 128, 128, 8
    $region133: #{forward.1} parent=1 // pred_fallthru
      _
    // Predicated region
    $region134: #{forward.1} parent=1 // pred_check
      _
    $region135: #{forward.1} parent=1 // pred_check_branch
      %377 = sbr.rel (0) target = $region137
    $region136: #{forward.1} parent=1 // pred_region
      _
    $region137: #{forward.1} parent=1 // pred_fallthru
      _
    // Predicated region
    $region138: #{forward.1} parent=1 // pred_check
      _
    $region139: #{forward.1} parent=1 // pred_check_branch
      %379 = sbr.rel (0) target = $region141
    $region140: #{forward.1} parent=1 // pred_region
      _
    $region141: #{forward.1} parent=1 // pred_fallthru
      _
    // Predicated region
    $region142: #{forward.1} parent=1 // pred_check
      _
    $region143: #{forward.1} parent=1 // pred_check_branch
      %381 = sbr.rel (0) target = $region145
    $region144: #{forward.1} parent=1 // pred_region
      %s383 = ssub.s32 16, 16
      %384 = vsyncadd [#allocation39], %s383
      %s386 = sshll.u32 [#allocation38], 4
      %s387 = int_to_ptr.vmem [resolvable:$true] %s386
      %389 = dma.hbm_to_vmem [thread:$0]  %s71, 16, %s387, [#allocation39]
    $region145: #{forward.1} parent=1 // pred_fallthru
      _
    // Predicated region
    $region146: #{forward.1} parent=1 // pred_check
      _
    $region147: #{forward.1} parent=1 // pred_check_branch
      %391 = sbr.rel (0) target = $region149
    $region148: #{forward.1} parent=1 // pred_region
      %392 = dma.done [#allocation3], 896
    $region149: #{forward.1} parent=1 // pred_fallthru
      _
    // Predicated region
    $region150: #{forward.1} parent=1 // pred_check
      _
    $region151: #{forward.1} parent=1 // pred_check_branch
      %394 = sbr.rel (0) target = $region153
    $region152: #{forward.1} parent=1 // pred_region
      %395 = dma.done [#allocation6], 896
    $region153: #{forward.1} parent=1 // pred_fallthru
      _
    // Predicated region
    $region154: #{forward.1} parent=1 // pred_check
      _
    $region155: #{forward.1} parent=1 // pred_check_branch
      %397 = sbr.rel (0) target = $region157
    $region156: #{forward.1} parent=1 // pred_region
      %398 = dma.done [#allocation6], 1536
    $region157: #{forward.1} parent=1 // pred_fallthru
      _
    // Predicated region
    $region158: #{forward.1} parent=1 // pred_check
      _
    $region159: #{forward.1} parent=1 // pred_check_branch
      %400 = sbr.rel (0) target = $region161
    $region160: #{forward.1} parent=1 // pred_region
      %401 = dma.done [#allocation9], 768
    $region161: #{forward.1} parent=1 // pred_fallthru
      _
    // Predicated region
    $region162: #{forward.1} parent=1 // pred_check
      _
    $region163: #{forward.1} parent=1 // pred_check_branch
      %403 = sbr.rel (0) target = $region165
    $region164: #{forward.1} parent=1 // pred_region
      %404 = dma.done [#allocation9], 768
    $region165: #{forward.1} parent=1 // pred_fallthru
      _
    // Predicated region
    $region166: #{forward.1} parent=1 // pred_check
      _
    $region167: #{forward.1} parent=1 // pred_check_branch
      %406 = sbr.rel (0) target = $region169
    $region168: #{forward.1} parent=1 // pred_region
      %407 = dma.done [#allocation12], 64
    $region169: #{forward.1} parent=1 // pred_fallthru
      _
    // Predicated region
    $region170: #{forward.1} parent=1 // pred_check
      _
    $region171: #{forward.1} parent=1 // pred_check_branch
      %409 = sbr.rel (0) target = $region173
    $region172: #{forward.1} parent=1 // pred_region
      %410 = dma.done [#allocation12], 2048
    $region173: #{forward.1} parent=1 // pred_fallthru
      _
    // Predicated region
    $region174: #{forward.1} parent=1 // pred_check
      _
    $region175: #{forward.1} parent=1 // pred_check_branch
      %412 = sbr.rel (0) target = $region177
    $region176: #{forward.1} parent=1 // pred_region
      %413 = dma.done [#allocation15], 384
    $region177: #{forward.1} parent=1 // pred_fallthru
      _
    // Predicated region
    $region178: #{forward.1} parent=1 // pred_check
      _
    $region179: #{forward.1} parent=1 // pred_check_branch
      %415 = sbr.rel (0) target = $region181
    $region180: #{forward.1} parent=1 // pred_region
      %416 = dma.done [#allocation15], 64
    $region181: #{forward.1} parent=1 // pred_fallthru
      _
    // Predicated region
    $region182: #{forward.1} parent=1 // pred_check
      _
    $region183: #{forward.1} parent=1 // pred_check_branch
      %418 = sbr.rel (0) target = $region185
    $region184: #{forward.1} parent=1 // pred_region
      %419 = dma.done [#allocation18], 2048
    $region185: #{forward.1} parent=1 // pred_fallthru
      _
    // Predicated region
    $region186: #{forward.1} parent=1 // pred_check
      _
    $region187: #{forward.1} parent=1 // pred_check_branch
      %421 = sbr.rel (0) target = $region189
    $region188: #{forward.1} parent=1 // pred_region
      %422 = dma.done [#allocation18], 96
    $region189: #{forward.1} parent=1 // pred_fallthru
      _
    // Predicated region
    $region190: #{forward.1} parent=1 // pred_check
      _
    $region191: #{forward.1} parent=1 // pred_check_branch
      %424 = sbr.rel (0) target = $region193
    $region192: #{forward.1} parent=1 // pred_region
      %425 = dma.done [#allocation21], 16
    $region193: #{forward.1} parent=1 // pred_fallthru
      _
    // Predicated region
    $region194: #{forward.1} parent=1 // pred_check
      _
    $region195: #{forward.1} parent=1 // pred_check_branch
      %427 = sbr.rel (0) target = $region197
    $region196: #{forward.1} parent=1 // pred_region
      %428 = dma.done [#allocation21], 16
    $region197: #{forward.1} parent=1 // pred_fallthru
      _
    // Predicated region
    $region198: #{forward.1} parent=1 // pred_check
      _
    $region199: #{forward.1} parent=1 // pred_check_branch
      %430 = sbr.rel (0) target = $region201
    $region200: #{forward.1} parent=1 // pred_region
      %431 = dma.done [#allocation24], 512
    $region201: #{forward.1} parent=1 // pred_fallthru
      _
    // Predicated region
    $region202: #{forward.1} parent=1 // pred_check
      _
    $region203: #{forward.1} parent=1 // pred_check_branch
      %433 = sbr.rel (0) target = $region205
    $region204: #{forward.1} parent=1 // pred_region
      %434 = dma.done [#allocation24], 16
    $region205: #{forward.1} parent=1 // pred_fallthru
      _
    // Predicated region
    $region206: #{forward.1} parent=1 // pred_check
      _
    $region207: #{forward.1} parent=1 // pred_check_branch
      %436 = sbr.rel (0) target = $region209
    $region208: #{forward.1} parent=1 // pred_region
      %437 = dma.done [#allocation27], 1536
    $region209: #{forward.1} parent=1 // pred_fallthru
      _
    // Predicated region
    $region210: #{forward.1} parent=1 // pred_check
      _
    $region211: #{forward.1} parent=1 // pred_check_branch
      %439 = sbr.rel (0) target = $region213
    $region212: #{forward.1} parent=1 // pred_region
      %440 = dma.done [#allocation27], 48
    $region213: #{forward.1} parent=1 // pred_fallthru
      _
    // Predicated region
    $region214: #{forward.1} parent=1 // pred_check
      _
    $region215: #{forward.1} parent=1 // pred_check_branch
      %442 = sbr.rel (0) target = $region217
    $region216: #{forward.1} parent=1 // pred_region
      %443 = dma.done [#allocation30], 3072
    $region217: #{forward.1} parent=1 // pred_fallthru
      _
    // Predicated region
    $region218: #{forward.1} parent=1 // pred_check
      _
    $region219: #{forward.1} parent=1 // pred_check_branch
      %445 = sbr.rel (0) target = $region221
    $region220: #{forward.1} parent=1 // pred_region
      %446 = dma.done [#allocation30], 64
    $region221: #{forward.1} parent=1 // pred_fallthru
      _
    // Predicated region
    $region222: #{forward.1} parent=1 // pred_check
      _
    $region223: #{forward.1} parent=1 // pred_check_branch
      %448 = sbr.rel (0) target = $region225
    $region224: #{forward.1} parent=1 // pred_region
      %449 = dma.done [#allocation33], 2048
    $region225: #{forward.1} parent=1 // pred_fallthru
      _
    // Predicated region
    $region226: #{forward.1} parent=1 // pred_check
      _
    $region227: #{forward.1} parent=1 // pred_check_branch
      %451 = sbr.rel (0) target = $region229
    $region228: #{forward.1} parent=1 // pred_region
      %452 = dma.done [#allocation33], 3072
    $region229: #{forward.1} parent=1 // pred_fallthru
      _
    // Predicated region
    $region230: #{forward.1} parent=1 // pred_check
      _
    $region231: #{forward.1} parent=1 // pred_check_branch
      %454 = sbr.rel (0) target = $region233
    $region232: #{forward.1} parent=1 // pred_region
      %455 = dma.done [#allocation36], 64
    $region233: #{forward.1} parent=1 // pred_fallthru
      _
    // Predicated region
    $region234: #{forward.1} parent=1 // pred_check
      _
    $region235: #{forward.1} parent=1 // pred_check_branch
      %457 = sbr.rel (0) target = $region237
    $region236: #{forward.1} parent=1 // pred_region
      %458 = dma.done [#allocation36], 2048
    $region237: #{forward.1} parent=1 // pred_fallthru
      _
    // Predicated region
    $region238: #{forward.1} parent=1 // pred_check
      _
    $region239: #{forward.1} parent=1 // pred_check_branch
      %460 = sbr.rel (0) target = $region241
    $region240: #{forward.1} parent=1 // pred_region
      %461 = dma.done [#allocation39], 16
    $region241: #{forward.1} parent=1 // pred_fallthru
      _
    %v463 = vld [vmem:[#allocation2] sm:$0xff]
    %v464 = vld [vmem:[#allocation2 + $0x8] sm:$0xff]
    %v465 = vld [vmem:[#allocation2 + $0x10] sm:$0xff]
    %v466 = vld [vmem:[#allocation2 + $0x18] sm:$0xff]
    %v467 = vld [vmem:[#allocation2 + $0x20] sm:$0xff]
    %v468 = vld [vmem:[#allocation2 + $0x28] sm:$0xff]
    %v469 = vld [vmem:[#allocation2 + $0x30] sm:$0xff]
    %v470 = vld [vmem:[#allocation5] sm:$0xff]
    %v471 = vld [vmem:[#allocation5 + $0x8] sm:$0xff]
    %v472 = vld [vmem:[#allocation5 + $0x10] sm:$0xff]
    %v473 = vld [vmem:[#allocation5 + $0x18] sm:$0xff]
    %v474 = vld [vmem:[#allocation5 + $0x20] sm:$0xff]
    %v475 = vld [vmem:[#allocation5 + $0x28] sm:$0xff]
    %v476 = vld [vmem:[#allocation5 + $0x30] sm:$0xff]
    %v477 = vmul.f32 %v470, 0.2
    %v478 = vmul.f32 %v471, 0.2
    %v479 = vmul.f32 %v472, 0.2
    %v480 = vmul.f32 %v473, 0.2
    %v481 = vmul.f32 %v474, 0.2
    %v482 = vmul.f32 %v475, 0.2
    %v483 = vmul.f32 %v476, 0.2
    %v484 = vadd.f32 %v463, %v477
    %v485 = vadd.f32 %v464, %v478
    %v486 = vadd.f32 %v465, %v479
    %v487 = vadd.f32 %v466, %v480
    %v488 = vadd.f32 %v467, %v481
    %v489 = vadd.f32 %v468, %v482
    %v490 = vadd.f32 %v469, %v483
    %v491 = vpack.c.bf16 %v485, %v484
    %v492 = vpack.c.bf16 %v487, %v486
    %v493 = vpack.c.bf16 %v489, %v488
    %v494 = vpack.c.bf16 %v490, %v490
    %v495 = vld [vmem:[#allocation8] sm:$0xff]
    %v496 = vld [vmem:[#allocation8 + $0x8] sm:$0xf]
    %v497 = vld [vmem:[#allocation8 + $0xc] sm:$0xff]
    %v498 = vld [vmem:[#allocation8 + $0x14] sm:$0xf]
    %v499 = vld [vmem:[#allocation8 + $0x18] sm:$0xff]
    %v500 = vld [vmem:[#allocation8 + $0x20] sm:$0xf]
    %v501 = vld [vmem:[#allocation8 + $0x24] sm:$0x33]
    %v502 = vld [vmem:[#allocation8 + $0x2c] sm:$0x3]
    %v511 = vunpack.c.l.b16 %v495
    %v512 = vunpack.c.h.b16 %v495
    %v513 = vunpack.c.l.b16 %v496
    %v514 = vunpack.c.l.b16 %v497
    %v515 = vunpack.c.h.b16 %v497
    %v516 = vunpack.c.l.b16 %v498
    %v517 = vunpack.c.l.b16 %v499
    %v518 = vunpack.c.h.b16 %v499
    %v519 = vunpack.c.l.b16 %v500
    %v520 = vunpack.c.l.b16 %v501
    %v521 = vunpack.c.h.b16 %v501
    %v522 = vunpack.c.l.b16 %v502
    %v523 = vpack.c.b16 %v514, %v511
    %v524 = vpack.c.b16 %v515, %v512
    %v525 = vpack.c.b16 %v516, %v513
    %v526 = vpack.c.b16 %v520, %v517
    %v527 = vpack.c.b16 %v521, %v518
    %v528 = vpack.c.b16 %v522, %v519
    %vm532 = vcmask 228352
    %v534 = vsel %vm532, %v491, 0
    %v537 = vsel %vm532, %v492, 0
    %v540 = vsel %vm532, %v493, 0
    %v543 = vsel %vm532, %v494, 0
    %vm545 = vcmask 1045504
    %v547 = vsel %vm545, %v526, 0
    %v550 = vsel %vm545, %v527, 0
    %v553 = vsel %vm545, %v528, 0
    %555 = vmatprep.subr.bf16.mxu0 %v524
    %556 = vmatpush1.bf16.msra.mxu0 %v523
    %557 = vmatprep.subr.bf16.mxu0 %v550
    %558 = vmatpush1.bf16.msra.mxu0 %v547
    %559 = vmatprep.subr.bf16.mxu0 0
    %560 = vmatpush1.bf16.msra.mxu0 0
    %561 = vmatprep.subr.bf16.mxu0 0
    %562 = vmatpush1.bf16.msra.mxu0 0
    %563 = vmatprep.subr.bf16.mxu0 0
    %564 = vmatpush1.bf16.msra.mxu0 0
    %565 = vmatprep.subr.bf16.mxu0 0
    %566 = vmatpush1.bf16.msra.mxu0 0
    %567 = vmatprep.subr.bf16.mxu0 0
    %568 = vmatpush1.bf16.msra.mxu0 0
    %569 = vmatprep.subr.bf16.mxu0 0
    %570 = vmatpush1.bf16.msra.mxu0 0
    %571 = vmatprep.subr.bf16.mxu0 0
    %572 = vmatpush1.bf16.msra.mxu0 0
    %573 = vmatprep.subr.bf16.mxu0 0
    %574 = vmatpush1.bf16.msra.mxu0 0
    %575 = vmatprep.subr.bf16.mxu0 0
    %576 = vmatpush1.bf16.msra.mxu0 0
    %577 = vmatprep.subr.bf16.mxu0 0
    %578 = vmatpush1.bf16.msra.mxu0 0
    %579 = vmatprep.subr.bf16.mxu0 0
    %580 = vmatpush1.bf16.msra.mxu0 0
    %581 = vmatprep.subr.bf16.mxu0 0
    %582 = vmatpush1.bf16.msra.mxu0 0
    %583 = vmatprep.subr.bf16.mxu0 0
    %584 = vmatpush1.bf16.msra.mxu0 0
    %585 = vmatprep.subr.bf16.mxu0 0
    %586 = vmatpush1.bf16.msra.mxu0 0
    %587 = vmatprep.mubr.bf16.mxu0 0
    %588 = vmatmul.mubr.bf16.gmra.mrb[0].mxu0 %v534
    %v589 = vpop.f32.mrb[0].mxu0
    %v590 = vadd.f32 0.0, %v589
    %v591 = vpop.f32.mrb[0].mxu0
    %v592 = vadd.f32 0.0, %v591
    %v593 = vpop.f32.mrb[0].mxu0
    %v594 = vadd.f32 0.0, %v593
    %v595 = vpop.f32.mrb[0].mxu0
    %v596 = vadd.f32 0.0, %v595
    %597 = vmatprep.mubr.bf16.mxu0 0
    %598 = vmatmul.mubr.bf16.gmra.mrb[0].mxu0 %v537
    %v599 = vpop.f32.mrb[0].mxu0
    %v600 = vadd.f32 0.0, %v599
    %v601 = vpop.f32.mrb[0].mxu0
    %v602 = vadd.f32 0.0, %v601
    %v603 = vpop.f32.mrb[0].mxu0
    %v604 = vadd.f32 0.0, %v603
    %v605 = vpop.f32.mrb[0].mxu0
    %v606 = vadd.f32 0.0, %v605
    %607 = vmatprep.mubr.bf16.mxu0 0
    %608 = vmatmul.mubr.bf16.gmra.mrb[0].mxu0 %v540
    %v609 = vpop.f32.mrb[0].mxu0
    %v610 = vadd.f32 0.0, %v609
    %v611 = vpop.f32.mrb[0].mxu0
    %v612 = vadd.f32 0.0, %v611
    %v613 = vpop.f32.mrb[0].mxu0
    %v614 = vadd.f32 0.0, %v613
    %v615 = vpop.f32.mrb[0].mxu0
    %v616 = vadd.f32 0.0, %v615
    %617 = vmatprep.mubr.bf16.mxu0 0
    %618 = vmatmul.mubr.bf16.gmra.mrb[0].mxu0 %v543
    %v619 = vpop.f32.mrb[0].mxu0
    %v620 = vadd.f32 0.0, %v619
    %v621 = vpop.f32.mrb[0].mxu0
    %v622 = vadd.f32 0.0, %v621
    %v623 = vpop.f32.mrb[0].mxu0
    %v624 = vpop.f32.mrb[0].mxu0
    %625 = vdwg.mxu0
    %626 = vmatprep.subr.bf16.mxu0 0
    %627 = vmatpush1.bf16.msra.mxu0 %v525
    %628 = vmatprep.subr.bf16.mxu0 0
    %629 = vmatpush1.bf16.msra.mxu0 %v553
    %630 = vmatprep.subr.bf16.mxu0 0
    %631 = vmatpush1.bf16.msra.mxu0 0
    %632 = vmatprep.subr.bf16.mxu0 0
    %633 = vmatpush1.bf16.msra.mxu0 0
    %634 = vmatprep.subr.bf16.mxu0 0
    %635 = vmatpush1.bf16.msra.mxu0 0
    %636 = vmatprep.subr.bf16.mxu0 0
    %637 = vmatpush1.bf16.msra.mxu0 0
    %638 = vmatprep.subr.bf16.mxu0 0
    %639 = vmatpush1.bf16.msra.mxu0 0
    %640 = vmatprep.subr.bf16.mxu0 0
    %641 = vmatpush1.bf16.msra.mxu0 0
    %642 = vmatprep.subr.bf16.mxu0 0
    %643 = vmatpush1.bf16.msra.mxu0 0
    %644 = vmatprep.subr.bf16.mxu0 0
    %645 = vmatpush1.bf16.msra.mxu0 0
    %646 = vmatprep.subr.bf16.mxu0 0
    %647 = vmatpush1.bf16.msra.mxu0 0
    %648 = vmatprep.subr.bf16.mxu0 0
    %649 = vmatpush1.bf16.msra.mxu0 0
    %650 = vmatprep.subr.bf16.mxu0 0
    %651 = vmatpush1.bf16.msra.mxu0 0
    %652 = vmatprep.subr.bf16.mxu0 0
    %653 = vmatpush1.bf16.msra.mxu0 0
    %654 = vmatprep.subr.bf16.mxu0 0
    %655 = vmatpush1.bf16.msra.mxu0 0
    %656 = vmatprep.subr.bf16.mxu0 0
    %657 = vmatpush1.bf16.msra.mxu0 0
    %658 = vmatprep.mubr.bf16.mxu0 0
    %659 = vmatmul.mubr.bf16.gmra.mrb[0].mxu0 %v534
    %v660 = vpop.f32.mrb[0].mxu0
    %v661 = vadd.f32 0.0, %v660
    %v662 = vpop.f32.mrb[0].mxu0
    %v663 = vpop.f32.mrb[0].mxu0
    %v664 = vadd.f32 0.0, %v663
    %v665 = vpop.f32.mrb[0].mxu0
    %666 = vmatprep.mubr.bf16.mxu0 0
    %667 = vmatmul.mubr.bf16.gmra.mrb[0].mxu0 %v537
    %v668 = vpop.f32.mrb[0].mxu0
    %v669 = vadd.f32 0.0, %v668
    %v670 = vpop.f32.mrb[0].mxu0
    %v671 = vpop.f32.mrb[0].mxu0
    %v672 = vadd.f32 0.0, %v671
    %v673 = vpop.f32.mrb[0].mxu0
    %674 = vmatprep.mubr.bf16.mxu0 0
    %675 = vmatmul.mubr.bf16.gmra.mrb[0].mxu0 %v540
    %v676 = vpop.f32.mrb[0].mxu0
    %v677 = vadd.f32 0.0, %v676
    %v678 = vpop.f32.mrb[0].mxu0
    %v679 = vpop.f32.mrb[0].mxu0
    %v680 = vadd.f32 0.0, %v679
    %v681 = vpop.f32.mrb[0].mxu0
    %682 = vmatprep.mubr.bf16.mxu0 0
    %683 = vmatmul.mubr.bf16.gmra.mrb[0].mxu0 %v543
    %v684 = vpop.f32.mrb[0].mxu0
    %v685 = vadd.f32 0.0, %v684
    %v686 = vpop.f32.mrb[0].mxu0
    %v687 = vpop.f32.mrb[0].mxu0
    %v688 = vpop.f32.mrb[0].mxu0
    %689 = vdwg.mxu0
    %v690 = vld [vmem:[#allocation7] sm:$0xff]
    %v691 = vld [vmem:[#allocation7 + $0x8] sm:$0xff]
    %v692 = vld [vmem:[#allocation7 + $0x10] sm:$0xff]
    %v693 = vld [vmem:[#allocation7 + $0x18] sm:$0xf]
    %s694 = scalar_lea.vmem [#allocation7], 32
    %v695 = vld [vmem:[%s694] sm:$0xff]
    %v696 = vld [vmem:[%s694 + $0x8] sm:$0xff]
    %v697 = vld [vmem:[%s694 + $0x10] sm:$0xff]
    %v698 = vld [vmem:[%s694 + $0x18] sm:$0xf]
    %vm699 = vcmask 457728
    %v701 = vsel %vm699, %v695, 0
    %v704 = vsel %vm699, %v696, 0
    %v707 = vsel %vm699, %v697, 0
    %v710 = vsel %vm699, %v698, 0
    %712 = vmatprep.subr.mxu0 0.0
    %713 = vmatpush1.msra.mxu0 %v592
    %714 = vmatprep.subr.mxu0 0.0
    %715 = vmatpush1.msra.mxu0 %v596
    %716 = vmatprep.subr.mxu0 0.0
    %717 = vmatpush1.msra.mxu0 %v602
    %718 = vmatprep.subr.mxu0 0.0
    %719 = vmatpush1.msra.mxu0 %v606
    %720 = vmatprep.subr.mxu0 0.0
    %721 = vmatpush1.msra.mxu0 %v612
    %722 = vmatprep.subr.mxu0 0.0
    %723 = vmatpush1.msra.mxu0 %v616
    %724 = vmatprep.subr.mxu0 0.0
    %725 = vmatpush1.msra.mxu0 %v622
    %726 = vmatprep.subr.mxu0 0.0
    %727 = vmatpush1.msra.mxu0 0.0
    %728 = vmatprep.subr.mxu0 0.0
    %729 = vmatpush1.msra.mxu0 0.0
    %730 = vmatprep.subr.mxu0 0.0
    %731 = vmatpush1.msra.mxu0 0.0
    %732 = vmatprep.subr.mxu0 0.0
    %733 = vmatpush1.msra.mxu0 0.0
    %734 = vmatprep.subr.mxu0 0.0
    %735 = vmatpush1.msra.mxu0 0.0
    %736 = vmatprep.subr.mxu0 0.0
    %737 = vmatpush1.msra.mxu0 0.0
    %738 = vmatprep.subr.mxu0 0.0
    %739 = vmatpush1.msra.mxu0 0.0
    %740 = vmatprep.subr.mxu0 0.0
    %741 = vmatpush1.msra.mxu0 0.0
    %742 = vmatprep.subr.mxu0 0.0
    %743 = vmatpush1.msra.mxu0 0.0
    %744 = vmatprep.subr.mxu0 0.0
    %745 = vmatpush1.msra.mxu0 0.0
    %746 = vmatprep.subr.mxu0 0.0
    %747 = vmatpush1.msra.mxu0 0.0
    %748 = vmatprep.subr.mxu0 0.0
    %749 = vmatpush1.msra.mxu0 0.0
    %750 = vmatprep.subr.mxu0 0.0
    %751 = vmatpush1.msra.mxu0 0.0
    %752 = vmatprep.subr.mxu0 0.0
    %753 = vmatpush1.msra.mxu0 0.0
    %754 = vmatprep.subr.mxu0 0.0
    %755 = vmatpush1.msra.mxu0 0.0
    %756 = vmatprep.subr.mxu0 0.0
    %757 = vmatpush1.msra.mxu0 0.0
    %758 = vmatprep.subr.mxu0 0.0
    %759 = vmatpush1.msra.mxu0 0.0
    %760 = vmatprep.subr.mxu0 0.0
    %761 = vmatpush1.msra.mxu0 0.0
    %762 = vmatprep.subr.mxu0 0.0
    %763 = vmatpush1.msra.mxu0 0.0
    %764 = vmatprep.subr.mxu0 0.0
    %765 = vmatpush1.msra.mxu0 0.0
    %766 = vmatprep.subr.mxu0 0.0
    %767 = vmatpush1.msra.mxu0 0.0
    %768 = vmatprep.subr.mxu0 0.0
    %769 = vmatpush1.msra.mxu0 0.0
    %770 = vmatprep.subr.mxu0 0.0
    %771 = vmatpush1.msra.mxu0 0.0
    %772 = vmatprep.subr.mxu0 0.0
    %773 = vmatpush1.msra.mxu0 0.0
    %774 = vmatprep.subr.mxu0 0.0
    %775 = vmatpush1.msra.mxu0 0.0
    %776 = vmatprep.mubr.f32.mxu0 0.0
    %777 = vmatmul.mubr.f32.gmra.mrb[0].mxu0 %v701
    %v778 = vpop.f32.mrb[0].mxu0
    %v779 = vadd.f32 0.0, %v778
    %v780 = vpop.f32.mrb[0].mxu0
    %781 = vmatprep.mubr.f32.mxu0 0.0
    %782 = vmatmul.mubr.f32.gmra.mrb[0].mxu0 %v704
    %v783 = vpop.f32.mrb[0].mxu0
    %v784 = vadd.f32 0.0, %v783
    %v785 = vpop.f32.mrb[0].mxu0
    %786 = vmatprep.mubr.f32.mxu0 0.0
    %787 = vmatmul.mubr.f32.gmra.mrb[0].mxu0 %v707
    %v788 = vpop.f32.mrb[0].mxu0
    %v789 = vadd.f32 0.0, %v788
    %v790 = vpop.f32.mrb[0].mxu0
    %791 = vmatprep.mubr.f32.mxu0 0.0
    %792 = vmatmul.mubr.f32.gmra.mrb[0].mxu0 %v710
    %v793 = vpop.f32.mrb[0].mxu0
    %v794 = vadd.f32 0.0, %v793
    %v795 = vpop.f32.mrb[0].mxu0
    %796 = vdwg.mxu0
    %v798 = vsel %vm699, %v690, 0
    %v801 = vsel %vm699, %v691, 0
    %v804 = vsel %vm699, %v692, 0
    %v807 = vsel %vm699, %v693, 0
    %809 = vmatprep.subr.mxu0 0.0
    %810 = vmatpush1.msra.mxu0 %v590
    %811 = vmatprep.subr.mxu0 0.0
    %812 = vmatpush1.msra.mxu0 %v594
    %813 = vmatprep.subr.mxu0 0.0
    %814 = vmatpush1.msra.mxu0 %v600
    %815 = vmatprep.subr.mxu0 0.0
    %816 = vmatpush1.msra.mxu0 %v604
    %817 = vmatprep.subr.mxu0 0.0
    %818 = vmatpush1.msra.mxu0 %v610
    %819 = vmatprep.subr.mxu0 0.0
    %820 = vmatpush1.msra.mxu0 %v614
    %821 = vmatprep.subr.mxu0 0.0
    %822 = vmatpush1.msra.mxu0 %v620
    %823 = vmatprep.subr.mxu0 0.0
    %824 = vmatpush1.msra.mxu0 0.0
    %825 = vmatprep.subr.mxu0 0.0
    %826 = vmatpush1.msra.mxu0 0.0
    %827 = vmatprep.subr.mxu0 0.0
    %828 = vmatpush1.msra.mxu0 0.0
    %829 = vmatprep.subr.mxu0 0.0
    %830 = vmatpush1.msra.mxu0 0.0
    %831 = vmatprep.subr.mxu0 0.0
    %832 = vmatpush1.msra.mxu0 0.0
    %833 = vmatprep.subr.mxu0 0.0
    %834 = vmatpush1.msra.mxu0 0.0
    %835 = vmatprep.subr.mxu0 0.0
    %836 = vmatpush1.msra.mxu0 0.0
    %837 = vmatprep.subr.mxu0 0.0
    %838 = vmatpush1.msra.mxu0 0.0
    %839 = vmatprep.subr.mxu0 0.0
    %840 = vmatpush1.msra.mxu0 0.0
    %841 = vmatprep.subr.mxu0 0.0
    %842 = vmatpush1.msra.mxu0 0.0
    %843 = vmatprep.subr.mxu0 0.0
    %844 = vmatpush1.msra.mxu0 0.0
    %845 = vmatprep.subr.mxu0 0.0
    %846 = vmatpush1.msra.mxu0 0.0
    %847 = vmatprep.subr.mxu0 0.0
    %848 = vmatpush1.msra.mxu0 0.0
    %849 = vmatprep.subr.mxu0 0.0
    %850 = vmatpush1.msra.mxu0 0.0
    %851 = vmatprep.subr.mxu0 0.0
    %852 = vmatpush1.msra.mxu0 0.0
    %853 = vmatprep.subr.mxu0 0.0
    %854 = vmatpush1.msra.mxu0 0.0
    %855 = vmatprep.subr.mxu0 0.0
    %856 = vmatpush1.msra.mxu0 0.0
    %857 = vmatprep.subr.mxu0 0.0
    %858 = vmatpush1.msra.mxu0 0.0
    %859 = vmatprep.subr.mxu0 0.0
    %860 = vmatpush1.msra.mxu0 0.0
    %861 = vmatprep.subr.mxu0 0.0
    %862 = vmatpush1.msra.mxu0 0.0
    %863 = vmatprep.subr.mxu0 0.0
    %864 = vmatpush1.msra.mxu0 0.0
    %865 = vmatprep.subr.mxu0 0.0
    %866 = vmatpush1.msra.mxu0 0.0
    %867 = vmatprep.subr.mxu0 0.0
    %868 = vmatpush1.msra.mxu0 0.0
    %869 = vmatprep.subr.mxu0 0.0
    %870 = vmatpush1.msra.mxu0 0.0
    %871 = vmatprep.subr.mxu0 0.0
    %872 = vmatpush1.msra.mxu0 0.0
    %873 = vmatprep.mubr.f32.mxu0 0.0
    %874 = vmatmul.mubr.f32.gmra.mrb[0].mxu0 %v798
    %v875 = vpop.f32.mrb[0].mxu0
    %v876 = vadd.f32 %v779, %v875
    %v877 = vpop.f32.mrb[0].mxu0
    %878 = vmatprep.mubr.f32.mxu0 0.0
    %879 = vmatmul.mubr.f32.gmra.mrb[0].mxu0 %v801
    %v880 = vpop.f32.mrb[0].mxu0
    %v881 = vadd.f32 %v784, %v880
    %v882 = vpop.f32.mrb[0].mxu0
    %883 = vmatprep.mubr.f32.mxu0 0.0
    %884 = vmatmul.mubr.f32.gmra.mrb[0].mxu0 %v804
    %v885 = vpop.f32.mrb[0].mxu0
    %v886 = vadd.f32 %v789, %v885
    %v887 = vpop.f32.mrb[0].mxu0
    %888 = vmatprep.mubr.f32.mxu0 0.0
    %889 = vmatmul.mubr.f32.gmra.mrb[0].mxu0 %v807
    %v890 = vpop.f32.mrb[0].mxu0
    %v891 = vadd.f32 %v794, %v890
    %v892 = vpop.f32.mrb[0].mxu0
    %893 = vdwg.mxu0
    %s894 = scalar_lea.vmem [#allocation7], 64
    %v895 = vld [vmem:[%s894] sm:$0xff]
    %v896 = vld [vmem:[%s894 + $0x8] sm:$0xff]
    %v897 = vld [vmem:[%s894 + $0x10] sm:$0xff]
    %v898 = vld [vmem:[%s894 + $0x18] sm:$0xf]
    %v900 = vsel %vm699, %v895, 0
    %v903 = vsel %vm699, %v896, 0
    %v906 = vsel %vm699, %v897, 0
    %v909 = vsel %vm699, %v898, 0
    %911 = vmatprep.subr.mxu0 0.0
    %912 = vmatpush1.msra.mxu0 %v661
    %913 = vmatprep.subr.mxu0 0.0
    %914 = vmatpush1.msra.mxu0 %v664
    %915 = vmatprep.subr.mxu0 0.0
    %916 = vmatpush1.msra.mxu0 %v669
    %917 = vmatprep.subr.mxu0 0.0
    %918 = vmatpush1.msra.mxu0 %v672
    %919 = vmatprep.subr.mxu0 0.0
    %920 = vmatpush1.msra.mxu0 %v677
    %921 = vmatprep.subr.mxu0 0.0
    %922 = vmatpush1.msra.mxu0 %v680
    %923 = vmatprep.subr.mxu0 0.0
    %924 = vmatpush1.msra.mxu0 %v685
    %925 = vmatprep.subr.mxu0 0.0
    %926 = vmatpush1.msra.mxu0 0.0
    %927 = vmatprep.subr.mxu0 0.0
    %928 = vmatpush1.msra.mxu0 0.0
    %929 = vmatprep.subr.mxu0 0.0
    %930 = vmatpush1.msra.mxu0 0.0
    %931 = vmatprep.subr.mxu0 0.0
    %932 = vmatpush1.msra.mxu0 0.0
    %933 = vmatprep.subr.mxu0 0.0
    %934 = vmatpush1.msra.mxu0 0.0
    %935 = vmatprep.subr.mxu0 0.0
    %936 = vmatpush1.msra.mxu0 0.0
    %937 = vmatprep.subr.mxu0 0.0
    %938 = vmatpush1.msra.mxu0 0.0
    %939 = vmatprep.subr.mxu0 0.0
    %940 = vmatpush1.msra.mxu0 0.0
    %941 = vmatprep.subr.mxu0 0.0
    %942 = vmatpush1.msra.mxu0 0.0
    %943 = vmatprep.subr.mxu0 0.0
    %944 = vmatpush1.msra.mxu0 0.0
    %945 = vmatprep.subr.mxu0 0.0
    %946 = vmatpush1.msra.mxu0 0.0
    %947 = vmatprep.subr.mxu0 0.0
    %948 = vmatpush1.msra.mxu0 0.0
    %949 = vmatprep.subr.mxu0 0.0
    %950 = vmatpush1.msra.mxu0 0.0
    %951 = vmatprep.subr.mxu0 0.0
    %952 = vmatpush1.msra.mxu0 0.0
    %953 = vmatprep.subr.mxu0 0.0
    %954 = vmatpush1.msra.mxu0 0.0
    %955 = vmatprep.subr.mxu0 0.0
    %956 = vmatpush1.msra.mxu0 0.0
    %957 = vmatprep.subr.mxu0 0.0
    %958 = vmatpush1.msra.mxu0 0.0
    %959 = vmatprep.subr.mxu0 0.0
    %960 = vmatpush1.msra.mxu0 0.0
    %961 = vmatprep.subr.mxu0 0.0
    %962 = vmatpush1.msra.mxu0 0.0
    %963 = vmatprep.subr.mxu0 0.0
    %964 = vmatpush1.msra.mxu0 0.0
    %965 = vmatprep.subr.mxu0 0.0
    %966 = vmatpush1.msra.mxu0 0.0
    %967 = vmatprep.subr.mxu0 0.0
    %968 = vmatpush1.msra.mxu0 0.0
    %969 = vmatprep.subr.mxu0 0.0
    %970 = vmatpush1.msra.mxu0 0.0
    %971 = vmatprep.subr.mxu0 0.0
    %972 = vmatpush1.msra.mxu0 0.0
    %973 = vmatprep.subr.mxu0 0.0
    %974 = vmatpush1.msra.mxu0 0.0
    %975 = vmatprep.mubr.f32.mxu0 0.0
    %976 = vmatmul.mubr.f32.gmra.mrb[0].mxu0 %v900
    %v977 = vpop.f32.mrb[0].mxu0
    %v978 = vadd.f32 0.0, %v977
    %v979 = vpop.f32.mrb[0].mxu0
    %980 = vmatprep.mubr.f32.mxu0 0.0
    %981 = vmatmul.mubr.f32.gmra.mrb[0].mxu0 %v903
    %v982 = vpop.f32.mrb[0].mxu0
    %v983 = vadd.f32 0.0, %v982
    %v984 = vpop.f32.mrb[0].mxu0
    %985 = vmatprep.mubr.f32.mxu0 0.0
    %986 = vmatmul.mubr.f32.gmra.mrb[0].mxu0 %v906
    %v987 = vpop.f32.mrb[0].mxu0
    %v988 = vadd.f32 0.0, %v987
    %v989 = vpop.f32.mrb[0].mxu0
    %990 = vmatprep.mubr.f32.mxu0 0.0
    %991 = vmatmul.mubr.f32.gmra.mrb[0].mxu0 %v909
    %v992 = vpop.f32.mrb[0].mxu0
    %v993 = vadd.f32 0.0, %v992
    %v994 = vpop.f32.mrb[0].mxu0
    %995 = vdwg.mxu0
    %v996 = vadd.f32 %v876, %v978
    %v997 = vadd.f32 %v881, %v983
    %v998 = vadd.f32 %v886, %v988
    %v999 = vadd.f32 %v891, %v993
    %v1000 = vld [vmem:[%s9] sm:$0x1]
    %v1002 = vlaneseq
    %v1003 = vshrl.u32 %v1002, 7
    %v1004 = vsub.s32 0, %v1003
    %v1005 = vrot.slane %v1000, %v1004
    %v1007 = vadd.f32 %v996, %v1005
    %v1008 = vadd.f32 %v997, %v1005
    %v1009 = vadd.f32 %v998, %v1005
    %v1010 = vadd.f32 %v999, %v1005
    %v1011 = vmax.f32 %v1007, 0.0
    %v1012 = vmax.f32 %v1008, 0.0
    %v1013 = vmax.f32 %v1009, 0.0
    %v1014 = vmax.f32 %v1010, 0.0
    %v1015 = vpack.c.bf16 %v1012, %v1011
    %v1016 = vpack.c.bf16 %v1014, %v1013
    %v1017 = vld [vmem:[%s13] sm:$0xff]
    %v1018 = vld [vmem:[%s13 + $0x8] sm:$0xf]
    %v1019 = vld [vmem:[%s13 + $0xc] sm:$0xff]
    %v1020 = vld [vmem:[%s13 + $0x14] sm:$0xf]
    %v1021 = vld [vmem:[%s13 + $0x18] sm:$0xff]
    %v1022 = vld [vmem:[%s13 + $0x20] sm:$0xf]
    %v1023 = vld [vmem:[%s13 + $0x24] sm:$0xff]
    %v1024 = vld [vmem:[%s13 + $0x2c] sm:$0xf]
    %v1025 = vld [vmem:[%s13 + $0x30] sm:$0xff]
    %v1026 = vld [vmem:[%s13 + $0x38] sm:$0xf]
    %v1027 = vld [vmem:[%s13 + $0x3c] sm:$0xff]
    %v1028 = vld [vmem:[%s13 + $0x44] sm:$0xf]
    %v1029 = vld [vmem:[%s13 + $0x48] sm:$0xff]
    %v1030 = vld [vmem:[%s13 + $0x50] sm:$0xf]
    %v1031 = vld [vmem:[%s13 + $0x54] sm:$0xff]
    %v1032 = vld [vmem:[%s13 + $0x5c] sm:$0xf]
    %v1033 = vld [vmem:[%s13 + $0x60] sm:$0xff]
    %v1034 = vld [vmem:[%s13 + $0x68] sm:$0xf]
    %v1035 = vld [vmem:[%s13 + $0x6c] sm:$0xff]
    %v1036 = vld [vmem:[%s13 + $0x74] sm:$0xf]
    %v1037 = vld [vmem:[%s13 + $0x78] sm:$0xff]
    %v1038 = vld [vmem:[%s13 + $0x80] sm:$0xf]
    %v1039 = vld [vmem:[%s13 + $0x84] sm:$0xff]
    %v1040 = vld [vmem:[%s13 + $0x8c] sm:$0xf]
    %v1041 = vld [vmem:[%s13 + $0x90] sm:$0xff]
    %v1042 = vld [vmem:[%s13 + $0x98] sm:$0xf]
    %v1043 = vld [vmem:[%s13 + $0x9c] sm:$0xff]
    %v1044 = vld [vmem:[%s13 + $0xa4] sm:$0xf]
    %v1045 = vld [vmem:[%s13 + $0xa8] sm:$0xff]
    %v1046 = vld [vmem:[%s13 + $0xb0] sm:$0xf]
    %v1047 = vld [vmem:[%s13 + $0xb4] sm:$0xff]
    %v1048 = vld [vmem:[%s13 + $0xbc] sm:$0xf]
    %v1081 = vunpack.c.l.b16 %v1017
    %v1082 = vunpack.c.h.b16 %v1017
    %v1083 = vunpack.c.l.b16 %v1018
    %v1084 = vunpack.c.l.b16 %v1019
    %v1085 = vunpack.c.h.b16 %v1019
    %v1086 = vunpack.c.l.b16 %v1020
    %v1087 = vunpack.c.l.b16 %v1021
    %v1088 = vunpack.c.h.b16 %v1021
    %v1089 = vunpack.c.l.b16 %v1022
    %v1090 = vunpack.c.l.b16 %v1023
    %v1091 = vunpack.c.h.b16 %v1023
    %v1092 = vunpack.c.l.b16 %v1024
    %v1093 = vunpack.c.l.b16 %v1025
    %v1094 = vunpack.c.h.b16 %v1025
    %v1095 = vunpack.c.l.b16 %v1026
    %v1096 = vunpack.c.l.b16 %v1027
    %v1097 = vunpack.c.h.b16 %v1027
    %v1098 = vunpack.c.l.b16 %v1028
    %v1099 = vunpack.c.l.b16 %v1029
    %v1100 = vunpack.c.h.b16 %v1029
    %v1101 = vunpack.c.l.b16 %v1030
    %v1102 = vunpack.c.l.b16 %v1031
    %v1103 = vunpack.c.h.b16 %v1031
    %v1104 = vunpack.c.l.b16 %v1032
    %v1105 = vunpack.c.l.b16 %v1033
    %v1106 = vunpack.c.h.b16 %v1033
    %v1107 = vunpack.c.l.b16 %v1034
    %v1108 = vunpack.c.l.b16 %v1035
    %v1109 = vunpack.c.h.b16 %v1035
    %v1110 = vunpack.c.l.b16 %v1036
    %v1111 = vunpack.c.l.b16 %v1037
    %v1112 = vunpack.c.h.b16 %v1037
    %v1113 = vunpack.c.l.b16 %v1038
    %v1114 = vunpack.c.l.b16 %v1039
    %v1115 = vunpack.c.h.b16 %v1039
    %v1116 = vunpack.c.l.b16 %v1040
    %v1117 = vunpack.c.l.b16 %v1041
    %v1118 = vunpack.c.h.b16 %v1041
    %v1119 = vunpack.c.l.b16 %v1042
    %v1120 = vunpack.c.l.b16 %v1043
    %v1121 = vunpack.c.h.b16 %v1043
    %v1122 = vunpack.c.l.b16 %v1044
    %v1123 = vunpack.c.l.b16 %v1045
    %v1124 = vunpack.c.h.b16 %v1045
    %v1125 = vunpack.c.l.b16 %v1046
    %v1126 = vunpack.c.l.b16 %v1047
    %v1127 = vunpack.c.h.b16 %v1047
    %v1128 = vunpack.c.l.b16 %v1048
    %v1129 = vpack.c.b16 %v1084, %v1081
    %v1130 = vpack.c.b16 %v1085, %v1082
    %v1131 = vpack.c.b16 %v1086, %v1083
    %v1132 = vpack.c.b16 %v1090, %v1087
    %v1133 = vpack.c.b16 %v1091, %v1088
    %v1134 = vpack.c.b16 %v1092, %v1089
    %v1135 = vpack.c.b16 %v1096, %v1093
    %v1136 = vpack.c.b16 %v1097, %v1094
    %v1137 = vpack.c.b16 %v1098, %v1095
    %v1138 = vpack.c.b16 %v1102, %v1099
    %v1139 = vpack.c.b16 %v1103, %v1100
    %v1140 = vpack.c.b16 %v1104, %v1101
    %v1141 = vpack.c.b16 %v1108, %v1105
    %v1142 = vpack.c.b16 %v1109, %v1106
    %v1143 = vpack.c.b16 %v1110, %v1107
    %v1144 = vpack.c.b16 %v1114, %v1111
    %v1145 = vpack.c.b16 %v1115, %v1112
    %v1146 = vpack.c.b16 %v1116, %v1113
    %v1147 = vpack.c.b16 %v1120, %v1117
    %v1148 = vpack.c.b16 %v1121, %v1118
    %v1149 = vpack.c.b16 %v1122, %v1119
    %v1150 = vpack.c.b16 %v1126, %v1123
    %v1151 = vpack.c.b16 %v1127, %v1124
    %v1152 = vpack.c.b16 %v1128, %v1125
    %1177 = vmatprep.subr.bf16.mxu0 %v1130
    %1178 = vmatpush1.bf16.msra.mxu0 %v1129
    %1179 = vmatprep.subr.bf16.mxu0 %v1133
    %1180 = vmatpush1.bf16.msra.mxu0 %v1132
    %1181 = vmatprep.subr.bf16.mxu0 %v1136
    %1182 = vmatpush1.bf16.msra.mxu0 %v1135
    %1183 = vmatprep.subr.bf16.mxu0 %v1139
    %1184 = vmatpush1.bf16.msra.mxu0 %v1138
    %1185 = vmatprep.subr.bf16.mxu0 %v1142
    %1186 = vmatpush1.bf16.msra.mxu0 %v1141
    %1187 = vmatprep.subr.bf16.mxu0 %v1145
    %1188 = vmatpush1.bf16.msra.mxu0 %v1144
    %1189 = vmatprep.subr.bf16.mxu0 %v1148
    %1190 = vmatpush1.bf16.msra.mxu0 %v1147
    %1191 = vmatprep.subr.bf16.mxu0 %v1151
    %1192 = vmatpush1.bf16.msra.mxu0 %v1150
    %1193 = vmatprep.subr.bf16.mxu0 0
    %1194 = vmatpush1.bf16.msra.mxu0 0
    %1195 = vmatprep.subr.bf16.mxu0 0
    %1196 = vmatpush1.bf16.msra.mxu0 0
    %1197 = vmatprep.subr.bf16.mxu0 0
    %1198 = vmatpush1.bf16.msra.mxu0 0
    %1199 = vmatprep.subr.bf16.mxu0 0
    %1200 = vmatpush1.bf16.msra.mxu0 0
    %1201 = vmatprep.subr.bf16.mxu0 0
    %1202 = vmatpush1.bf16.msra.mxu0 0
    %1203 = vmatprep.subr.bf16.mxu0 0
    %1204 = vmatpush1.bf16.msra.mxu0 0
    %1205 = vmatprep.subr.bf16.mxu0 0
    %1206 = vmatpush1.bf16.msra.mxu0 0
    %1207 = vmatprep.subr.bf16.mxu0 0
    %1208 = vmatpush1.bf16.msra.mxu0 0
    %1209 = vmatprep.mubr.bf16.mxu0 0
    %1210 = vmatmul.mubr.bf16.gmra.mrb[0].mxu0 %v1015
    %v1211 = vpop.f32.mrb[0].mxu0
    %v1212 = vadd.f32 0.0, %v1211
    %v1213 = vpop.f32.mrb[0].mxu0
    %v1214 = vadd.f32 0.0, %v1213
    %v1215 = vpop.f32.mrb[0].mxu0
    %v1216 = vadd.f32 0.0, %v1215
    %v1217 = vpop.f32.mrb[0].mxu0
    %v1218 = vadd.f32 0.0, %v1217
    %1219 = vmatprep.mubr.bf16.mxu0 0
    %1220 = vmatmul.mubr.bf16.gmra.mrb[0].mxu0 %v1016
    %v1221 = vpop.f32.mrb[0].mxu0
    %v1222 = vadd.f32 0.0, %v1221
    %v1223 = vpop.f32.mrb[0].mxu0
    %v1224 = vadd.f32 0.0, %v1223
    %v1225 = vpop.f32.mrb[0].mxu0
    %v1226 = vadd.f32 0.0, %v1225
    %v1227 = vpop.f32.mrb[0].mxu0
    %v1228 = vadd.f32 0.0, %v1227
    %1229 = vdwg.mxu0
    %1230 = vmatprep.subr.bf16.mxu0 0
    %1231 = vmatpush1.bf16.msra.mxu0 %v1131
    %1232 = vmatprep.subr.bf16.mxu0 0
    %1233 = vmatpush1.bf16.msra.mxu0 %v1134
    %1234 = vmatprep.subr.bf16.mxu0 0
    %1235 = vmatpush1.bf16.msra.mxu0 %v1137
    %1236 = vmatprep.subr.bf16.mxu0 0
    %1237 = vmatpush1.bf16.msra.mxu0 %v1140
    %1238 = vmatprep.subr.bf16.mxu0 0
    %1239 = vmatpush1.bf16.msra.mxu0 %v1143
    %1240 = vmatprep.subr.bf16.mxu0 0
    %1241 = vmatpush1.bf16.msra.mxu0 %v1146
    %1242 = vmatprep.subr.bf16.mxu0 0
    %1243 = vmatpush1.bf16.msra.mxu0 %v1149
    %1244 = vmatprep.subr.bf16.mxu0 0
    %1245 = vmatpush1.bf16.msra.mxu0 %v1152
    %1246 = vmatprep.subr.bf16.mxu0 0
    %1247 = vmatpush1.bf16.msra.mxu0 0
    %1248 = vmatprep.subr.bf16.mxu0 0
    %1249 = vmatpush1.bf16.msra.mxu0 0
    %1250 = vmatprep.subr.bf16.mxu0 0
    %1251 = vmatpush1.bf16.msra.mxu0 0
    %1252 = vmatprep.subr.bf16.mxu0 0
    %1253 = vmatpush1.bf16.msra.mxu0 0
    %1254 = vmatprep.subr.bf16.mxu0 0
    %1255 = vmatpush1.bf16.msra.mxu0 0
    %1256 = vmatprep.subr.bf16.mxu0 0
    %1257 = vmatpush1.bf16.msra.mxu0 0
    %1258 = vmatprep.subr.bf16.mxu0 0
    %1259 = vmatpush1.bf16.msra.mxu0 0
    %1260 = vmatprep.subr.bf16.mxu0 0
    %1261 = vmatpush1.bf16.msra.mxu0 0
    %1262 = vmatprep.mubr.bf16.mxu0 0
    %1263 = vmatmul.mubr.bf16.gmra.mrb[0].mxu0 %v1015
    %v1264 = vpop.f32.mrb[0].mxu0
    %v1265 = vadd.f32 0.0, %v1264
    %v1266 = vpop.f32.mrb[0].mxu0
    %v1267 = vpop.f32.mrb[0].mxu0
    %v1268 = vadd.f32 0.0, %v1267
    %v1269 = vpop.f32.mrb[0].mxu0
    %1270 = vmatprep.mubr.bf16.mxu0 0
    %1271 = vmatmul.mubr.bf16.gmra.mrb[0].mxu0 %v1016
    %v1272 = vpop.f32.mrb[0].mxu0
    %v1273 = vadd.f32 0.0, %v1272
    %v1274 = vpop.f32.mrb[0].mxu0
    %v1275 = vpop.f32.mrb[0].mxu0
    %v1276 = vadd.f32 0.0, %v1275
    %v1277 = vpop.f32.mrb[0].mxu0
    %1278 = vdwg.mxu0
    %v1279 = vld [vmem:[#allocation10] sm:$0xff]
    %v1280 = vld [vmem:[#allocation10 + $0x8] sm:$0x3f]
    %s1281 = scalar_lea.vmem [#allocation10], 16
    %v1282 = vld [vmem:[%s1281] sm:$0xff]
    %v1283 = vld [vmem:[%s1281 + $0x8] sm:$0x3f]
    %v1285 = vsel %vm532, %v1282, 0
    %v1288 = vsel %vm532, %v1283, 0
    %vm1290 = vcmask 1043456
    %v1292 = vsel %vm1290, %v1228, 0
    %1294 = vmatprep.subr.mxu0 0.0
    %1295 = vmatpush1.msra.mxu0 %v1214
    %1296 = vmatprep.subr.mxu0 0.0
    %1297 = vmatpush1.msra.mxu0 %v1218
    %1298 = vmatprep.subr.mxu0 0.0
    %1299 = vmatpush1.msra.mxu0 %v1224
    %1300 = vmatprep.subr.mxu0 0.0
    %1301 = vmatpush1.msra.mxu0 %v1292
    %1302 = vmatprep.subr.mxu0 0.0
    %1303 = vmatpush1.msra.mxu0 0.0
    %1304 = vmatprep.subr.mxu0 0.0
    %1305 = vmatpush1.msra.mxu0 0.0
    %1306 = vmatprep.subr.mxu0 0.0
    %1307 = vmatpush1.msra.mxu0 0.0
    %1308 = vmatprep.subr.mxu0 0.0
    %1309 = vmatpush1.msra.mxu0 0.0
    %1310 = vmatprep.subr.mxu0 0.0
    %1311 = vmatpush1.msra.mxu0 0.0
    %1312 = vmatprep.subr.mxu0 0.0
    %1313 = vmatpush1.msra.mxu0 0.0
    %1314 = vmatprep.subr.mxu0 0.0
    %1315 = vmatpush1.msra.mxu0 0.0
    %1316 = vmatprep.subr.mxu0 0.0
    %1317 = vmatpush1.msra.mxu0 0.0
    %1318 = vmatprep.subr.mxu0 0.0
    %1319 = vmatpush1.msra.mxu0 0.0
    %1320 = vmatprep.subr.mxu0 0.0
    %1321 = vmatpush1.msra.mxu0 0.0
    %1322 = vmatprep.subr.mxu0 0.0
    %1323 = vmatpush1.msra.mxu0 0.0
    %1324 = vmatprep.subr.mxu0 0.0
    %1325 = vmatpush1.msra.mxu0 0.0
    %1326 = vmatprep.subr.mxu0 0.0
    %1327 = vmatpush1.msra.mxu0 0.0
    %1328 = vmatprep.subr.mxu0 0.0
    %1329 = vmatpush1.msra.mxu0 0.0
    %1330 = vmatprep.subr.mxu0 0.0
    %1331 = vmatpush1.msra.mxu0 0.0
    %1332 = vmatprep.subr.mxu0 0.0
    %1333 = vmatpush1.msra.mxu0 0.0
    %1334 = vmatprep.subr.mxu0 0.0
    %1335 = vmatpush1.msra.mxu0 0.0
    %1336 = vmatprep.subr.mxu0 0.0
    %1337 = vmatpush1.msra.mxu0 0.0
    %1338 = vmatprep.subr.mxu0 0.0
    %1339 = vmatpush1.msra.mxu0 0.0
    %1340 = vmatprep.subr.mxu0 0.0
    %1341 = vmatpush1.msra.mxu0 0.0
    %1342 = vmatprep.subr.mxu0 0.0
    %1343 = vmatpush1.msra.mxu0 0.0
    %1344 = vmatprep.subr.mxu0 0.0
    %1345 = vmatpush1.msra.mxu0 0.0
    %1346 = vmatprep.subr.mxu0 0.0
    %1347 = vmatpush1.msra.mxu0 0.0
    %1348 = vmatprep.subr.mxu0 0.0
    %1349 = vmatpush1.msra.mxu0 0.0
    %1350 = vmatprep.subr.mxu0 0.0
    %1351 = vmatpush1.msra.mxu0 0.0
    %1352 = vmatprep.subr.mxu0 0.0
    %1353 = vmatpush1.msra.mxu0 0.0
    %1354 = vmatprep.subr.mxu0 0.0
    %1355 = vmatpush1.msra.mxu0 0.0
    %1356 = vmatprep.subr.mxu0 0.0
    %1357 = vmatpush1.msra.mxu0 0.0
    %1358 = vmatprep.mubr.f32.mxu0 0.0
    %1359 = vmatmul.mubr.f32.gmra.mrb[0].mxu0 %v1285
    %v1360 = vpop.f32.mrb[0].mxu0
    %v1361 = vadd.f32 0.0, %v1360
    %v1362 = vpop.f32.mrb[0].mxu0
    %1363 = vmatprep.mubr.f32.mxu0 0.0
    %1364 = vmatmul.mubr.f32.gmra.mrb[0].mxu0 %v1288
    %v1365 = vpop.f32.mrb[0].mxu0
    %v1366 = vadd.f32 0.0, %v1365
    %v1367 = vpop.f32.mrb[0].mxu0
    %1368 = vdwg.mxu0
    %v1370 = vsel %vm532, %v1279, 0
    %v1373 = vsel %vm532, %v1280, 0
    %v1376 = vsel %vm1290, %v1226, 0
    %1378 = vmatprep.subr.mxu0 0.0
    %1379 = vmatpush1.msra.mxu0 %v1212
    %1380 = vmatprep.subr.mxu0 0.0
    %1381 = vmatpush1.msra.mxu0 %v1216
    %1382 = vmatprep.subr.mxu0 0.0
    %1383 = vmatpush1.msra.mxu0 %v1222
    %1384 = vmatprep.subr.mxu0 0.0
    %1385 = vmatpush1.msra.mxu0 %v1376
    %1386 = vmatprep.subr.mxu0 0.0
    %1387 = vmatpush1.msra.mxu0 0.0
    %1388 = vmatprep.subr.mxu0 0.0
    %1389 = vmatpush1.msra.mxu0 0.0
    %1390 = vmatprep.subr.mxu0 0.0
    %1391 = vmatpush1.msra.mxu0 0.0
    %1392 = vmatprep.subr.mxu0 0.0
    %1393 = vmatpush1.msra.mxu0 0.0
    %1394 = vmatprep.subr.mxu0 0.0
    %1395 = vmatpush1.msra.mxu0 0.0
    %1396 = vmatprep.subr.mxu0 0.0
    %1397 = vmatpush1.msra.mxu0 0.0
    %1398 = vmatprep.subr.mxu0 0.0
    %1399 = vmatpush1.msra.mxu0 0.0
    %1400 = vmatprep.subr.mxu0 0.0
    %1401 = vmatpush1.msra.mxu0 0.0
    %1402 = vmatprep.subr.mxu0 0.0
    %1403 = vmatpush1.msra.mxu0 0.0
    %1404 = vmatprep.subr.mxu0 0.0
    %1405 = vmatpush1.msra.mxu0 0.0
    %1406 = vmatprep.subr.mxu0 0.0
    %1407 = vmatpush1.msra.mxu0 0.0
    %1408 = vmatprep.subr.mxu0 0.0
    %1409 = vmatpush1.msra.mxu0 0.0
    %1410 = vmatprep.subr.mxu0 0.0
    %1411 = vmatpush1.msra.mxu0 0.0
    %1412 = vmatprep.subr.mxu0 0.0
    %1413 = vmatpush1.msra.mxu0 0.0
    %1414 = vmatprep.subr.mxu0 0.0
    %1415 = vmatpush1.msra.mxu0 0.0
    %1416 = vmatprep.subr.mxu0 0.0
    %1417 = vmatpush1.msra.mxu0 0.0
    %1418 = vmatprep.subr.mxu0 0.0
    %1419 = vmatpush1.msra.mxu0 0.0
    %1420 = vmatprep.subr.mxu0 0.0
    %1421 = vmatpush1.msra.mxu0 0.0
    %1422 = vmatprep.subr.mxu0 0.0
    %1423 = vmatpush1.msra.mxu0 0.0
    %1424 = vmatprep.subr.mxu0 0.0
    %1425 = vmatpush1.msra.mxu0 0.0
    %1426 = vmatprep.subr.mxu0 0.0
    %1427 = vmatpush1.msra.mxu0 0.0
    %1428 = vmatprep.subr.mxu0 0.0
    %1429 = vmatpush1.msra.mxu0 0.0
    %1430 = vmatprep.subr.mxu0 0.0
    %1431 = vmatpush1.msra.mxu0 0.0
    %1432 = vmatprep.subr.mxu0 0.0
    %1433 = vmatpush1.msra.mxu0 0.0
    %1434 = vmatprep.subr.mxu0 0.0
    %1435 = vmatpush1.msra.mxu0 0.0
    %1436 = vmatprep.subr.mxu0 0.0
    %1437 = vmatpush1.msra.mxu0 0.0
    %1438 = vmatprep.subr.mxu0 0.0
    %1439 = vmatpush1.msra.mxu0 0.0
    %1440 = vmatprep.subr.mxu0 0.0
    %1441 = vmatpush1.msra.mxu0 0.0
    %1442 = vmatprep.mubr.f32.mxu0 0.0
    %1443 = vmatmul.mubr.f32.gmra.mrb[0].mxu0 %v1370
    %v1444 = vpop.f32.mrb[0].mxu0
    %v1445 = vadd.f32 %v1361, %v1444
    %v1446 = vpop.f32.mrb[0].mxu0
    %1447 = vmatprep.mubr.f32.mxu0 0.0
    %1448 = vmatmul.mubr.f32.gmra.mrb[0].mxu0 %v1373
    %v1449 = vpop.f32.mrb[0].mxu0
    %v1450 = vadd.f32 %v1366, %v1449
    %v1451 = vpop.f32.mrb[0].mxu0
    %1452 = vdwg.mxu0
    %s1453 = scalar_lea.vmem [#allocation10], 32
    %v1454 = vld [vmem:[%s1453] sm:$0xff]
    %v1455 = vld [vmem:[%s1453 + $0x8] sm:$0x3f]
    %v1457 = vsel %vm532, %v1454, 0
    %v1460 = vsel %vm532, %v1455, 0
    %v1463 = vsel %vm1290, %v1276, 0
    %1465 = vmatprep.subr.mxu0 0.0
    %1466 = vmatpush1.msra.mxu0 %v1265
    %1467 = vmatprep.subr.mxu0 0.0
    %1468 = vmatpush1.msra.mxu0 %v1268
    %1469 = vmatprep.subr.mxu0 0.0
    %1470 = vmatpush1.msra.mxu0 %v1273
    %1471 = vmatprep.subr.mxu0 0.0
    %1472 = vmatpush1.msra.mxu0 %v1463
    %1473 = vmatprep.subr.mxu0 0.0
    %1474 = vmatpush1.msra.mxu0 0.0
    %1475 = vmatprep.subr.mxu0 0.0
    %1476 = vmatpush1.msra.mxu0 0.0
    %1477 = vmatprep.subr.mxu0 0.0
    %1478 = vmatpush1.msra.mxu0 0.0
    %1479 = vmatprep.subr.mxu0 0.0
    %1480 = vmatpush1.msra.mxu0 0.0
    %1481 = vmatprep.subr.mxu0 0.0
    %1482 = vmatpush1.msra.mxu0 0.0
    %1483 = vmatprep.subr.mxu0 0.0
    %1484 = vmatpush1.msra.mxu0 0.0
    %1485 = vmatprep.subr.mxu0 0.0
    %1486 = vmatpush1.msra.mxu0 0.0
    %1487 = vmatprep.subr.mxu0 0.0
    %1488 = vmatpush1.msra.mxu0 0.0
    %1489 = vmatprep.subr.mxu0 0.0
    %1490 = vmatpush1.msra.mxu0 0.0
    %1491 = vmatprep.subr.mxu0 0.0
    %1492 = vmatpush1.msra.mxu0 0.0
    %1493 = vmatprep.subr.mxu0 0.0
    %1494 = vmatpush1.msra.mxu0 0.0
    %1495 = vmatprep.subr.mxu0 0.0
    %1496 = vmatpush1.msra.mxu0 0.0
    %1497 = vmatprep.subr.mxu0 0.0
    %1498 = vmatpush1.msra.mxu0 0.0
    %1499 = vmatprep.subr.mxu0 0.0
    %1500 = vmatpush1.msra.mxu0 0.0
    %1501 = vmatprep.subr.mxu0 0.0
    %1502 = vmatpush1.msra.mxu0 0.0
    %1503 = vmatprep.subr.mxu0 0.0
    %1504 = vmatpush1.msra.mxu0 0.0
    %1505 = vmatprep.subr.mxu0 0.0
    %1506 = vmatpush1.msra.mxu0 0.0
    %1507 = vmatprep.subr.mxu0 0.0
    %1508 = vmatpush1.msra.mxu0 0.0
    %1509 = vmatprep.subr.mxu0 0.0
    %1510 = vmatpush1.msra.mxu0 0.0
    %1511 = vmatprep.subr.mxu0 0.0
    %1512 = vmatpush1.msra.mxu0 0.0
    %1513 = vmatprep.subr.mxu0 0.0
    %1514 = vmatpush1.msra.mxu0 0.0
    %1515 = vmatprep.subr.mxu0 0.0
    %1516 = vmatpush1.msra.mxu0 0.0
    %1517 = vmatprep.subr.mxu0 0.0
    %1518 = vmatpush1.msra.mxu0 0.0
    %1519 = vmatprep.subr.mxu0 0.0
    %1520 = vmatpush1.msra.mxu0 0.0
    %1521 = vmatprep.subr.mxu0 0.0
    %1522 = vmatpush1.msra.mxu0 0.0
    %1523 = vmatprep.subr.mxu0 0.0
    %1524 = vmatpush1.msra.mxu0 0.0
    %1525 = vmatprep.subr.mxu0 0.0
    %1526 = vmatpush1.msra.mxu0 0.0
    %1527 = vmatprep.subr.mxu0 0.0
    %1528 = vmatpush1.msra.mxu0 0.0
    %1529 = vmatprep.mubr.f32.mxu0 0.0
    %1530 = vmatmul.mubr.f32.gmra.mrb[0].mxu0 %v1457
    %v1531 = vpop.f32.mrb[0].mxu0
    %v1532 = vadd.f32 0.0, %v1531
    %v1533 = vpop.f32.mrb[0].mxu0
    %1534 = vmatprep.mubr.f32.mxu0 0.0
    %1535 = vmatmul.mubr.f32.gmra.mrb[0].mxu0 %v1460
    %v1536 = vpop.f32.mrb[0].mxu0
    %v1537 = vadd.f32 0.0, %v1536
    %v1538 = vpop.f32.mrb[0].mxu0
    %1539 = vdwg.mxu0
    %v1540 = vadd.f32 %v1445, %v1532
    %v1541 = vadd.f32 %v1450, %v1537
    %v1542 = vld [vmem:[#allocation11] sm:$0x1]
    %v1543 = vlaneseq
    %v1544 = vshrl.u32 %v1543, 7
    %v1545 = vsub.s32 0, %v1544
    %v1546 = vrot.slane %v1542, %v1545
    %v1547 = vadd.f32 %v1540, %v1546
    %v1548 = vadd.f32 %v1541, %v1546
    %v1549 = vsel %vm545, %v1548, 0.0
    %v1550 = vadd.f32 %v1547, %v1549
    %v1551 = vrot.slane %v1550, 4
    %v1552 = vadd.f32 %v1550, %v1551
    %v1553 = vrot.slane %v1552, 2
    %v1554 = vadd.f32 %v1552, %v1553
    %v1555 = vrot.slane %v1554, 1
    %v1556 = vadd.f32 %v1554, %v1555
    %v1557 = vmul.f32 %v1547, %v1547
    %v1558 = vmul.f32 %v1548, %v1548
    %v1559 = vsel %vm545, %v1558, 0.0
    %v1560 = vadd.f32 %v1557, %v1559
    %v1561 = vrot.slane %v1560, 4
    %v1562 = vadd.f32 %v1560, %v1561
    %v1563 = vrot.slane %v1562, 2
    %v1564 = vadd.f32 %v1562, %v1563
    %v1565 = vrot.slane %v1564, 1
    %v1566 = vadd.f32 %v1564, %v1565
    %vm1567 = vcmask 1040384
    %v1568 = vsel %vm1567, %v1556, %v1566
    %v1569 = vld [vmem:[#allocation13] sm:$0xff]
    %v1570 = vld [vmem:[#allocation13 + $0x8] sm:$0xff]
    %v1571 = vld [vmem:[#allocation13 + $0x10] sm:$0xff]
    %v1572 = vld [vmem:[#allocation13 + $0x18] sm:$0xff]
    %v1573 = vld [vmem:[#allocation13 + $0x20] sm:$0xff]
    %v1574 = vld [vmem:[#allocation13 + $0x28] sm:$0xff]
    %v1575 = vld [vmem:[#allocation13 + $0x30] sm:$0xff]
    %v1576 = vld [vmem:[#allocation13 + $0x38] sm:$0xff]
    %v1577 = vld [vmem:[#allocation13 + $0x40] sm:$0xff]
    %v1578 = vld [vmem:[#allocation13 + $0x48] sm:$0xff]
    %v1579 = vld [vmem:[#allocation13 + $0x50] sm:$0xff]
    %v1580 = vld [vmem:[#allocation13 + $0x58] sm:$0xff]
    %v1581 = vld [vmem:[#allocation13 + $0x60] sm:$0xff]
    %v1582 = vld [vmem:[#allocation13 + $0x68] sm:$0xff]
    %v1583 = vld [vmem:[#allocation13 + $0x70] sm:$0xff]
    %v1584 = vld [vmem:[#allocation13 + $0x78] sm:$0xff]
    %1585 = vmatprep.subr.mxu0 0.0
    %1586 = vmatpush1.msra.mxu0 %v1569
    %1587 = vmatprep.subr.mxu0 0.0
    %1588 = vmatpush1.msra.mxu0 %v1570
    %1589 = vmatprep.subr.mxu0 0.0
    %1590 = vmatpush1.msra.mxu0 %v1571
    %1591 = vmatprep.subr.mxu0 0.0
    %1592 = vmatpush1.msra.mxu0 %v1572
    %1593 = vmatprep.subr.mxu0 0.0
    %1594 = vmatpush1.msra.mxu0 %v1573
    %1595 = vmatprep.subr.mxu0 0.0
    %1596 = vmatpush1.msra.mxu0 %v1574
    %1597 = vmatprep.subr.mxu0 0.0
    %1598 = vmatpush1.msra.mxu0 %v1575
    %1599 = vmatprep.subr.mxu0 0.0
    %1600 = vmatpush1.msra.mxu0 %v1576
    %1601 = vmatprep.subr.mxu0 0.0
    %1602 = vmatpush1.msra.mxu0 %v1577
    %1603 = vmatprep.subr.mxu0 0.0
    %1604 = vmatpush1.msra.mxu0 %v1578
    %1605 = vmatprep.subr.mxu0 0.0
    %1606 = vmatpush1.msra.mxu0 %v1579
    %1607 = vmatprep.subr.mxu0 0.0
    %1608 = vmatpush1.msra.mxu0 %v1580
    %1609 = vmatprep.subr.mxu0 0.0
    %1610 = vmatpush1.msra.mxu0 %v1581
    %1611 = vmatprep.subr.mxu0 0.0
    %1612 = vmatpush1.msra.mxu0 %v1582
    %1613 = vmatprep.subr.mxu0 0.0
    %1614 = vmatpush1.msra.mxu0 %v1583
    %1615 = vmatprep.subr.mxu0 0.0
    %1616 = vmatpush1.msra.mxu0 %v1584
    %1617 = vmatprep.subr.mxu0 0.0
    %1618 = vmatpush1.msra.mxu0 0.0
    %1619 = vmatprep.subr.mxu0 0.0
    %1620 = vmatpush1.msra.mxu0 0.0
    %1621 = vmatprep.subr.mxu0 0.0
    %1622 = vmatpush1.msra.mxu0 0.0
    %1623 = vmatprep.subr.mxu0 0.0
    %1624 = vmatpush1.msra.mxu0 0.0
    %1625 = vmatprep.subr.mxu0 0.0
    %1626 = vmatpush1.msra.mxu0 0.0
    %1627 = vmatprep.subr.mxu0 0.0
    %1628 = vmatpush1.msra.mxu0 0.0
    %1629 = vmatprep.subr.mxu0 0.0
    %1630 = vmatpush1.msra.mxu0 0.0
    %1631 = vmatprep.subr.mxu0 0.0
    %1632 = vmatpush1.msra.mxu0 0.0
    %1633 = vmatprep.subr.mxu0 0.0
    %1634 = vmatpush1.msra.mxu0 0.0
    %1635 = vmatprep.subr.mxu0 0.0
    %1636 = vmatpush1.msra.mxu0 0.0
    %1637 = vmatprep.subr.mxu0 0.0
    %1638 = vmatpush1.msra.mxu0 0.0
    %1639 = vmatprep.subr.mxu0 0.0
    %1640 = vmatpush1.msra.mxu0 0.0
    %1641 = vmatprep.subr.mxu0 0.0
    %1642 = vmatpush1.msra.mxu0 0.0
    %1643 = vmatprep.subr.mxu0 0.0
    %1644 = vmatpush1.msra.mxu0 0.0
    %1645 = vmatprep.subr.mxu0 0.0
    %1646 = vmatpush1.msra.mxu0 0.0
    %1647 = vmatprep.subr.mxu0 0.0
    %1648 = vmatpush1.msra.mxu0 0.0
    %1649 = vmatprep.mubr.f32.mxu0 0.0
    %1650 = vmatmul.mubr.f32.gmra.mrb[0].mxu0 %v1568
    %v1651 = vpop.f32.mrb[0].mxu0
    %v1652 = vadd.f32 0.0, %v1651
    %v1653 = vpop.f32.mrb[0].mxu0
    %1654 = vdwg.mxu0
    %v1655 = vmul.f32 %v1652, %v1652
    %v1657 = vrot.slane %v1655, 7
    %v1659 = vsub.f32 %v1652, %v1657
    %v1660 = vmax.f32 %v1659, 0.0
    %v1661 = vlaneseq
    %v1662 = vshrl.u32 %v1661, 7
    %v1663 = vsub.s32 0, %v1662
    %v1664 = vrot.slane %v1652, %v1663
    %v1665 = vsub.f32 %v1547, %v1664
    %v1666 = vsub.f32 %v1548, %v1664
    %v1667 = vadd.f32 %v1660, 1e-05
    %v1668 = vrsqrt.pop %v1667
    %v1669 = vlaneseq
    %v1670 = vshrl.u32 %v1669, 7
    %v1671 = vsub.s32 1, %v1670
    %v1672 = vrot.slane %v1668, %v1671
    %v1673 = vmul.f32 %v1665, %v1672
    %v1674 = vmul.f32 %v1666, %v1672
    %v1675 = vld [vmem:[#allocation11 + $0x1] sm:$0x1]
    %v1676 = vlaneseq
    %v1677 = vshrl.u32 %v1676, 7
    %v1678 = vsub.s32 0, %v1677
    %v1679 = vrot.slane %v1675, %v1678
    %v1680 = vmul.f32 %v1673, %v1679
    %v1681 = vmul.f32 %v1674, %v1679
    %v1682 = vld [vmem:[#allocation11 + $0x2] sm:$0x1]
    %v1683 = vlaneseq
    %v1684 = vshrl.u32 %v1683, 7
    %v1685 = vsub.s32 0, %v1684
    %v1686 = vrot.slane %v1682, %v1685
    %v1687 = vadd.f32 %v1680, %v1686
    %v1688 = vadd.f32 %v1681, %v1686
    %v1689 = vmax.f32 %v1687, 0.0
    %v1690 = vmax.f32 %v1688, 0.0
    %v1691 = vpack.c.bf16 %v1690, %v1689
    %v1692 = vld [vmem:[%s21] sm:$0xff]
    %v1693 = vld [vmem:[%s21 + $0x8] sm:$0xf]
    %v1694 = vld [vmem:[%s21 + $0xc] sm:$0xff]
    %v1695 = vld [vmem:[%s21 + $0x14] sm:$0xf]
    %v1696 = vld [vmem:[%s21 + $0x18] sm:$0xff]
    %v1697 = vld [vmem:[%s21 + $0x20] sm:$0xf]
    %v1698 = vld [vmem:[%s21 + $0x24] sm:$0xff]
    %v1699 = vld [vmem:[%s21 + $0x2c] sm:$0xf]
    %v1700 = vld [vmem:[%s21 + $0x30] sm:$0xff]
    %v1701 = vld [vmem:[%s21 + $0x38] sm:$0xf]
    %v1702 = vld [vmem:[%s21 + $0x3c] sm:$0xff]
    %v1703 = vld [vmem:[%s21 + $0x44] sm:$0xf]
    %v1704 = vld [vmem:[%s21 + $0x48] sm:$0xff]
    %v1705 = vld [vmem:[%s21 + $0x50] sm:$0xf]
    %v1706 = vld [vmem:[%s21 + $0x54] sm:$0xff]
    %v1707 = vld [vmem:[%s21 + $0x5c] sm:$0xf]
    %v1708 = vld [vmem:[%s21 + $0x60] sm:$0xff]
    %v1709 = vld [vmem:[%s21 + $0x68] sm:$0xf]
    %v1710 = vld [vmem:[%s21 + $0x6c] sm:$0xff]
    %v1711 = vld [vmem:[%s21 + $0x74] sm:$0xf]
    %v1712 = vld [vmem:[%s21 + $0x78] sm:$0xff]
    %v1713 = vld [vmem:[%s21 + $0x80] sm:$0xf]
    %v1714 = vld [vmem:[%s21 + $0x84] sm:$0xff]
    %v1715 = vld [vmem:[%s21 + $0x8c] sm:$0xf]
    %v1716 = vld [vmem:[%s21 + $0x90] sm:$0xff]
    %v1717 = vld [vmem:[%s21 + $0x98] sm:$0xf]
    %v1718 = vld [vmem:[%s21 + $0x9c] sm:$0xff]
    %v1719 = vld [vmem:[%s21 + $0xa4] sm:$0xf]
    %v1720 = vld [vmem:[%s21 + $0xa8] sm:$0xff]
    %v1721 = vld [vmem:[%s21 + $0xb0] sm:$0xf]
    %v1722 = vld [vmem:[%s21 + $0xb4] sm:$0xff]
    %v1723 = vld [vmem:[%s21 + $0xbc] sm:$0xf]
    %v1756 = vunpack.c.l.b16 %v1692
    %v1757 = vunpack.c.h.b16 %v1692
    %v1758 = vunpack.c.l.b16 %v1693
    %v1759 = vunpack.c.l.b16 %v1694
    %v1760 = vunpack.c.h.b16 %v1694
    %v1761 = vunpack.c.l.b16 %v1695
    %v1762 = vunpack.c.l.b16 %v1696
    %v1763 = vunpack.c.h.b16 %v1696
    %v1764 = vunpack.c.l.b16 %v1697
    %v1765 = vunpack.c.l.b16 %v1698
    %v1766 = vunpack.c.h.b16 %v1698
    %v1767 = vunpack.c.l.b16 %v1699
    %v1768 = vunpack.c.l.b16 %v1700
    %v1769 = vunpack.c.h.b16 %v1700
    %v1770 = vunpack.c.l.b16 %v1701
    %v1771 = vunpack.c.l.b16 %v1702
    %v1772 = vunpack.c.h.b16 %v1702
    %v1773 = vunpack.c.l.b16 %v1703
    %v1774 = vunpack.c.l.b16 %v1704
    %v1775 = vunpack.c.h.b16 %v1704
    %v1776 = vunpack.c.l.b16 %v1705
    %v1777 = vunpack.c.l.b16 %v1706
    %v1778 = vunpack.c.h.b16 %v1706
    %v1779 = vunpack.c.l.b16 %v1707
    %v1780 = vunpack.c.l.b16 %v1708
    %v1781 = vunpack.c.h.b16 %v1708
    %v1782 = vunpack.c.l.b16 %v1709
    %v1783 = vunpack.c.l.b16 %v1710
    %v1784 = vunpack.c.h.b16 %v1710
    %v1785 = vunpack.c.l.b16 %v1711
    %v1786 = vunpack.c.l.b16 %v1712
    %v1787 = vunpack.c.h.b16 %v1712
    %v1788 = vunpack.c.l.b16 %v1713
    %v1789 = vunpack.c.l.b16 %v1714
    %v1790 = vunpack.c.h.b16 %v1714
    %v1791 = vunpack.c.l.b16 %v1715
    %v1792 = vunpack.c.l.b16 %v1716
    %v1793 = vunpack.c.h.b16 %v1716
    %v1794 = vunpack.c.l.b16 %v1717
    %v1795 = vunpack.c.l.b16 %v1718
    %v1796 = vunpack.c.h.b16 %v1718
    %v1797 = vunpack.c.l.b16 %v1719
    %v1798 = vunpack.c.l.b16 %v1720
    %v1799 = vunpack.c.h.b16 %v1720
    %v1800 = vunpack.c.l.b16 %v1721
    %v1801 = vunpack.c.l.b16 %v1722
    %v1802 = vunpack.c.h.b16 %v1722
    %v1803 = vunpack.c.l.b16 %v1723
    %v1804 = vpack.c.b16 %v1759, %v1756
    %v1805 = vpack.c.b16 %v1760, %v1757
    %v1806 = vpack.c.b16 %v1761, %v1758
    %v1807 = vpack.c.b16 %v1765, %v1762
    %v1808 = vpack.c.b16 %v1766, %v1763
    %v1809 = vpack.c.b16 %v1767, %v1764
    %v1810 = vpack.c.b16 %v1771, %v1768
    %v1811 = vpack.c.b16 %v1772, %v1769
    %v1812 = vpack.c.b16 %v1773, %v1770
    %v1813 = vpack.c.b16 %v1777, %v1774
    %v1814 = vpack.c.b16 %v1778, %v1775
    %v1815 = vpack.c.b16 %v1779, %v1776
    %v1816 = vpack.c.b16 %v1783, %v1780
    %v1817 = vpack.c.b16 %v1784, %v1781
    %v1818 = vpack.c.b16 %v1785, %v1782
    %v1819 = vpack.c.b16 %v1789, %v1786
    %v1820 = vpack.c.b16 %v1790, %v1787
    %v1821 = vpack.c.b16 %v1791, %v1788
    %v1822 = vpack.c.b16 %v1795, %v1792
    %v1823 = vpack.c.b16 %v1796, %v1793
    %v1824 = vpack.c.b16 %v1797, %v1794
    %v1825 = vpack.c.b16 %v1801, %v1798
    %v1826 = vpack.c.b16 %v1802, %v1799
    %v1827 = vpack.c.b16 %v1803, %v1800
    %1852 = vmatprep.subr.bf16.mxu0 %v1805
    %1853 = vmatpush1.bf16.msra.mxu0 %v1804
    %1854 = vmatprep.subr.bf16.mxu0 %v1808
    %1855 = vmatpush1.bf16.msra.mxu0 %v1807
    %1856 = vmatprep.subr.bf16.mxu0 %v1811
    %1857 = vmatpush1.bf16.msra.mxu0 %v1810
    %1858 = vmatprep.subr.bf16.mxu0 %v1814
    %1859 = vmatpush1.bf16.msra.mxu0 %v1813
    %1860 = vmatprep.subr.bf16.mxu0 %v1817
    %1861 = vmatpush1.bf16.msra.mxu0 %v1816
    %1862 = vmatprep.subr.bf16.mxu0 %v1820
    %1863 = vmatpush1.bf16.msra.mxu0 %v1819
    %1864 = vmatprep.subr.bf16.mxu0 %v1823
    %1865 = vmatpush1.bf16.msra.mxu0 %v1822
    %1866 = vmatprep.subr.bf16.mxu0 %v1826
    %1867 = vmatpush1.bf16.msra.mxu0 %v1825
    %1868 = vmatprep.subr.bf16.mxu0 0
    %1869 = vmatpush1.bf16.msra.mxu0 0
    %1870 = vmatprep.subr.bf16.mxu0 0
    %1871 = vmatpush1.bf16.msra.mxu0 0
    %1872 = vmatprep.subr.bf16.mxu0 0
    %1873 = vmatpush1.bf16.msra.mxu0 0
    %1874 = vmatprep.subr.bf16.mxu0 0
    %1875 = vmatpush1.bf16.msra.mxu0 0
    %1876 = vmatprep.subr.bf16.mxu0 0
    %1877 = vmatpush1.bf16.msra.mxu0 0
    %1878 = vmatprep.subr.bf16.mxu0 0
    %1879 = vmatpush1.bf16.msra.mxu0 0
    %1880 = vmatprep.subr.bf16.mxu0 0
    %1881 = vmatpush1.bf16.msra.mxu0 0
    %1882 = vmatprep.subr.bf16.mxu0 0
    %1883 = vmatpush1.bf16.msra.mxu0 0
    %1884 = vmatprep.mubr.bf16.mxu0 0
    %1885 = vmatmul.mubr.bf16.gmra.mrb[0].mxu0 %v1691
    %v1886 = vpop.f32.mrb[0].mxu0
    %v1887 = vadd.f32 0.0, %v1886
    %v1888 = vpop.f32.mrb[0].mxu0
    %v1889 = vadd.f32 0.0, %v1888
    %v1890 = vpop.f32.mrb[0].mxu0
    %v1891 = vadd.f32 0.0, %v1890
    %v1892 = vpop.f32.mrb[0].mxu0
    %v1893 = vadd.f32 0.0, %v1892
    %1894 = vdwg.mxu0
    %1895 = vmatprep.subr.bf16.mxu0 0
    %1896 = vmatpush1.bf16.msra.mxu0 %v1806
    %1897 = vmatprep.subr.bf16.mxu0 0
    %1898 = vmatpush1.bf16.msra.mxu0 %v1809
    %1899 = vmatprep.subr.bf16.mxu0 0
    %1900 = vmatpush1.bf16.msra.mxu0 %v1812
    %1901 = vmatprep.subr.bf16.mxu0 0
    %1902 = vmatpush1.bf16.msra.mxu0 %v1815
    %1903 = vmatprep.subr.bf16.mxu0 0
    %1904 = vmatpush1.bf16.msra.mxu0 %v1818
    %1905 = vmatprep.subr.bf16.mxu0 0
    %1906 = vmatpush1.bf16.msra.mxu0 %v1821
    %1907 = vmatprep.subr.bf16.mxu0 0
    %1908 = vmatpush1.bf16.msra.mxu0 %v1824
    %1909 = vmatprep.subr.bf16.mxu0 0
    %1910 = vmatpush1.bf16.msra.mxu0 %v1827
    %1911 = vmatprep.subr.bf16.mxu0 0
    %1912 = vmatpush1.bf16.msra.mxu0 0
    %1913 = vmatprep.subr.bf16.mxu0 0
    %1914 = vmatpush1.bf16.msra.mxu0 0
    %1915 = vmatprep.subr.bf16.mxu0 0
    %1916 = vmatpush1.bf16.msra.mxu0 0
    %1917 = vmatprep.subr.bf16.mxu0 0
    %1918 = vmatpush1.bf16.msra.mxu0 0
    %1919 = vmatprep.subr.bf16.mxu0 0
    %1920 = vmatpush1.bf16.msra.mxu0 0
    %1921 = vmatprep.subr.bf16.mxu0 0
    %1922 = vmatpush1.bf16.msra.mxu0 0
    %1923 = vmatprep.subr.bf16.mxu0 0
    %1924 = vmatpush1.bf16.msra.mxu0 0
    %1925 = vmatprep.subr.bf16.mxu0 0
    %1926 = vmatpush1.bf16.msra.mxu0 0
    %1927 = vmatprep.mubr.bf16.mxu0 0
    %1928 = vmatmul.mubr.bf16.gmra.mrb[0].mxu0 %v1691
    %v1929 = vpop.f32.mrb[0].mxu0
    %v1930 = vadd.f32 0.0, %v1929
    %v1931 = vpop.f32.mrb[0].mxu0
    %v1932 = vpop.f32.mrb[0].mxu0
    %v1933 = vadd.f32 0.0, %v1932
    %v1934 = vpop.f32.mrb[0].mxu0
    %1935 = vdwg.mxu0
    %v1936 = vld [vmem:[#allocation14] sm:$0x3f]
    %s1937 = scalar_lea.vmem [#allocation14], 8
    %v1938 = vld [vmem:[%s1937] sm:$0x3f]
    %vm1939 = vcmask 113664
    %v1941 = vsel %vm1939, %v1938, 0
    %v1944 = vsel %vm545, %v1893, 0
    %1946 = vmatprep.subr.mxu0 0.0
    %1947 = vmatpush1.msra.mxu0 %v1889
    %1948 = vmatprep.subr.mxu0 0.0
    %1949 = vmatpush1.msra.mxu0 %v1944
    %1950 = vmatprep.subr.mxu0 0.0
    %1951 = vmatpush1.msra.mxu0 0.0
    %1952 = vmatprep.subr.mxu0 0.0
    %1953 = vmatpush1.msra.mxu0 0.0
    %1954 = vmatprep.subr.mxu0 0.0
    %1955 = vmatpush1.msra.mxu0 0.0
    %1956 = vmatprep.subr.mxu0 0.0
    %1957 = vmatpush1.msra.mxu0 0.0
    %1958 = vmatprep.subr.mxu0 0.0
    %1959 = vmatpush1.msra.mxu0 0.0
    %1960 = vmatprep.subr.mxu0 0.0
    %1961 = vmatpush1.msra.mxu0 0.0
    %1962 = vmatprep.subr.mxu0 0.0
    %1963 = vmatpush1.msra.mxu0 0.0
    %1964 = vmatprep.subr.mxu0 0.0
    %1965 = vmatpush1.msra.mxu0 0.0
    %1966 = vmatprep.subr.mxu0 0.0
    %1967 = vmatpush1.msra.mxu0 0.0
    %1968 = vmatprep.subr.mxu0 0.0
    %1969 = vmatpush1.msra.mxu0 0.0
    %1970 = vmatprep.subr.mxu0 0.0
    %1971 = vmatpush1.msra.mxu0 0.0
    %1972 = vmatprep.subr.mxu0 0.0
    %1973 = vmatpush1.msra.mxu0 0.0
    %1974 = vmatprep.subr.mxu0 0.0
    %1975 = vmatpush1.msra.mxu0 0.0
    %1976 = vmatprep.subr.mxu0 0.0
    %1977 = vmatpush1.msra.mxu0 0.0
    %1978 = vmatprep.subr.mxu0 0.0
    %1979 = vmatpush1.msra.mxu0 0.0
    %1980 = vmatprep.subr.mxu0 0.0
    %1981 = vmatpush1.msra.mxu0 0.0
    %1982 = vmatprep.subr.mxu0 0.0
    %1983 = vmatpush1.msra.mxu0 0.0
    %1984 = vmatprep.subr.mxu0 0.0
    %1985 = vmatpush1.msra.mxu0 0.0
    %1986 = vmatprep.subr.mxu0 0.0
    %1987 = vmatpush1.msra.mxu0 0.0
    %1988 = vmatprep.subr.mxu0 0.0
    %1989 = vmatpush1.msra.mxu0 0.0
    %1990 = vmatprep.subr.mxu0 0.0
    %1991 = vmatpush1.msra.mxu0 0.0
    %1992 = vmatprep.subr.mxu0 0.0
    %1993 = vmatpush1.msra.mxu0 0.0
    %1994 = vmatprep.subr.mxu0 0.0
    %1995 = vmatpush1.msra.mxu0 0.0
    %1996 = vmatprep.subr.mxu0 0.0
    %1997 = vmatpush1.msra.mxu0 0.0
    %1998 = vmatprep.subr.mxu0 0.0
    %1999 = vmatpush1.msra.mxu0 0.0
    %2000 = vmatprep.subr.mxu0 0.0
    %2001 = vmatpush1.msra.mxu0 0.0
    %2002 = vmatprep.subr.mxu0 0.0
    %2003 = vmatpush1.msra.mxu0 0.0
    %2004 = vmatprep.subr.mxu0 0.0
    %2005 = vmatpush1.msra.mxu0 0.0
    %2006 = vmatprep.subr.mxu0 0.0
    %2007 = vmatpush1.msra.mxu0 0.0
    %2008 = vmatprep.subr.mxu0 0.0
    %2009 = vmatpush1.msra.mxu0 0.0
    %2010 = vmatprep.mubr.f32.mxu0 0.0
    %2011 = vmatmul.mubr.f32.gmra.mrb[0].mxu0 %v1941
    %v2012 = vpop.f32.mrb[0].mxu0
    %v2013 = vadd.f32 0.0, %v2012
    %v2014 = vpop.f32.mrb[0].mxu0
    %2015 = vdwg.mxu0
    %v2017 = vsel %vm1939, %v1936, 0
    %v2020 = vsel %vm545, %v1891, 0
    %2022 = vmatprep.subr.mxu0 0.0
    %2023 = vmatpush1.msra.mxu0 %v1887
    %2024 = vmatprep.subr.mxu0 0.0
    %2025 = vmatpush1.msra.mxu0 %v2020
    %2026 = vmatprep.subr.mxu0 0.0
    %2027 = vmatpush1.msra.mxu0 0.0
    %2028 = vmatprep.subr.mxu0 0.0
    %2029 = vmatpush1.msra.mxu0 0.0
    %2030 = vmatprep.subr.mxu0 0.0
    %2031 = vmatpush1.msra.mxu0 0.0
    %2032 = vmatprep.subr.mxu0 0.0
    %2033 = vmatpush1.msra.mxu0 0.0
    %2034 = vmatprep.subr.mxu0 0.0
    %2035 = vmatpush1.msra.mxu0 0.0
    %2036 = vmatprep.subr.mxu0 0.0
    %2037 = vmatpush1.msra.mxu0 0.0
    %2038 = vmatprep.subr.mxu0 0.0
    %2039 = vmatpush1.msra.mxu0 0.0
    %2040 = vmatprep.subr.mxu0 0.0
    %2041 = vmatpush1.msra.mxu0 0.0
    %2042 = vmatprep.subr.mxu0 0.0
    %2043 = vmatpush1.msra.mxu0 0.0
    %2044 = vmatprep.subr.mxu0 0.0
    %2045 = vmatpush1.msra.mxu0 0.0
    %2046 = vmatprep.subr.mxu0 0.0
    %2047 = vmatpush1.msra.mxu0 0.0
    %2048 = vmatprep.subr.mxu0 0.0
    %2049 = vmatpush1.msra.mxu0 0.0
    %2050 = vmatprep.subr.mxu0 0.0
    %2051 = vmatpush1.msra.mxu0 0.0
    %2052 = vmatprep.subr.mxu0 0.0
    %2053 = vmatpush1.msra.mxu0 0.0
    %2054 = vmatprep.subr.mxu0 0.0
    %2055 = vmatpush1.msra.mxu0 0.0
    %2056 = vmatprep.subr.mxu0 0.0
    %2057 = vmatpush1.msra.mxu0 0.0
    %2058 = vmatprep.subr.mxu0 0.0
    %2059 = vmatpush1.msra.mxu0 0.0
    %2060 = vmatprep.subr.mxu0 0.0
    %2061 = vmatpush1.msra.mxu0 0.0
    %2062 = vmatprep.subr.mxu0 0.0
    %2063 = vmatpush1.msra.mxu0 0.0
    %2064 = vmatprep.subr.mxu0 0.0
    %2065 = vmatpush1.msra.mxu0 0.0
    %2066 = vmatprep.subr.mxu0 0.0
    %2067 = vmatpush1.msra.mxu0 0.0
    %2068 = vmatprep.subr.mxu0 0.0
    %2069 = vmatpush1.msra.mxu0 0.0
    %2070 = vmatprep.subr.mxu0 0.0
    %2071 = vmatpush1.msra.mxu0 0.0
    %2072 = vmatprep.subr.mxu0 0.0
    %2073 = vmatpush1.msra.mxu0 0.0
    %2074 = vmatprep.subr.mxu0 0.0
    %2075 = vmatpush1.msra.mxu0 0.0
    %2076 = vmatprep.subr.mxu0 0.0
    %2077 = vmatpush1.msra.mxu0 0.0
    %2078 = vmatprep.subr.mxu0 0.0
    %2079 = vmatpush1.msra.mxu0 0.0
    %2080 = vmatprep.subr.mxu0 0.0
    %2081 = vmatpush1.msra.mxu0 0.0
    %2082 = vmatprep.subr.mxu0 0.0
    %2083 = vmatpush1.msra.mxu0 0.0
    %2084 = vmatprep.subr.mxu0 0.0
    %2085 = vmatpush1.msra.mxu0 0.0
    %2086 = vmatprep.mubr.f32.mxu0 0.0
    %2087 = vmatmul.mubr.f32.gmra.mrb[0].mxu0 %v2017
    %v2088 = vpop.f32.mrb[0].mxu0
    %v2089 = vadd.f32 %v2013, %v2088
    %v2090 = vpop.f32.mrb[0].mxu0
    %2091 = vdwg.mxu0
    %s2092 = scalar_lea.vmem [#allocation14], 16
    %v2093 = vld [vmem:[%s2092] sm:$0x3f]
    %v2095 = vsel %vm1939, %v2093, 0
    %v2098 = vsel %vm545, %v1933, 0
    %2100 = vmatprep.subr.mxu0 0.0
    %2101 = vmatpush1.msra.mxu0 %v1930
    %2102 = vmatprep.subr.mxu0 0.0
    %2103 = vmatpush1.msra.mxu0 %v2098
    %2104 = vmatprep.subr.mxu0 0.0
    %2105 = vmatpush1.msra.mxu0 0.0
    %2106 = vmatprep.subr.mxu0 0.0
    %2107 = vmatpush1.msra.mxu0 0.0
    %2108 = vmatprep.subr.mxu0 0.0
    %2109 = vmatpush1.msra.mxu0 0.0
    %2110 = vmatprep.subr.mxu0 0.0
    %2111 = vmatpush1.msra.mxu0 0.0
    %2112 = vmatprep.subr.mxu0 0.0
    %2113 = vmatpush1.msra.mxu0 0.0
    %2114 = vmatprep.subr.mxu0 0.0
    %2115 = vmatpush1.msra.mxu0 0.0
    %2116 = vmatprep.subr.mxu0 0.0
    %2117 = vmatpush1.msra.mxu0 0.0
    %2118 = vmatprep.subr.mxu0 0.0
    %2119 = vmatpush1.msra.mxu0 0.0
    %2120 = vmatprep.subr.mxu0 0.0
    %2121 = vmatpush1.msra.mxu0 0.0
    %2122 = vmatprep.subr.mxu0 0.0
    %2123 = vmatpush1.msra.mxu0 0.0
    %2124 = vmatprep.subr.mxu0 0.0
    %2125 = vmatpush1.msra.mxu0 0.0
    %2126 = vmatprep.subr.mxu0 0.0
    %2127 = vmatpush1.msra.mxu0 0.0
    %2128 = vmatprep.subr.mxu0 0.0
    %2129 = vmatpush1.msra.mxu0 0.0
    %2130 = vmatprep.subr.mxu0 0.0
    %2131 = vmatpush1.msra.mxu0 0.0
    %2132 = vmatprep.subr.mxu0 0.0
    %2133 = vmatpush1.msra.mxu0 0.0
    %2134 = vmatprep.subr.mxu0 0.0
    %2135 = vmatpush1.msra.mxu0 0.0
    %2136 = vmatprep.subr.mxu0 0.0
    %2137 = vmatpush1.msra.mxu0 0.0
    %2138 = vmatprep.subr.mxu0 0.0
    %2139 = vmatpush1.msra.mxu0 0.0
    %2140 = vmatprep.subr.mxu0 0.0
    %2141 = vmatpush1.msra.mxu0 0.0
    %2142 = vmatprep.subr.mxu0 0.0
    %2143 = vmatpush1.msra.mxu0 0.0
    %2144 = vmatprep.subr.mxu0 0.0
    %2145 = vmatpush1.msra.mxu0 0.0
    %2146 = vmatprep.subr.mxu0 0.0
    %2147 = vmatpush1.msra.mxu0 0.0
    %2148 = vmatprep.subr.mxu0 0.0
    %2149 = vmatpush1.msra.mxu0 0.0
    %2150 = vmatprep.subr.mxu0 0.0
    %2151 = vmatpush1.msra.mxu0 0.0
    %2152 = vmatprep.subr.mxu0 0.0
    %2153 = vmatpush1.msra.mxu0 0.0
    %2154 = vmatprep.subr.mxu0 0.0
    %2155 = vmatpush1.msra.mxu0 0.0
    %2156 = vmatprep.subr.mxu0 0.0
    %2157 = vmatpush1.msra.mxu0 0.0
    %2158 = vmatprep.subr.mxu0 0.0
    %2159 = vmatpush1.msra.mxu0 0.0
    %2160 = vmatprep.subr.mxu0 0.0
    %2161 = vmatpush1.msra.mxu0 0.0
    %2162 = vmatprep.subr.mxu0 0.0
    %2163 = vmatpush1.msra.mxu0 0.0
    %2164 = vmatprep.mubr.f32.mxu0 0.0
    %2165 = vmatmul.mubr.f32.gmra.mrb[0].mxu0 %v2095
    %v2166 = vpop.f32.mrb[0].mxu0
    %v2167 = vadd.f32 0.0, %v2166
    %v2168 = vpop.f32.mrb[0].mxu0
    %2169 = vdwg.mxu0
    %v2170 = vadd.f32 %v2089, %v2167
    %v2171 = vld [vmem:[#allocation16] sm:$0x1]
    %v2172 = vlaneseq
    %v2173 = vshrl.u32 %v2172, 7
    %v2174 = vsub.s32 0, %v2173
    %v2175 = vrot.slane %v2171, %v2174
    %v2176 = vadd.f32 %v2170, %v2175
    %v2177 = vsel %vm545, %v2176, 0.0
    %v2178 = vrot.slane %v2177, 4
    %v2179 = vadd.f32 %v2177, %v2178
    %v2180 = vrot.slane %v2179, 2
    %v2181 = vadd.f32 %v2179, %v2180
    %v2182 = vrot.slane %v2181, 1
    %v2183 = vadd.f32 %v2181, %v2182
    %v2184 = vmul.f32 %v2176, %v2176
    %v2185 = vsel %vm545, %v2184, 0.0
    %v2186 = vrot.slane %v2185, 4
    %v2187 = vadd.f32 %v2185, %v2186
    %v2188 = vrot.slane %v2187, 2
    %v2189 = vadd.f32 %v2187, %v2188
    %v2190 = vrot.slane %v2189, 1
    %v2191 = vadd.f32 %v2189, %v2190
    %v2192 = vsel %vm1567, %v2183, %v2191
    %v2193 = vld [vmem:[#allocation17] sm:$0xff]
    %v2194 = vld [vmem:[#allocation17 + $0x8] sm:$0xff]
    %v2195 = vld [vmem:[#allocation17 + $0x10] sm:$0xff]
    %v2196 = vld [vmem:[#allocation17 + $0x18] sm:$0xff]
    %v2197 = vld [vmem:[#allocation17 + $0x20] sm:$0xff]
    %v2198 = vld [vmem:[#allocation17 + $0x28] sm:$0xff]
    %v2199 = vld [vmem:[#allocation17 + $0x30] sm:$0xff]
    %v2200 = vld [vmem:[#allocation17 + $0x38] sm:$0xff]
    %v2201 = vld [vmem:[#allocation17 + $0x40] sm:$0xff]
    %v2202 = vld [vmem:[#allocation17 + $0x48] sm:$0xff]
    %v2203 = vld [vmem:[#allocation17 + $0x50] sm:$0xff]
    %v2204 = vld [vmem:[#allocation17 + $0x58] sm:$0xff]
    %v2205 = vld [vmem:[#allocation17 + $0x60] sm:$0xff]
    %v2206 = vld [vmem:[#allocation17 + $0x68] sm:$0xff]
    %v2207 = vld [vmem:[#allocation17 + $0x70] sm:$0xff]
    %v2208 = vld [vmem:[#allocation17 + $0x78] sm:$0xff]
    %2209 = vmatprep.subr.mxu0 0.0
    %2210 = vmatpush1.msra.mxu0 %v2193
    %2211 = vmatprep.subr.mxu0 0.0
    %2212 = vmatpush1.msra.mxu0 %v2194
    %2213 = vmatprep.subr.mxu0 0.0
    %2214 = vmatpush1.msra.mxu0 %v2195
    %2215 = vmatprep.subr.mxu0 0.0
    %2216 = vmatpush1.msra.mxu0 %v2196
    %2217 = vmatprep.subr.mxu0 0.0
    %2218 = vmatpush1.msra.mxu0 %v2197
    %2219 = vmatprep.subr.mxu0 0.0
    %2220 = vmatpush1.msra.mxu0 %v2198
    %2221 = vmatprep.subr.mxu0 0.0
    %2222 = vmatpush1.msra.mxu0 %v2199
    %2223 = vmatprep.subr.mxu0 0.0
    %2224 = vmatpush1.msra.mxu0 %v2200
    %2225 = vmatprep.subr.mxu0 0.0
    %2226 = vmatpush1.msra.mxu0 %v2201
    %2227 = vmatprep.subr.mxu0 0.0
    %2228 = vmatpush1.msra.mxu0 %v2202
    %2229 = vmatprep.subr.mxu0 0.0
    %2230 = vmatpush1.msra.mxu0 %v2203
    %2231 = vmatprep.subr.mxu0 0.0
    %2232 = vmatpush1.msra.mxu0 %v2204
    %2233 = vmatprep.subr.mxu0 0.0
    %2234 = vmatpush1.msra.mxu0 %v2205
    %2235 = vmatprep.subr.mxu0 0.0
    %2236 = vmatpush1.msra.mxu0 %v2206
    %2237 = vmatprep.subr.mxu0 0.0
    %2238 = vmatpush1.msra.mxu0 %v2207
    %2239 = vmatprep.subr.mxu0 0.0
    %2240 = vmatpush1.msra.mxu0 %v2208
    %2241 = vmatprep.subr.mxu0 0.0
    %2242 = vmatpush1.msra.mxu0 0.0
    %2243 = vmatprep.subr.mxu0 0.0
    %2244 = vmatpush1.msra.mxu0 0.0
    %2245 = vmatprep.subr.mxu0 0.0
    %2246 = vmatpush1.msra.mxu0 0.0
    %2247 = vmatprep.subr.mxu0 0.0
    %2248 = vmatpush1.msra.mxu0 0.0
    %2249 = vmatprep.subr.mxu0 0.0
    %2250 = vmatpush1.msra.mxu0 0.0
    %2251 = vmatprep.subr.mxu0 0.0
    %2252 = vmatpush1.msra.mxu0 0.0
    %2253 = vmatprep.subr.mxu0 0.0
    %2254 = vmatpush1.msra.mxu0 0.0
    %2255 = vmatprep.subr.mxu0 0.0
    %2256 = vmatpush1.msra.mxu0 0.0
    %2257 = vmatprep.subr.mxu0 0.0
    %2258 = vmatpush1.msra.mxu0 0.0
    %2259 = vmatprep.subr.mxu0 0.0
    %2260 = vmatpush1.msra.mxu0 0.0
    %2261 = vmatprep.subr.mxu0 0.0
    %2262 = vmatpush1.msra.mxu0 0.0
    %2263 = vmatprep.subr.mxu0 0.0
    %2264 = vmatpush1.msra.mxu0 0.0
    %2265 = vmatprep.subr.mxu0 0.0
    %2266 = vmatpush1.msra.mxu0 0.0
    %2267 = vmatprep.subr.mxu0 0.0
    %2268 = vmatpush1.msra.mxu0 0.0
    %2269 = vmatprep.subr.mxu0 0.0
    %2270 = vmatpush1.msra.mxu0 0.0
    %2271 = vmatprep.subr.mxu0 0.0
    %2272 = vmatpush1.msra.mxu0 0.0
    %2273 = vmatprep.mubr.f32.mxu0 0.0
    %2274 = vmatmul.mubr.f32.gmra.mrb[0].mxu0 %v2192
    %v2275 = vpop.f32.mrb[0].mxu0
    %v2276 = vadd.f32 0.0, %v2275
    %v2277 = vpop.f32.mrb[0].mxu0
    %2278 = vdwg.mxu0
    %v2279 = vmul.f32 %v2276, %v2276
    %v2281 = vrot.slane %v2279, 7
    %v2283 = vsub.f32 %v2276, %v2281
    %v2284 = vmax.f32 %v2283, 0.0
    %v2285 = vlaneseq
    %v2286 = vshrl.u32 %v2285, 7
    %v2287 = vsub.s32 0, %v2286
    %v2288 = vrot.slane %v2276, %v2287
    %v2289 = vsub.f32 %v2176, %v2288
    %v2290 = vadd.f32 %v2284, 1e-05
    %v2291 = vrsqrt.pop %v2290
    %v2292 = vlaneseq
    %v2293 = vshrl.u32 %v2292, 7
    %v2294 = vsub.s32 1, %v2293
    %v2295 = vrot.slane %v2291, %v2294
    %v2296 = vmul.f32 %v2289, %v2295
    %v2297 = vld [vmem:[#allocation16 + $0x1] sm:$0x1]
    %v2298 = vlaneseq
    %v2299 = vshrl.u32 %v2298, 7
    %v2300 = vsub.s32 0, %v2299
    %v2301 = vrot.slane %v2297, %v2300
    %v2302 = vmul.f32 %v2296, %v2301
    %v2303 = vld [vmem:[#allocation16 + $0x2] sm:$0x1]
    %v2304 = vlaneseq
    %v2305 = vshrl.u32 %v2304, 7
    %v2306 = vsub.s32 0, %v2305
    %v2307 = vrot.slane %v2303, %v2306
    %v2308 = vadd.f32 %v2302, %v2307
    %v2309 = vmax.f32 %v2308, 0.0
    %v2310 = vpack.c.bf16 %v2309, %v2309
    %v2311 = vld [vmem:[%s29] sm:$0xff]
    %v2312 = vld [vmem:[%s29 + $0x8] sm:$0xf]
    %v2313 = vld [vmem:[%s29 + $0xc] sm:$0xff]
    %v2314 = vld [vmem:[%s29 + $0x14] sm:$0xf]
    %v2315 = vld [vmem:[%s29 + $0x18] sm:$0xff]
    %v2316 = vld [vmem:[%s29 + $0x20] sm:$0xf]
    %v2317 = vld [vmem:[%s29 + $0x24] sm:$0xff]
    %v2318 = vld [vmem:[%s29 + $0x2c] sm:$0xf]
    %v2319 = vld [vmem:[%s29 + $0x30] sm:$0xff]
    %v2320 = vld [vmem:[%s29 + $0x38] sm:$0xf]
    %v2321 = vld [vmem:[%s29 + $0x3c] sm:$0xff]
    %v2322 = vld [vmem:[%s29 + $0x44] sm:$0xf]
    %v2323 = vld [vmem:[%s29 + $0x48] sm:$0xff]
    %v2324 = vld [vmem:[%s29 + $0x50] sm:$0xf]
    %v2325 = vld [vmem:[%s29 + $0x54] sm:$0xff]
    %v2326 = vld [vmem:[%s29 + $0x5c] sm:$0xf]
    %v2327 = vld [vmem:[%s29 + $0x60] sm:$0xff]
    %v2328 = vld [vmem:[%s29 + $0x68] sm:$0xf]
    %v2329 = vld [vmem:[%s29 + $0x6c] sm:$0xff]
    %v2330 = vld [vmem:[%s29 + $0x74] sm:$0xf]
    %v2331 = vld [vmem:[%s29 + $0x78] sm:$0xff]
    %v2332 = vld [vmem:[%s29 + $0x80] sm:$0xf]
    %v2333 = vld [vmem:[%s29 + $0x84] sm:$0xff]
    %v2334 = vld [vmem:[%s29 + $0x8c] sm:$0xf]
    %v2335 = vld [vmem:[%s29 + $0x90] sm:$0xff]
    %v2336 = vld [vmem:[%s29 + $0x98] sm:$0xf]
    %v2337 = vld [vmem:[%s29 + $0x9c] sm:$0xff]
    %v2338 = vld [vmem:[%s29 + $0xa4] sm:$0xf]
    %v2339 = vld [vmem:[%s29 + $0xa8] sm:$0xff]
    %v2340 = vld [vmem:[%s29 + $0xb0] sm:$0xf]
    %v2341 = vld [vmem:[%s29 + $0xb4] sm:$0xff]
    %v2342 = vld [vmem:[%s29 + $0xbc] sm:$0xf]
    %v2375 = vunpack.c.l.b16 %v2311
    %v2376 = vunpack.c.h.b16 %v2311
    %v2377 = vunpack.c.l.b16 %v2312
    %v2378 = vunpack.c.l.b16 %v2313
    %v2379 = vunpack.c.h.b16 %v2313
    %v2380 = vunpack.c.l.b16 %v2314
    %v2381 = vunpack.c.l.b16 %v2315
    %v2382 = vunpack.c.h.b16 %v2315
    %v2383 = vunpack.c.l.b16 %v2316
    %v2384 = vunpack.c.l.b16 %v2317
    %v2385 = vunpack.c.h.b16 %v2317
    %v2386 = vunpack.c.l.b16 %v2318
    %v2387 = vunpack.c.l.b16 %v2319
    %v2388 = vunpack.c.h.b16 %v2319
    %v2389 = vunpack.c.l.b16 %v2320
    %v2390 = vunpack.c.l.b16 %v2321
    %v2391 = vunpack.c.h.b16 %v2321
    %v2392 = vunpack.c.l.b16 %v2322
    %v2393 = vunpack.c.l.b16 %v2323
    %v2394 = vunpack.c.h.b16 %v2323
    %v2395 = vunpack.c.l.b16 %v2324
    %v2396 = vunpack.c.l.b16 %v2325
    %v2397 = vunpack.c.h.b16 %v2325
    %v2398 = vunpack.c.l.b16 %v2326
    %v2399 = vunpack.c.l.b16 %v2327
    %v2400 = vunpack.c.h.b16 %v2327
    %v2401 = vunpack.c.l.b16 %v2328
    %v2402 = vunpack.c.l.b16 %v2329
    %v2403 = vunpack.c.h.b16 %v2329
    %v2404 = vunpack.c.l.b16 %v2330
    %v2405 = vunpack.c.l.b16 %v2331
    %v2406 = vunpack.c.h.b16 %v2331
    %v2407 = vunpack.c.l.b16 %v2332
    %v2408 = vunpack.c.l.b16 %v2333
    %v2409 = vunpack.c.h.b16 %v2333
    %v2410 = vunpack.c.l.b16 %v2334
    %v2411 = vunpack.c.l.b16 %v2335
    %v2412 = vunpack.c.h.b16 %v2335
    %v2413 = vunpack.c.l.b16 %v2336
    %v2414 = vunpack.c.l.b16 %v2337
    %v2415 = vunpack.c.h.b16 %v2337
    %v2416 = vunpack.c.l.b16 %v2338
    %v2417 = vunpack.c.l.b16 %v2339
    %v2418 = vunpack.c.h.b16 %v2339
    %v2419 = vunpack.c.l.b16 %v2340
    %v2420 = vunpack.c.l.b16 %v2341
    %v2421 = vunpack.c.h.b16 %v2341
    %v2422 = vunpack.c.l.b16 %v2342
    %v2423 = vpack.c.b16 %v2378, %v2375
    %v2424 = vpack.c.b16 %v2379, %v2376
    %v2425 = vpack.c.b16 %v2380, %v2377
    %v2426 = vpack.c.b16 %v2384, %v2381
    %v2427 = vpack.c.b16 %v2385, %v2382
    %v2428 = vpack.c.b16 %v2386, %v2383
    %v2429 = vpack.c.b16 %v2390, %v2387
    %v2430 = vpack.c.b16 %v2391, %v2388
    %v2431 = vpack.c.b16 %v2392, %v2389
    %v2432 = vpack.c.b16 %v2396, %v2393
    %v2433 = vpack.c.b16 %v2397, %v2394
    %v2434 = vpack.c.b16 %v2398, %v2395
    %v2435 = vpack.c.b16 %v2402, %v2399
    %v2436 = vpack.c.b16 %v2403, %v2400
    %v2437 = vpack.c.b16 %v2404, %v2401
    %v2438 = vpack.c.b16 %v2408, %v2405
    %v2439 = vpack.c.b16 %v2409, %v2406
    %v2440 = vpack.c.b16 %v2410, %v2407
    %v2441 = vpack.c.b16 %v2414, %v2411
    %v2442 = vpack.c.b16 %v2415, %v2412
    %v2443 = vpack.c.b16 %v2416, %v2413
    %v2444 = vpack.c.b16 %v2420, %v2417
    %v2445 = vpack.c.b16 %v2421, %v2418
    %v2446 = vpack.c.b16 %v2422, %v2419
    %2471 = vmatprep.subr.bf16.mxu0 %v2424
    %2472 = vmatpush1.bf16.msra.mxu0 %v2423
    %2473 = vmatprep.subr.bf16.mxu0 %v2427
    %2474 = vmatpush1.bf16.msra.mxu0 %v2426
    %2475 = vmatprep.subr.bf16.mxu0 %v2430
    %2476 = vmatpush1.bf16.msra.mxu0 %v2429
    %2477 = vmatprep.subr.bf16.mxu0 %v2433
    %2478 = vmatpush1.bf16.msra.mxu0 %v2432
    %2479 = vmatprep.subr.bf16.mxu0 %v2436
    %2480 = vmatpush1.bf16.msra.mxu0 %v2435
    %2481 = vmatprep.subr.bf16.mxu0 %v2439
    %2482 = vmatpush1.bf16.msra.mxu0 %v2438
    %2483 = vmatprep.subr.bf16.mxu0 %v2442
    %2484 = vmatpush1.bf16.msra.mxu0 %v2441
    %2485 = vmatprep.subr.bf16.mxu0 %v2445
    %2486 = vmatpush1.bf16.msra.mxu0 %v2444
    %2487 = vmatprep.subr.bf16.mxu0 0
    %2488 = vmatpush1.bf16.msra.mxu0 0
    %2489 = vmatprep.subr.bf16.mxu0 0
    %2490 = vmatpush1.bf16.msra.mxu0 0
    %2491 = vmatprep.subr.bf16.mxu0 0
    %2492 = vmatpush1.bf16.msra.mxu0 0
    %2493 = vmatprep.subr.bf16.mxu0 0
    %2494 = vmatpush1.bf16.msra.mxu0 0
    %2495 = vmatprep.subr.bf16.mxu0 0
    %2496 = vmatpush1.bf16.msra.mxu0 0
    %2497 = vmatprep.subr.bf16.mxu0 0
    %2498 = vmatpush1.bf16.msra.mxu0 0
    %2499 = vmatprep.subr.bf16.mxu0 0
    %2500 = vmatpush1.bf16.msra.mxu0 0
    %2501 = vmatprep.subr.bf16.mxu0 0
    %2502 = vmatpush1.bf16.msra.mxu0 0
    %2503 = vmatprep.mubr.bf16.mxu0 0
    %2504 = vmatmul.mubr.bf16.gmra.mrb[0].mxu0 %v2310
    %v2505 = vpop.f32.mrb[0].mxu0
    %v2506 = vadd.f32 0.0, %v2505
    %v2507 = vpop.f32.mrb[0].mxu0
    %v2508 = vadd.f32 0.0, %v2507
    %v2509 = vpop.f32.mrb[0].mxu0
    %v2510 = vpop.f32.mrb[0].mxu0
    %2511 = vdwg.mxu0
    %2512 = vmatprep.subr.bf16.mxu0 0
    %2513 = vmatpush1.bf16.msra.mxu0 %v2425
    %2514 = vmatprep.subr.bf16.mxu0 0
    %2515 = vmatpush1.bf16.msra.mxu0 %v2428
    %2516 = vmatprep.subr.bf16.mxu0 0
    %2517 = vmatpush1.bf16.msra.mxu0 %v2431
    %2518 = vmatprep.subr.bf16.mxu0 0
    %2519 = vmatpush1.bf16.msra.mxu0 %v2434
    %2520 = vmatprep.subr.bf16.mxu0 0
    %2521 = vmatpush1.bf16.msra.mxu0 %v2437
    %2522 = vmatprep.subr.bf16.mxu0 0
    %2523 = vmatpush1.bf16.msra.mxu0 %v2440
    %2524 = vmatprep.subr.bf16.mxu0 0
    %2525 = vmatpush1.bf16.msra.mxu0 %v2443
    %2526 = vmatprep.subr.bf16.mxu0 0
    %2527 = vmatpush1.bf16.msra.mxu0 %v2446
    %2528 = vmatprep.subr.bf16.mxu0 0
    %2529 = vmatpush1.bf16.msra.mxu0 0
    %2530 = vmatprep.subr.bf16.mxu0 0
    %2531 = vmatpush1.bf16.msra.mxu0 0
    %2532 = vmatprep.subr.bf16.mxu0 0
    %2533 = vmatpush1.bf16.msra.mxu0 0
    %2534 = vmatprep.subr.bf16.mxu0 0
    %2535 = vmatpush1.bf16.msra.mxu0 0
    %2536 = vmatprep.subr.bf16.mxu0 0
    %2537 = vmatpush1.bf16.msra.mxu0 0
    %2538 = vmatprep.subr.bf16.mxu0 0
    %2539 = vmatpush1.bf16.msra.mxu0 0
    %2540 = vmatprep.subr.bf16.mxu0 0
    %2541 = vmatpush1.bf16.msra.mxu0 0
    %2542 = vmatprep.subr.bf16.mxu0 0
    %2543 = vmatpush1.bf16.msra.mxu0 0
    %2544 = vmatprep.mubr.bf16.mxu0 0
    %2545 = vmatmul.mubr.bf16.gmra.mrb[0].mxu0 %v2310
    %v2546 = vpop.f32.mrb[0].mxu0
    %v2547 = vadd.f32 0.0, %v2546
    %v2548 = vpop.f32.mrb[0].mxu0
    %v2549 = vpop.f32.mrb[0].mxu0
    %v2550 = vpop.f32.mrb[0].mxu0
    %2551 = vdwg.mxu0
    %v2552 = vld [vmem:[#allocation19] sm:$0x3]
    %s2553 = scalar_lea.vmem [#allocation19], 2
    %v2554 = vld [vmem:[%s2553] sm:$0x3]
    %vm2555 = vcmask 48128
    %v2557 = vsel %vm2555, %v2554, 0
    %v2560 = vsel %vm545, %v2508, 0
    %2562 = vmatprep.subr.mxu0 0.0
    %2563 = vmatpush1.msra.mxu0 %v2560
    %2564 = vmatprep.subr.mxu0 0.0
    %2565 = vmatpush1.msra.mxu0 0.0
    %2566 = vmatprep.subr.mxu0 0.0
    %2567 = vmatpush1.msra.mxu0 0.0
    %2568 = vmatprep.subr.mxu0 0.0
    %2569 = vmatpush1.msra.mxu0 0.0
    %2570 = vmatprep.subr.mxu0 0.0
    %2571 = vmatpush1.msra.mxu0 0.0
    %2572 = vmatprep.subr.mxu0 0.0
    %2573 = vmatpush1.msra.mxu0 0.0
    %2574 = vmatprep.subr.mxu0 0.0
    %2575 = vmatpush1.msra.mxu0 0.0
    %2576 = vmatprep.subr.mxu0 0.0
    %2577 = vmatpush1.msra.mxu0 0.0
    %2578 = vmatprep.subr.mxu0 0.0
    %2579 = vmatpush1.msra.mxu0 0.0
    %2580 = vmatprep.subr.mxu0 0.0
    %2581 = vmatpush1.msra.mxu0 0.0
    %2582 = vmatprep.subr.mxu0 0.0
    %2583 = vmatpush1.msra.mxu0 0.0
    %2584 = vmatprep.subr.mxu0 0.0
    %2585 = vmatpush1.msra.mxu0 0.0
    %2586 = vmatprep.subr.mxu0 0.0
    %2587 = vmatpush1.msra.mxu0 0.0
    %2588 = vmatprep.subr.mxu0 0.0
    %2589 = vmatpush1.msra.mxu0 0.0
    %2590 = vmatprep.subr.mxu0 0.0
    %2591 = vmatpush1.msra.mxu0 0.0
    %2592 = vmatprep.subr.mxu0 0.0
    %2593 = vmatpush1.msra.mxu0 0.0
    %2594 = vmatprep.subr.mxu0 0.0
    %2595 = vmatpush1.msra.mxu0 0.0
    %2596 = vmatprep.subr.mxu0 0.0
    %2597 = vmatpush1.msra.mxu0 0.0
    %2598 = vmatprep.subr.mxu0 0.0
    %2599 = vmatpush1.msra.mxu0 0.0
    %2600 = vmatprep.subr.mxu0 0.0
    %2601 = vmatpush1.msra.mxu0 0.0
    %2602 = vmatprep.subr.mxu0 0.0
    %2603 = vmatpush1.msra.mxu0 0.0
    %2604 = vmatprep.subr.mxu0 0.0
    %2605 = vmatpush1.msra.mxu0 0.0
    %2606 = vmatprep.subr.mxu0 0.0
    %2607 = vmatpush1.msra.mxu0 0.0
    %2608 = vmatprep.subr.mxu0 0.0
    %2609 = vmatpush1.msra.mxu0 0.0
    %2610 = vmatprep.subr.mxu0 0.0
    %2611 = vmatpush1.msra.mxu0 0.0
    %2612 = vmatprep.subr.mxu0 0.0
    %2613 = vmatpush1.msra.mxu0 0.0
    %2614 = vmatprep.subr.mxu0 0.0
    %2615 = vmatpush1.msra.mxu0 0.0
    %2616 = vmatprep.subr.mxu0 0.0
    %2617 = vmatpush1.msra.mxu0 0.0
    %2618 = vmatprep.subr.mxu0 0.0
    %2619 = vmatpush1.msra.mxu0 0.0
    %2620 = vmatprep.subr.mxu0 0.0
    %2621 = vmatpush1.msra.mxu0 0.0
    %2622 = vmatprep.subr.mxu0 0.0
    %2623 = vmatpush1.msra.mxu0 0.0
    %2624 = vmatprep.subr.mxu0 0.0
    %2625 = vmatpush1.msra.mxu0 0.0
    %2626 = vmatprep.mubr.f32.mxu0 0.0
    %2627 = vmatmul.mubr.f32.gmra.mrb[0].mxu0 %v2557
    %v2628 = vpop.f32.mrb[0].mxu0
    %v2629 = vadd.f32 0.0, %v2628
    %v2630 = vpop.f32.mrb[0].mxu0
    %2631 = vdwg.mxu0
    %v2633 = vsel %vm2555, %v2552, 0
    %v2636 = vsel %vm545, %v2506, 0
    %2638 = vmatprep.subr.mxu0 0.0
    %2639 = vmatpush1.msra.mxu0 %v2636
    %2640 = vmatprep.subr.mxu0 0.0
    %2641 = vmatpush1.msra.mxu0 0.0
    %2642 = vmatprep.subr.mxu0 0.0
    %2643 = vmatpush1.msra.mxu0 0.0
    %2644 = vmatprep.subr.mxu0 0.0
    %2645 = vmatpush1.msra.mxu0 0.0
    %2646 = vmatprep.subr.mxu0 0.0
    %2647 = vmatpush1.msra.mxu0 0.0
    %2648 = vmatprep.subr.mxu0 0.0
    %2649 = vmatpush1.msra.mxu0 0.0
    %2650 = vmatprep.subr.mxu0 0.0
    %2651 = vmatpush1.msra.mxu0 0.0
    %2652 = vmatprep.subr.mxu0 0.0
    %2653 = vmatpush1.msra.mxu0 0.0
    %2654 = vmatprep.subr.mxu0 0.0
    %2655 = vmatpush1.msra.mxu0 0.0
    %2656 = vmatprep.subr.mxu0 0.0
    %2657 = vmatpush1.msra.mxu0 0.0
    %2658 = vmatprep.subr.mxu0 0.0
    %2659 = vmatpush1.msra.mxu0 0.0
    %2660 = vmatprep.subr.mxu0 0.0
    %2661 = vmatpush1.msra.mxu0 0.0
    %2662 = vmatprep.subr.mxu0 0.0
    %2663 = vmatpush1.msra.mxu0 0.0
    %2664 = vmatprep.subr.mxu0 0.0
    %2665 = vmatpush1.msra.mxu0 0.0
    %2666 = vmatprep.subr.mxu0 0.0
    %2667 = vmatpush1.msra.mxu0 0.0
    %2668 = vmatprep.subr.mxu0 0.0
    %2669 = vmatpush1.msra.mxu0 0.0
    %2670 = vmatprep.subr.mxu0 0.0
    %2671 = vmatpush1.msra.mxu0 0.0
    %2672 = vmatprep.subr.mxu0 0.0
    %2673 = vmatpush1.msra.mxu0 0.0
    %2674 = vmatprep.subr.mxu0 0.0
    %2675 = vmatpush1.msra.mxu0 0.0
    %2676 = vmatprep.subr.mxu0 0.0
    %2677 = vmatpush1.msra.mxu0 0.0
    %2678 = vmatprep.subr.mxu0 0.0
    %2679 = vmatpush1.msra.mxu0 0.0
    %2680 = vmatprep.subr.mxu0 0.0
    %2681 = vmatpush1.msra.mxu0 0.0
    %2682 = vmatprep.subr.mxu0 0.0
    %2683 = vmatpush1.msra.mxu0 0.0
    %2684 = vmatprep.subr.mxu0 0.0
    %2685 = vmatpush1.msra.mxu0 0.0
    %2686 = vmatprep.subr.mxu0 0.0
    %2687 = vmatpush1.msra.mxu0 0.0
    %2688 = vmatprep.subr.mxu0 0.0
    %2689 = vmatpush1.msra.mxu0 0.0
    %2690 = vmatprep.subr.mxu0 0.0
    %2691 = vmatpush1.msra.mxu0 0.0
    %2692 = vmatprep.subr.mxu0 0.0
    %2693 = vmatpush1.msra.mxu0 0.0
    %2694 = vmatprep.subr.mxu0 0.0
    %2695 = vmatpush1.msra.mxu0 0.0
    %2696 = vmatprep.subr.mxu0 0.0
    %2697 = vmatpush1.msra.mxu0 0.0
    %2698 = vmatprep.subr.mxu0 0.0
    %2699 = vmatpush1.msra.mxu0 0.0
    %2700 = vmatprep.subr.mxu0 0.0
    %2701 = vmatpush1.msra.mxu0 0.0
    %2702 = vmatprep.mubr.f32.mxu0 0.0
    %2703 = vmatmul.mubr.f32.gmra.mrb[0].mxu0 %v2633
    %v2704 = vpop.f32.mrb[0].mxu0
    %v2705 = vadd.f32 %v2629, %v2704
    %v2706 = vpop.f32.mrb[0].mxu0
    %2707 = vdwg.mxu0
    %s2708 = scalar_lea.vmem [#allocation19], 4
    %v2709 = vld [vmem:[%s2708] sm:$0x3]
    %v2711 = vsel %vm2555, %v2709, 0
    %v2714 = vsel %vm545, %v2547, 0
    %2716 = vmatprep.subr.mxu0 0.0
    %2717 = vmatpush1.msra.mxu0 %v2714
    %2718 = vmatprep.subr.mxu0 0.0
    %2719 = vmatpush1.msra.mxu0 0.0
    %2720 = vmatprep.subr.mxu0 0.0
    %2721 = vmatpush1.msra.mxu0 0.0
    %2722 = vmatprep.subr.mxu0 0.0
    %2723 = vmatpush1.msra.mxu0 0.0
    %2724 = vmatprep.subr.mxu0 0.0
    %2725 = vmatpush1.msra.mxu0 0.0
    %2726 = vmatprep.subr.mxu0 0.0
    %2727 = vmatpush1.msra.mxu0 0.0
    %2728 = vmatprep.subr.mxu0 0.0
    %2729 = vmatpush1.msra.mxu0 0.0
    %2730 = vmatprep.subr.mxu0 0.0
    %2731 = vmatpush1.msra.mxu0 0.0
    %2732 = vmatprep.subr.mxu0 0.0
    %2733 = vmatpush1.msra.mxu0 0.0
    %2734 = vmatprep.subr.mxu0 0.0
    %2735 = vmatpush1.msra.mxu0 0.0
    %2736 = vmatprep.subr.mxu0 0.0
    %2737 = vmatpush1.msra.mxu0 0.0
    %2738 = vmatprep.subr.mxu0 0.0
    %2739 = vmatpush1.msra.mxu0 0.0
    %2740 = vmatprep.subr.mxu0 0.0
    %2741 = vmatpush1.msra.mxu0 0.0
    %2742 = vmatprep.subr.mxu0 0.0
    %2743 = vmatpush1.msra.mxu0 0.0
    %2744 = vmatprep.subr.mxu0 0.0
    %2745 = vmatpush1.msra.mxu0 0.0
    %2746 = vmatprep.subr.mxu0 0.0
    %2747 = vmatpush1.msra.mxu0 0.0
    %2748 = vmatprep.subr.mxu0 0.0
    %2749 = vmatpush1.msra.mxu0 0.0
    %2750 = vmatprep.subr.mxu0 0.0
    %2751 = vmatpush1.msra.mxu0 0.0
    %2752 = vmatprep.subr.mxu0 0.0
    %2753 = vmatpush1.msra.mxu0 0.0
    %2754 = vmatprep.subr.mxu0 0.0
    %2755 = vmatpush1.msra.mxu0 0.0
    %2756 = vmatprep.subr.mxu0 0.0
    %2757 = vmatpush1.msra.mxu0 0.0
    %2758 = vmatprep.subr.mxu0 0.0
    %2759 = vmatpush1.msra.mxu0 0.0
    %2760 = vmatprep.subr.mxu0 0.0
    %2761 = vmatpush1.msra.mxu0 0.0
    %2762 = vmatprep.subr.mxu0 0.0
    %2763 = vmatpush1.msra.mxu0 0.0
    %2764 = vmatprep.subr.mxu0 0.0
    %2765 = vmatpush1.msra.mxu0 0.0
    %2766 = vmatprep.subr.mxu0 0.0
    %2767 = vmatpush1.msra.mxu0 0.0
    %2768 = vmatprep.subr.mxu0 0.0
    %2769 = vmatpush1.msra.mxu0 0.0
    %2770 = vmatprep.subr.mxu0 0.0
    %2771 = vmatpush1.msra.mxu0 0.0
    %2772 = vmatprep.subr.mxu0 0.0
    %2773 = vmatpush1.msra.mxu0 0.0
    %2774 = vmatprep.subr.mxu0 0.0
    %2775 = vmatpush1.msra.mxu0 0.0
    %2776 = vmatprep.subr.mxu0 0.0
    %2777 = vmatpush1.msra.mxu0 0.0
    %2778 = vmatprep.subr.mxu0 0.0
    %2779 = vmatpush1.msra.mxu0 0.0
    %2780 = vmatprep.mubr.f32.mxu0 0.0
    %2781 = vmatmul.mubr.f32.gmra.mrb[0].mxu0 %v2711
    %v2782 = vpop.f32.mrb[0].mxu0
    %v2783 = vadd.f32 0.0, %v2782
    %v2784 = vpop.f32.mrb[0].mxu0
    %2785 = vdwg.mxu0
    %v2786 = vadd.f32 %v2705, %v2783
    %v2787 = vld [vmem:[%s31] sm:$0x1]
    %v2789 = vlaneseq
    %v2790 = vshrl.u32 %v2789, 7
    %v2791 = vsub.s32 0, %v2790
    %v2792 = vrot.slane %v2787, %v2791
    %v2794 = vadd.f32 %v2786, %v2792
    %v2795 = vmax.f32 %v2794, 0.0
    %v2796 = vpack.c.bf16 %v2795, %v2795
    %v2797 = vld [vmem:[%s33] sm:$0xf]
    %v2798 = vld [vmem:[%s33 + $0x4] sm:$0xf]
    %v2799 = vld [vmem:[%s33 + $0x8] sm:$0xf]
    %v2800 = vld [vmem:[%s33 + $0xc] sm:$0xf]
    %v2801 = vld [vmem:[%s33 + $0x10] sm:$0xf]
    %v2802 = vld [vmem:[%s33 + $0x14] sm:$0xf]
    %v2803 = vld [vmem:[%s33 + $0x18] sm:$0xf]
    %v2804 = vld [vmem:[%s33 + $0x1c] sm:$0xf]
    %v2805 = vld [vmem:[%s33 + $0x20] sm:$0xf]
    %v2806 = vld [vmem:[%s33 + $0x24] sm:$0xf]
    %v2807 = vld [vmem:[%s33 + $0x28] sm:$0xf]
    %v2808 = vld [vmem:[%s33 + $0x2c] sm:$0xf]
    %v2809 = vld [vmem:[%s33 + $0x30] sm:$0xf]
    %v2810 = vld [vmem:[%s33 + $0x34] sm:$0xf]
    %v2811 = vld [vmem:[%s33 + $0x38] sm:$0xf]
    %v2812 = vld [vmem:[%s33 + $0x3c] sm:$0xf]
    %v2813 = vld [vmem:[#allocation20] sm:$0x1]
    %v2815 = vlaneseq
    %v2816 = vshrl.u32 %v2815, 7
    %v2817 = vsub.s32 0, %v2816
    %v2818 = vrot.slane %v2813, %v2817
    %v2836 = vunpack.c.l.b16 %v2797
    %v2837 = vunpack.c.l.b16 %v2798
    %v2838 = vunpack.c.l.b16 %v2799
    %v2839 = vunpack.c.l.b16 %v2800
    %v2840 = vunpack.c.l.b16 %v2801
    %v2841 = vunpack.c.l.b16 %v2802
    %v2842 = vunpack.c.l.b16 %v2803
    %v2843 = vunpack.c.l.b16 %v2804
    %v2844 = vunpack.c.l.b16 %v2805
    %v2845 = vunpack.c.l.b16 %v2806
    %v2846 = vunpack.c.l.b16 %v2807
    %v2847 = vunpack.c.l.b16 %v2808
    %v2848 = vunpack.c.l.b16 %v2809
    %v2849 = vunpack.c.l.b16 %v2810
    %v2850 = vunpack.c.l.b16 %v2811
    %v2851 = vunpack.c.l.b16 %v2812
    %v2852 = vpack.c.b16 %v2837, %v2836
    %v2853 = vpack.c.b16 %v2839, %v2838
    %v2854 = vpack.c.b16 %v2841, %v2840
    %v2855 = vpack.c.b16 %v2843, %v2842
    %v2856 = vpack.c.b16 %v2845, %v2844
    %v2857 = vpack.c.b16 %v2847, %v2846
    %v2858 = vpack.c.b16 %v2849, %v2848
    %v2859 = vpack.c.b16 %v2851, %v2850
    %2868 = vmatprep.subr.bf16.mxu0 0
    %2869 = vmatpush1.bf16.msra.mxu0 %v2852
    %2870 = vmatprep.subr.bf16.mxu0 0
    %2871 = vmatpush1.bf16.msra.mxu0 %v2853
    %2872 = vmatprep.subr.bf16.mxu0 0
    %2873 = vmatpush1.bf16.msra.mxu0 %v2854
    %2874 = vmatprep.subr.bf16.mxu0 0
    %2875 = vmatpush1.bf16.msra.mxu0 %v2855
    %2876 = vmatprep.subr.bf16.mxu0 0
    %2877 = vmatpush1.bf16.msra.mxu0 %v2856
    %2878 = vmatprep.subr.bf16.mxu0 0
    %2879 = vmatpush1.bf16.msra.mxu0 %v2857
    %2880 = vmatprep.subr.bf16.mxu0 0
    %2881 = vmatpush1.bf16.msra.mxu0 %v2858
    %2882 = vmatprep.subr.bf16.mxu0 0
    %2883 = vmatpush1.bf16.msra.mxu0 %v2859
    %2884 = vmatprep.subr.bf16.mxu0 0
    %2885 = vmatpush1.bf16.msra.mxu0 0
    %2886 = vmatprep.subr.bf16.mxu0 0
    %2887 = vmatpush1.bf16.msra.mxu0 0
    %2888 = vmatprep.subr.bf16.mxu0 0
    %2889 = vmatpush1.bf16.msra.mxu0 0
    %2890 = vmatprep.subr.bf16.mxu0 0
    %2891 = vmatpush1.bf16.msra.mxu0 0
    %2892 = vmatprep.subr.bf16.mxu0 0
    %2893 = vmatpush1.bf16.msra.mxu0 0
    %2894 = vmatprep.subr.bf16.mxu0 0
    %2895 = vmatpush1.bf16.msra.mxu0 0
    %2896 = vmatprep.subr.bf16.mxu0 0
    %2897 = vmatpush1.bf16.msra.mxu0 0
    %2898 = vmatprep.subr.bf16.mxu0 0
    %2899 = vmatpush1.bf16.msra.mxu0 0
    %2900 = vmatprep.mubr.bf16.mxu0 0
    %2901 = vmatmul.mubr.bf16.gmra.mrb[0].mxu0 %v2796
    %v2902 = vpop.f32.mrb[0].mxu0
    %v2903 = vadd.f32 %v2818, %v2902
    %v2904 = vpop.f32.mrb[0].mxu0
    %v2905 = vpop.f32.mrb[0].mxu0
    %v2906 = vpop.f32.mrb[0].mxu0
    %2907 = vdwg.mxu0
    %v2908 = vmax.f32 %v2903, 0.0
    %v2909 = vpack.c.bf16 %v2908, %v2908
    %v2910 = vld [vmem:[%s37] sm:$0xf]
    %v2911 = vld [vmem:[%s37 + $0x4] sm:$0xf]
    %v2912 = vld [vmem:[%s37 + $0x8] sm:$0xf]
    %v2913 = vld [vmem:[%s37 + $0xc] sm:$0xf]
    %v2914 = vld [vmem:[%s37 + $0x10] sm:$0xf]
    %v2915 = vld [vmem:[%s37 + $0x14] sm:$0xf]
    %v2916 = vld [vmem:[%s37 + $0x18] sm:$0xf]
    %v2917 = vld [vmem:[%s37 + $0x1c] sm:$0xf]
    %v2918 = vld [vmem:[#allocation22] sm:$0x1]
    %v2920 = vlaneseq
    %v2921 = vshrl.u32 %v2920, 7
    %v2922 = vsub.s32 0, %v2921
    %v2923 = vrot.slane %v2918, %v2922
    %v2933 = vunpack.c.l.b16 %v2910
    %v2934 = vunpack.c.l.b16 %v2911
    %v2935 = vunpack.c.l.b16 %v2912
    %v2936 = vunpack.c.l.b16 %v2913
    %v2937 = vunpack.c.l.b16 %v2914
    %v2938 = vunpack.c.l.b16 %v2915
    %v2939 = vunpack.c.l.b16 %v2916
    %v2940 = vunpack.c.l.b16 %v2917
    %v2941 = vpack.c.b16 %v2934, %v2933
    %v2942 = vpack.c.b16 %v2936, %v2935
    %v2943 = vpack.c.b16 %v2938, %v2937
    %v2944 = vpack.c.b16 %v2940, %v2939
    %vm2949 = vcmask 523264
    %v2951 = vsel %vm2949, %v2909, 0
    %2953 = vmatprep.subr.bf16.mxu0 0
    %2954 = vmatpush1.bf16.msra.mxu0 %v2941
    %2955 = vmatprep.subr.bf16.mxu0 0
    %2956 = vmatpush1.bf16.msra.mxu0 %v2942
    %2957 = vmatprep.subr.bf16.mxu0 0
    %2958 = vmatpush1.bf16.msra.mxu0 %v2943
    %2959 = vmatprep.subr.bf16.mxu0 0
    %2960 = vmatpush1.bf16.msra.mxu0 %v2944
    %2961 = vmatprep.subr.bf16.mxu0 0
    %2962 = vmatpush1.bf16.msra.mxu0 0
    %2963 = vmatprep.subr.bf16.mxu0 0
    %2964 = vmatpush1.bf16.msra.mxu0 0
    %2965 = vmatprep.subr.bf16.mxu0 0
    %2966 = vmatpush1.bf16.msra.mxu0 0
    %2967 = vmatprep.subr.bf16.mxu0 0
    %2968 = vmatpush1.bf16.msra.mxu0 0
    %2969 = vmatprep.subr.bf16.mxu0 0
    %2970 = vmatpush1.bf16.msra.mxu0 0
    %2971 = vmatprep.subr.bf16.mxu0 0
    %2972 = vmatpush1.bf16.msra.mxu0 0
    %2973 = vmatprep.subr.bf16.mxu0 0
    %2974 = vmatpush1.bf16.msra.mxu0 0
    %2975 = vmatprep.subr.bf16.mxu0 0
    %2976 = vmatpush1.bf16.msra.mxu0 0
    %2977 = vmatprep.subr.bf16.mxu0 0
    %2978 = vmatpush1.bf16.msra.mxu0 0
    %2979 = vmatprep.subr.bf16.mxu0 0
    %2980 = vmatpush1.bf16.msra.mxu0 0
    %2981 = vmatprep.subr.bf16.mxu0 0
    %2982 = vmatpush1.bf16.msra.mxu0 0
    %2983 = vmatprep.subr.bf16.mxu0 0
    %2984 = vmatpush1.bf16.msra.mxu0 0
    %2985 = vmatprep.mubr.bf16.mxu0 0
    %2986 = vmatmul.mubr.bf16.gmra.mrb[0].mxu0 %v2951
    %v2987 = vpop.f32.mrb[0].mxu0
    %v2988 = vadd.f32 %v2923, %v2987
    %v2989 = vpop.f32.mrb[0].mxu0
    %v2990 = vpop.f32.mrb[0].mxu0
    %v2991 = vpop.f32.mrb[0].mxu0
    %2992 = vdwg.mxu0
    %vm2993 = vcmask 123904
    %2994 = vst.msk [vmem:[#allocation40] sm:$0x3] %vm2993, %v2988
    %v2995 = vld [vmem:[#allocation23] sm:$0xf]
    %v2996 = vld [vmem:[#allocation23 + $0x4] sm:$0xf]
    %v2997 = vld [vmem:[#allocation23 + $0x8] sm:$0xf]
    %v2998 = vld [vmem:[#allocation23 + $0xc] sm:$0xf]
    %v2999 = vld [vmem:[#allocation23 + $0x10] sm:$0xf]
    %v3000 = vld [vmem:[#allocation23 + $0x14] sm:$0xf]
    %v3001 = vld [vmem:[#allocation23 + $0x18] sm:$0xf]
    %v3002 = vld [vmem:[#allocation23 + $0x1c] sm:$0xf]
    %v3003 = vld [vmem:[#allocation25] sm:$0x1]
    %v3005 = vlaneseq
    %v3006 = vshrl.u32 %v3005, 7
    %v3007 = vsub.s32 0, %v3006
    %v3008 = vrot.slane %v3003, %v3007
    %v3018 = vunpack.c.l.b16 %v2995
    %v3019 = vunpack.c.l.b16 %v2996
    %v3020 = vunpack.c.l.b16 %v2997
    %v3021 = vunpack.c.l.b16 %v2998
    %v3022 = vunpack.c.l.b16 %v2999
    %v3023 = vunpack.c.l.b16 %v3000
    %v3024 = vunpack.c.l.b16 %v3001
    %v3025 = vunpack.c.l.b16 %v3002
    %v3026 = vpack.c.b16 %v3019, %v3018
    %v3027 = vpack.c.b16 %v3021, %v3020
    %v3028 = vpack.c.b16 %v3023, %v3022
    %v3029 = vpack.c.b16 %v3025, %v3024
    %3034 = vmatprep.subr.bf16.mxu0 0
    %3035 = vmatpush1.bf16.msra.mxu0 %v3026
    %3036 = vmatprep.subr.bf16.mxu0 0
    %3037 = vmatpush1.bf16.msra.mxu0 %v3027
    %3038 = vmatprep.subr.bf16.mxu0 0
    %3039 = vmatpush1.bf16.msra.mxu0 %v3028
    %3040 = vmatprep.subr.bf16.mxu0 0
    %3041 = vmatpush1.bf16.msra.mxu0 %v3029
    %3042 = vmatprep.subr.bf16.mxu0 0
    %3043 = vmatpush1.bf16.msra.mxu0 0
    %3044 = vmatprep.subr.bf16.mxu0 0
    %3045 = vmatpush1.bf16.msra.mxu0 0
    %3046 = vmatprep.subr.bf16.mxu0 0
    %3047 = vmatpush1.bf16.msra.mxu0 0
    %3048 = vmatprep.subr.bf16.mxu0 0
    %3049 = vmatpush1.bf16.msra.mxu0 0
    %3050 = vmatprep.subr.bf16.mxu0 0
    %3051 = vmatpush1.bf16.msra.mxu0 0
    %3052 = vmatprep.subr.bf16.mxu0 0
    %3053 = vmatpush1.bf16.msra.mxu0 0
    %3054 = vmatprep.subr.bf16.mxu0 0
    %3055 = vmatpush1.bf16.msra.mxu0 0
    %3056 = vmatprep.subr.bf16.mxu0 0
    %3057 = vmatpush1.bf16.msra.mxu0 0
    %3058 = vmatprep.subr.bf16.mxu0 0
    %3059 = vmatpush1.bf16.msra.mxu0 0
    %3060 = vmatprep.subr.bf16.mxu0 0
    %3061 = vmatpush1.bf16.msra.mxu0 0
    %3062 = vmatprep.subr.bf16.mxu0 0
    %3063 = vmatpush1.bf16.msra.mxu0 0
    %3064 = vmatprep.subr.bf16.mxu0 0
    %3065 = vmatpush1.bf16.msra.mxu0 0
    %3066 = vmatprep.mubr.bf16.mxu0 0
    %3067 = vmatmul.mubr.bf16.gmra.mrb[0].mxu0 %v2951
    %v3068 = vpop.f32.mrb[0].mxu0
    %v3069 = vadd.f32 %v3008, %v3068
    %v3070 = vpop.f32.mrb[0].mxu0
    %v3071 = vpop.f32.mrb[0].mxu0
    %v3072 = vpop.f32.mrb[0].mxu0
    %3073 = vdwg.mxu0
    %v3074 = vmax.f32 %v3069, 0.0
    %v3075 = vpack.c.bf16 %v3074, %v3074
    %v3076 = vld [vmem:[#allocation26] sm:$0xff]
    %v3077 = vld [vmem:[#allocation26 + $0x8] sm:$0xf]
    %v3078 = vld [vmem:[#allocation26 + $0xc] sm:$0xff]
    %v3079 = vld [vmem:[#allocation26 + $0x14] sm:$0xf]
    %v3080 = vld [vmem:[#allocation26 + $0x18] sm:$0xff]
    %v3081 = vld [vmem:[#allocation26 + $0x20] sm:$0xf]
    %v3082 = vld [vmem:[#allocation26 + $0x24] sm:$0xff]
    %v3083 = vld [vmem:[#allocation26 + $0x2c] sm:$0xf]
    %v3084 = vld [vmem:[#allocation26 + $0x30] sm:$0xff]
    %v3085 = vld [vmem:[#allocation26 + $0x38] sm:$0xf]
    %v3086 = vld [vmem:[#allocation26 + $0x3c] sm:$0xff]
    %v3087 = vld [vmem:[#allocation26 + $0x44] sm:$0xf]
    %v3088 = vld [vmem:[#allocation26 + $0x48] sm:$0xff]
    %v3089 = vld [vmem:[#allocation26 + $0x50] sm:$0xf]
    %v3090 = vld [vmem:[#allocation26 + $0x54] sm:$0xff]
    %v3091 = vld [vmem:[#allocation26 + $0x5c] sm:$0xf]
    %v3092 = vld [vmem:[#allocation28] sm:$0x7]
    %v3094 = vlaneseq
    %v3095 = vshrl.u32 %v3094, 7
    %v3096 = vsub.s32 0, %v3095
    %v3097 = vrot.slane %v3092, %v3096
    %v3098 = vlaneseq
    %v3099 = vshrl.u32 %v3098, 7
    %v3100 = vsub.s32 1, %v3099
    %v3101 = vrot.slane %v3092, %v3100
    %v3102 = vlaneseq
    %v3103 = vshrl.u32 %v3102, 7
    %v3104 = vsub.s32 2, %v3103
    %v3105 = vrot.slane %v3092, %v3104
    %v3125 = vunpack.c.l.b16 %v3076
    %v3126 = vunpack.c.h.b16 %v3076
    %v3127 = vunpack.c.l.b16 %v3077
    %v3128 = vunpack.c.l.b16 %v3078
    %v3129 = vunpack.c.h.b16 %v3078
    %v3130 = vunpack.c.l.b16 %v3079
    %v3131 = vunpack.c.l.b16 %v3080
    %v3132 = vunpack.c.h.b16 %v3080
    %v3133 = vunpack.c.l.b16 %v3081
    %v3134 = vunpack.c.l.b16 %v3082
    %v3135 = vunpack.c.h.b16 %v3082
    %v3136 = vunpack.c.l.b16 %v3083
    %v3137 = vunpack.c.l.b16 %v3084
    %v3138 = vunpack.c.h.b16 %v3084
    %v3139 = vunpack.c.l.b16 %v3085
    %v3140 = vunpack.c.l.b16 %v3086
    %v3141 = vunpack.c.h.b16 %v3086
    %v3142 = vunpack.c.l.b16 %v3087
    %v3143 = vunpack.c.l.b16 %v3088
    %v3144 = vunpack.c.h.b16 %v3088
    %v3145 = vunpack.c.l.b16 %v3089
    %v3146 = vunpack.c.l.b16 %v3090
    %v3147 = vunpack.c.h.b16 %v3090
    %v3148 = vunpack.c.l.b16 %v3091
    %v3149 = vpack.c.b16 %v3128, %v3125
    %v3150 = vpack.c.b16 %v3129, %v3126
    %v3151 = vpack.c.b16 %v3130, %v3127
    %v3152 = vpack.c.b16 %v3134, %v3131
    %v3153 = vpack.c.b16 %v3135, %v3132
    %v3154 = vpack.c.b16 %v3136, %v3133
    %v3155 = vpack.c.b16 %v3140, %v3137
    %v3156 = vpack.c.b16 %v3141, %v3138
    %v3157 = vpack.c.b16 %v3142, %v3139
    %v3158 = vpack.c.b16 %v3146, %v3143
    %v3159 = vpack.c.b16 %v3147, %v3144
    %v3160 = vpack.c.b16 %v3148, %v3145
    %v3174 = vsel %vm2949, %v3075, 0
    %3176 = vmatprep.subr.bf16.mxu0 %v3150
    %3177 = vmatpush1.bf16.msra.mxu0 %v3149
    %3178 = vmatprep.subr.bf16.mxu0 %v3153
    %3179 = vmatpush1.bf16.msra.mxu0 %v3152
    %3180 = vmatprep.subr.bf16.mxu0 %v3156
    %3181 = vmatpush1.bf16.msra.mxu0 %v3155
    %3182 = vmatprep.subr.bf16.mxu0 %v3159
    %3183 = vmatpush1.bf16.msra.mxu0 %v3158
    %3184 = vmatprep.subr.bf16.mxu0 0
    %3185 = vmatpush1.bf16.msra.mxu0 0
    %3186 = vmatprep.subr.bf16.mxu0 0
    %3187 = vmatpush1.bf16.msra.mxu0 0
    %3188 = vmatprep.subr.bf16.mxu0 0
    %3189 = vmatpush1.bf16.msra.mxu0 0
    %3190 = vmatprep.subr.bf16.mxu0 0
    %3191 = vmatpush1.bf16.msra.mxu0 0
    %3192 = vmatprep.subr.bf16.mxu0 0
    %3193 = vmatpush1.bf16.msra.mxu0 0
    %3194 = vmatprep.subr.bf16.mxu0 0
    %3195 = vmatpush1.bf16.msra.mxu0 0
    %3196 = vmatprep.subr.bf16.mxu0 0
    %3197 = vmatpush1.bf16.msra.mxu0 0
    %3198 = vmatprep.subr.bf16.mxu0 0
    %3199 = vmatpush1.bf16.msra.mxu0 0
    %3200 = vmatprep.subr.bf16.mxu0 0
    %3201 = vmatpush1.bf16.msra.mxu0 0
    %3202 = vmatprep.subr.bf16.mxu0 0
    %3203 = vmatpush1.bf16.msra.mxu0 0
    %3204 = vmatprep.subr.bf16.mxu0 0
    %3205 = vmatpush1.bf16.msra.mxu0 0
    %3206 = vmatprep.subr.bf16.mxu0 0
    %3207 = vmatpush1.bf16.msra.mxu0 0
    %3208 = vmatprep.mubr.bf16.mxu0 0
    %3209 = vmatmul.mubr.bf16.gmra.mrb[0].mxu0 %v3174
    %v3210 = vpop.f32.mrb[0].mxu0
    %v3211 = vadd.f32 %v3097, %v3210
    %v3212 = vpop.f32.mrb[0].mxu0
    %v3213 = vadd.f32 %v3101, %v3212
    %v3214 = vpop.f32.mrb[0].mxu0
    %v3215 = vpop.f32.mrb[0].mxu0
    %3216 = vdwg.mxu0
    %3217 = vmatprep.subr.bf16.mxu0 0
    %3218 = vmatpush1.bf16.msra.mxu0 %v3151
    %3219 = vmatprep.subr.bf16.mxu0 0
    %3220 = vmatpush1.bf16.msra.mxu0 %v3154
    %3221 = vmatprep.subr.bf16.mxu0 0
    %3222 = vmatpush1.bf16.msra.mxu0 %v3157
    %3223 = vmatprep.subr.bf16.mxu0 0
    %3224 = vmatpush1.bf16.msra.mxu0 %v3160
    %3225 = vmatprep.subr.bf16.mxu0 0
    %3226 = vmatpush1.bf16.msra.mxu0 0
    %3227 = vmatprep.subr.bf16.mxu0 0
    %3228 = vmatpush1.bf16.msra.mxu0 0
    %3229 = vmatprep.subr.bf16.mxu0 0
    %3230 = vmatpush1.bf16.msra.mxu0 0
    %3231 = vmatprep.subr.bf16.mxu0 0
    %3232 = vmatpush1.bf16.msra.mxu0 0
    %3233 = vmatprep.subr.bf16.mxu0 0
    %3234 = vmatpush1.bf16.msra.mxu0 0
    %3235 = vmatprep.subr.bf16.mxu0 0
    %3236 = vmatpush1.bf16.msra.mxu0 0
    %3237 = vmatprep.subr.bf16.mxu0 0
    %3238 = vmatpush1.bf16.msra.mxu0 0
    %3239 = vmatprep.subr.bf16.mxu0 0
    %3240 = vmatpush1.bf16.msra.mxu0 0
    %3241 = vmatprep.subr.bf16.mxu0 0
    %3242 = vmatpush1.bf16.msra.mxu0 0
    %3243 = vmatprep.subr.bf16.mxu0 0
    %3244 = vmatpush1.bf16.msra.mxu0 0
    %3245 = vmatprep.subr.bf16.mxu0 0
    %3246 = vmatpush1.bf16.msra.mxu0 0
    %3247 = vmatprep.subr.bf16.mxu0 0
    %3248 = vmatpush1.bf16.msra.mxu0 0
    %3249 = vmatprep.mubr.bf16.mxu0 0
    %3250 = vmatmul.mubr.bf16.gmra.mrb[0].mxu0 %v3174
    %v3251 = vpop.f32.mrb[0].mxu0
    %v3252 = vadd.f32 %v3105, %v3251
    %v3253 = vpop.f32.mrb[0].mxu0
    %v3254 = vpop.f32.mrb[0].mxu0
    %v3255 = vpop.f32.mrb[0].mxu0
    %3256 = vdwg.mxu0
    %v3257 = vmax.f32 %v3211, 0.0
    %v3258 = vmax.f32 %v3213, 0.0
    %v3259 = vmax.f32 %v3252, 0.0
    %v3260 = vld [vmem:[%s45] sm:$0x3f]
    %s3261 = scalar_lea.vmem %s45, 8
    %v3262 = vld [vmem:[%s3261] sm:$0x3f]
    %vm3263 = vcmask 15360
    %v3265 = vsel %vm3263, %v3262, 0
    %vm3267 = vcmask 1041408
    %v3269 = vsel %vm3267, %v3258, 0
    %3271 = vmatprep.subr.mxu0 0.0
    %3272 = vmatpush1.msra.mxu0 %v3269
    %3273 = vmatprep.subr.mxu0 0.0
    %3274 = vmatpush1.msra.mxu0 0.0
    %3275 = vmatprep.subr.mxu0 0.0
    %3276 = vmatpush1.msra.mxu0 0.0
    %3277 = vmatprep.subr.mxu0 0.0
    %3278 = vmatpush1.msra.mxu0 0.0
    %3279 = vmatprep.subr.mxu0 0.0
    %3280 = vmatpush1.msra.mxu0 0.0
    %3281 = vmatprep.subr.mxu0 0.0
    %3282 = vmatpush1.msra.mxu0 0.0
    %3283 = vmatprep.subr.mxu0 0.0
    %3284 = vmatpush1.msra.mxu0 0.0
    %3285 = vmatprep.subr.mxu0 0.0
    %3286 = vmatpush1.msra.mxu0 0.0
    %3287 = vmatprep.subr.mxu0 0.0
    %3288 = vmatpush1.msra.mxu0 0.0
    %3289 = vmatprep.subr.mxu0 0.0
    %3290 = vmatpush1.msra.mxu0 0.0
    %3291 = vmatprep.subr.mxu0 0.0
    %3292 = vmatpush1.msra.mxu0 0.0
    %3293 = vmatprep.subr.mxu0 0.0
    %3294 = vmatpush1.msra.mxu0 0.0
    %3295 = vmatprep.subr.mxu0 0.0
    %3296 = vmatpush1.msra.mxu0 0.0
    %3297 = vmatprep.subr.mxu0 0.0
    %3298 = vmatpush1.msra.mxu0 0.0
    %3299 = vmatprep.subr.mxu0 0.0
    %3300 = vmatpush1.msra.mxu0 0.0
    %3301 = vmatprep.subr.mxu0 0.0
    %3302 = vmatpush1.msra.mxu0 0.0
    %3303 = vmatprep.subr.mxu0 0.0
    %3304 = vmatpush1.msra.mxu0 0.0
    %3305 = vmatprep.subr.mxu0 0.0
    %3306 = vmatpush1.msra.mxu0 0.0
    %3307 = vmatprep.subr.mxu0 0.0
    %3308 = vmatpush1.msra.mxu0 0.0
    %3309 = vmatprep.subr.mxu0 0.0
    %3310 = vmatpush1.msra.mxu0 0.0
    %3311 = vmatprep.subr.mxu0 0.0
    %3312 = vmatpush1.msra.mxu0 0.0
    %3313 = vmatprep.subr.mxu0 0.0
    %3314 = vmatpush1.msra.mxu0 0.0
    %3315 = vmatprep.subr.mxu0 0.0
    %3316 = vmatpush1.msra.mxu0 0.0
    %3317 = vmatprep.subr.mxu0 0.0
    %3318 = vmatpush1.msra.mxu0 0.0
    %3319 = vmatprep.subr.mxu0 0.0
    %3320 = vmatpush1.msra.mxu0 0.0
    %3321 = vmatprep.subr.mxu0 0.0
    %3322 = vmatpush1.msra.mxu0 0.0
    %3323 = vmatprep.subr.mxu0 0.0
    %3324 = vmatpush1.msra.mxu0 0.0
    %3325 = vmatprep.subr.mxu0 0.0
    %3326 = vmatpush1.msra.mxu0 0.0
    %3327 = vmatprep.subr.mxu0 0.0
    %3328 = vmatpush1.msra.mxu0 0.0
    %3329 = vmatprep.subr.mxu0 0.0
    %3330 = vmatpush1.msra.mxu0 0.0
    %3331 = vmatprep.subr.mxu0 0.0
    %3332 = vmatpush1.msra.mxu0 0.0
    %3333 = vmatprep.subr.mxu0 0.0
    %3334 = vmatpush1.msra.mxu0 0.0
    %3335 = vmatprep.mubr.f32.mxu0 0.0
    %3336 = vmatmul.mubr.f32.gmra.mrb[0].mxu0 %v3265
    %v3337 = vpop.f32.mrb[0].mxu0
    %v3338 = vadd.f32 0.0, %v3337
    %v3339 = vpop.f32.mrb[0].mxu0
    %3340 = vdwg.mxu0
    %v3342 = vsel %vm3263, %v3260, 0
    %v3345 = vsel %vm3267, %v3257, 0
    %3347 = vmatprep.subr.mxu0 0.0
    %3348 = vmatpush1.msra.mxu0 %v3345
    %3349 = vmatprep.subr.mxu0 0.0
    %3350 = vmatpush1.msra.mxu0 0.0
    %3351 = vmatprep.subr.mxu0 0.0
    %3352 = vmatpush1.msra.mxu0 0.0
    %3353 = vmatprep.subr.mxu0 0.0
    %3354 = vmatpush1.msra.mxu0 0.0
    %3355 = vmatprep.subr.mxu0 0.0
    %3356 = vmatpush1.msra.mxu0 0.0
    %3357 = vmatprep.subr.mxu0 0.0
    %3358 = vmatpush1.msra.mxu0 0.0
    %3359 = vmatprep.subr.mxu0 0.0
    %3360 = vmatpush1.msra.mxu0 0.0
    %3361 = vmatprep.subr.mxu0 0.0
    %3362 = vmatpush1.msra.mxu0 0.0
    %3363 = vmatprep.subr.mxu0 0.0
    %3364 = vmatpush1.msra.mxu0 0.0
    %3365 = vmatprep.subr.mxu0 0.0
    %3366 = vmatpush1.msra.mxu0 0.0
    %3367 = vmatprep.subr.mxu0 0.0
    %3368 = vmatpush1.msra.mxu0 0.0
    %3369 = vmatprep.subr.mxu0 0.0
    %3370 = vmatpush1.msra.mxu0 0.0
    %3371 = vmatprep.subr.mxu0 0.0
    %3372 = vmatpush1.msra.mxu0 0.0
    %3373 = vmatprep.subr.mxu0 0.0
    %3374 = vmatpush1.msra.mxu0 0.0
    %3375 = vmatprep.subr.mxu0 0.0
    %3376 = vmatpush1.msra.mxu0 0.0
    %3377 = vmatprep.subr.mxu0 0.0
    %3378 = vmatpush1.msra.mxu0 0.0
    %3379 = vmatprep.subr.mxu0 0.0
    %3380 = vmatpush1.msra.mxu0 0.0
    %3381 = vmatprep.subr.mxu0 0.0
    %3382 = vmatpush1.msra.mxu0 0.0
    %3383 = vmatprep.subr.mxu0 0.0
    %3384 = vmatpush1.msra.mxu0 0.0
    %3385 = vmatprep.subr.mxu0 0.0
    %3386 = vmatpush1.msra.mxu0 0.0
    %3387 = vmatprep.subr.mxu0 0.0
    %3388 = vmatpush1.msra.mxu0 0.0
    %3389 = vmatprep.subr.mxu0 0.0
    %3390 = vmatpush1.msra.mxu0 0.0
    %3391 = vmatprep.subr.mxu0 0.0
    %3392 = vmatpush1.msra.mxu0 0.0
    %3393 = vmatprep.subr.mxu0 0.0
    %3394 = vmatpush1.msra.mxu0 0.0
    %3395 = vmatprep.subr.mxu0 0.0
    %3396 = vmatpush1.msra.mxu0 0.0
    %3397 = vmatprep.subr.mxu0 0.0
    %3398 = vmatpush1.msra.mxu0 0.0
    %3399 = vmatprep.subr.mxu0 0.0
    %3400 = vmatpush1.msra.mxu0 0.0
    %3401 = vmatprep.subr.mxu0 0.0
    %3402 = vmatpush1.msra.mxu0 0.0
    %3403 = vmatprep.subr.mxu0 0.0
    %3404 = vmatpush1.msra.mxu0 0.0
    %3405 = vmatprep.subr.mxu0 0.0
    %3406 = vmatpush1.msra.mxu0 0.0
    %3407 = vmatprep.subr.mxu0 0.0
    %3408 = vmatpush1.msra.mxu0 0.0
    %3409 = vmatprep.subr.mxu0 0.0
    %3410 = vmatpush1.msra.mxu0 0.0
    %3411 = vmatprep.mubr.f32.mxu0 0.0
    %3412 = vmatmul.mubr.f32.gmra.mrb[0].mxu0 %v3342
    %v3413 = vpop.f32.mrb[0].mxu0
    %v3414 = vadd.f32 %v3338, %v3413
    %v3415 = vpop.f32.mrb[0].mxu0
    %3416 = vdwg.mxu0
    %s3417 = scalar_lea.vmem %s45, 16
    %v3418 = vld [vmem:[%s3417] sm:$0x3f]
    %v3420 = vsel %vm3263, %v3418, 0
    %v3423 = vsel %vm3267, %v3259, 0
    %3425 = vmatprep.subr.mxu0 0.0
    %3426 = vmatpush1.msra.mxu0 %v3423
    %3427 = vmatprep.subr.mxu0 0.0
    %3428 = vmatpush1.msra.mxu0 0.0
    %3429 = vmatprep.subr.mxu0 0.0
    %3430 = vmatpush1.msra.mxu0 0.0
    %3431 = vmatprep.subr.mxu0 0.0
    %3432 = vmatpush1.msra.mxu0 0.0
    %3433 = vmatprep.subr.mxu0 0.0
    %3434 = vmatpush1.msra.mxu0 0.0
    %3435 = vmatprep.subr.mxu0 0.0
    %3436 = vmatpush1.msra.mxu0 0.0
    %3437 = vmatprep.subr.mxu0 0.0
    %3438 = vmatpush1.msra.mxu0 0.0
    %3439 = vmatprep.subr.mxu0 0.0
    %3440 = vmatpush1.msra.mxu0 0.0
    %3441 = vmatprep.subr.mxu0 0.0
    %3442 = vmatpush1.msra.mxu0 0.0
    %3443 = vmatprep.subr.mxu0 0.0
    %3444 = vmatpush1.msra.mxu0 0.0
    %3445 = vmatprep.subr.mxu0 0.0
    %3446 = vmatpush1.msra.mxu0 0.0
    %3447 = vmatprep.subr.mxu0 0.0
    %3448 = vmatpush1.msra.mxu0 0.0
    %3449 = vmatprep.subr.mxu0 0.0
    %3450 = vmatpush1.msra.mxu0 0.0
    %3451 = vmatprep.subr.mxu0 0.0
    %3452 = vmatpush1.msra.mxu0 0.0
    %3453 = vmatprep.subr.mxu0 0.0
    %3454 = vmatpush1.msra.mxu0 0.0
    %3455 = vmatprep.subr.mxu0 0.0
    %3456 = vmatpush1.msra.mxu0 0.0
    %3457 = vmatprep.subr.mxu0 0.0
    %3458 = vmatpush1.msra.mxu0 0.0
    %3459 = vmatprep.subr.mxu0 0.0
    %3460 = vmatpush1.msra.mxu0 0.0
    %3461 = vmatprep.subr.mxu0 0.0
    %3462 = vmatpush1.msra.mxu0 0.0
    %3463 = vmatprep.subr.mxu0 0.0
    %3464 = vmatpush1.msra.mxu0 0.0
    %3465 = vmatprep.subr.mxu0 0.0
    %3466 = vmatpush1.msra.mxu0 0.0
    %3467 = vmatprep.subr.mxu0 0.0
    %3468 = vmatpush1.msra.mxu0 0.0
    %3469 = vmatprep.subr.mxu0 0.0
    %3470 = vmatpush1.msra.mxu0 0.0
    %3471 = vmatprep.subr.mxu0 0.0
    %3472 = vmatpush1.msra.mxu0 0.0
    %3473 = vmatprep.subr.mxu0 0.0
    %3474 = vmatpush1.msra.mxu0 0.0
    %3475 = vmatprep.subr.mxu0 0.0
    %3476 = vmatpush1.msra.mxu0 0.0
    %3477 = vmatprep.subr.mxu0 0.0
    %3478 = vmatpush1.msra.mxu0 0.0
    %3479 = vmatprep.subr.mxu0 0.0
    %3480 = vmatpush1.msra.mxu0 0.0
    %3481 = vmatprep.subr.mxu0 0.0
    %3482 = vmatpush1.msra.mxu0 0.0
    %3483 = vmatprep.subr.mxu0 0.0
    %3484 = vmatpush1.msra.mxu0 0.0
    %3485 = vmatprep.subr.mxu0 0.0
    %3486 = vmatpush1.msra.mxu0 0.0
    %3487 = vmatprep.subr.mxu0 0.0
    %3488 = vmatpush1.msra.mxu0 0.0
    %3489 = vmatprep.mubr.f32.mxu0 0.0
    %3490 = vmatmul.mubr.f32.gmra.mrb[0].mxu0 %v3420
    %v3491 = vpop.f32.mrb[0].mxu0
    %v3492 = vadd.f32 0.0, %v3491
    %v3493 = vpop.f32.mrb[0].mxu0
    %3494 = vdwg.mxu0
    %v3495 = vadd.f32 %v3414, %v3492
    %v3496 = vpack.c.bf16 %v3495, %v3495
    %v3497 = vld [vmem:[#allocation29] sm:$0xff]
    %v3498 = vld [vmem:[#allocation29 + $0x8] sm:$0xf]
    %v3499 = vld [vmem:[#allocation29 + $0xc] sm:$0xff]
    %v3500 = vld [vmem:[#allocation29 + $0x14] sm:$0xf]
    %v3501 = vld [vmem:[#allocation29 + $0x18] sm:$0xff]
    %v3502 = vld [vmem:[#allocation29 + $0x20] sm:$0xf]
    %v3503 = vld [vmem:[#allocation29 + $0x24] sm:$0xff]
    %v3504 = vld [vmem:[#allocation29 + $0x2c] sm:$0xf]
    %v3505 = vld [vmem:[#allocation29 + $0x30] sm:$0xff]
    %v3506 = vld [vmem:[#allocation29 + $0x38] sm:$0xf]
    %v3507 = vld [vmem:[#allocation29 + $0x3c] sm:$0xff]
    %v3508 = vld [vmem:[#allocation29 + $0x44] sm:$0xf]
    %v3509 = vld [vmem:[#allocation29 + $0x48] sm:$0xff]
    %v3510 = vld [vmem:[#allocation29 + $0x50] sm:$0xf]
    %v3511 = vld [vmem:[#allocation29 + $0x54] sm:$0xff]
    %v3512 = vld [vmem:[#allocation29 + $0x5c] sm:$0xf]
    %v3513 = vld [vmem:[#allocation29 + $0x60] sm:$0xff]
    %v3514 = vld [vmem:[#allocation29 + $0x68] sm:$0xf]
    %v3515 = vld [vmem:[#allocation29 + $0x6c] sm:$0xff]
    %v3516 = vld [vmem:[#allocation29 + $0x74] sm:$0xf]
    %v3517 = vld [vmem:[#allocation29 + $0x78] sm:$0xff]
    %v3518 = vld [vmem:[#allocation29 + $0x80] sm:$0xf]
    %v3519 = vld [vmem:[#allocation29 + $0x84] sm:$0xff]
    %v3520 = vld [vmem:[#allocation29 + $0x8c] sm:$0xf]
    %v3521 = vld [vmem:[#allocation29 + $0x90] sm:$0xff]
    %v3522 = vld [vmem:[#allocation29 + $0x98] sm:$0xf]
    %v3523 = vld [vmem:[#allocation29 + $0x9c] sm:$0xff]
    %v3524 = vld [vmem:[#allocation29 + $0xa4] sm:$0xf]
    %v3525 = vld [vmem:[#allocation29 + $0xa8] sm:$0xff]
    %v3526 = vld [vmem:[#allocation29 + $0xb0] sm:$0xf]
    %v3527 = vld [vmem:[#allocation29 + $0xb4] sm:$0xff]
    %v3528 = vld [vmem:[#allocation29 + $0xbc] sm:$0xf]
    %v3561 = vunpack.c.l.b16 %v3497
    %v3562 = vunpack.c.h.b16 %v3497
    %v3563 = vunpack.c.l.b16 %v3498
    %v3564 = vunpack.c.l.b16 %v3499
    %v3565 = vunpack.c.h.b16 %v3499
    %v3566 = vunpack.c.l.b16 %v3500
    %v3567 = vunpack.c.l.b16 %v3501
    %v3568 = vunpack.c.h.b16 %v3501
    %v3569 = vunpack.c.l.b16 %v3502
    %v3570 = vunpack.c.l.b16 %v3503
    %v3571 = vunpack.c.h.b16 %v3503
    %v3572 = vunpack.c.l.b16 %v3504
    %v3573 = vunpack.c.l.b16 %v3505
    %v3574 = vunpack.c.h.b16 %v3505
    %v3575 = vunpack.c.l.b16 %v3506
    %v3576 = vunpack.c.l.b16 %v3507
    %v3577 = vunpack.c.h.b16 %v3507
    %v3578 = vunpack.c.l.b16 %v3508
    %v3579 = vunpack.c.l.b16 %v3509
    %v3580 = vunpack.c.h.b16 %v3509
    %v3581 = vunpack.c.l.b16 %v3510
    %v3582 = vunpack.c.l.b16 %v3511
    %v3583 = vunpack.c.h.b16 %v3511
    %v3584 = vunpack.c.l.b16 %v3512
    %v3585 = vunpack.c.l.b16 %v3513
    %v3586 = vunpack.c.h.b16 %v3513
    %v3587 = vunpack.c.l.b16 %v3514
    %v3588 = vunpack.c.l.b16 %v3515
    %v3589 = vunpack.c.h.b16 %v3515
    %v3590 = vunpack.c.l.b16 %v3516
    %v3591 = vunpack.c.l.b16 %v3517
    %v3592 = vunpack.c.h.b16 %v3517
    %v3593 = vunpack.c.l.b16 %v3518
    %v3594 = vunpack.c.l.b16 %v3519
    %v3595 = vunpack.c.h.b16 %v3519
    %v3596 = vunpack.c.l.b16 %v3520
    %v3597 = vunpack.c.l.b16 %v3521
    %v3598 = vunpack.c.h.b16 %v3521
    %v3599 = vunpack.c.l.b16 %v3522
    %v3600 = vunpack.c.l.b16 %v3523
    %v3601 = vunpack.c.h.b16 %v3523
    %v3602 = vunpack.c.l.b16 %v3524
    %v3603 = vunpack.c.l.b16 %v3525
    %v3604 = vunpack.c.h.b16 %v3525
    %v3605 = vunpack.c.l.b16 %v3526
    %v3606 = vunpack.c.l.b16 %v3527
    %v3607 = vunpack.c.h.b16 %v3527
    %v3608 = vunpack.c.l.b16 %v3528
    %v3609 = vpack.c.b16 %v3564, %v3561
    %v3610 = vpack.c.b16 %v3565, %v3562
    %v3611 = vpack.c.b16 %v3566, %v3563
    %v3612 = vpack.c.b16 %v3570, %v3567
    %v3613 = vpack.c.b16 %v3571, %v3568
    %v3614 = vpack.c.b16 %v3572, %v3569
    %v3615 = vpack.c.b16 %v3576, %v3573
    %v3616 = vpack.c.b16 %v3577, %v3574
    %v3617 = vpack.c.b16 %v3578, %v3575
    %v3618 = vpack.c.b16 %v3582, %v3579
    %v3619 = vpack.c.b16 %v3583, %v3580
    %v3620 = vpack.c.b16 %v3584, %v3581
    %v3621 = vpack.c.b16 %v3588, %v3585
    %v3622 = vpack.c.b16 %v3589, %v3586
    %v3623 = vpack.c.b16 %v3590, %v3587
    %v3624 = vpack.c.b16 %v3594, %v3591
    %v3625 = vpack.c.b16 %v3595, %v3592
    %v3626 = vpack.c.b16 %v3596, %v3593
    %v3627 = vpack.c.b16 %v3600, %v3597
    %v3628 = vpack.c.b16 %v3601, %v3598
    %v3629 = vpack.c.b16 %v3602, %v3599
    %v3630 = vpack.c.b16 %v3606, %v3603
    %v3631 = vpack.c.b16 %v3607, %v3604
    %v3632 = vpack.c.b16 %v3608, %v3605
    %3657 = vmatprep.subr.bf16.mxu0 %v3610
    %3658 = vmatpush1.bf16.msra.mxu0 %v3609
    %3659 = vmatprep.subr.bf16.mxu0 %v3613
    %3660 = vmatpush1.bf16.msra.mxu0 %v3612
    %3661 = vmatprep.subr.bf16.mxu0 %v3616
    %3662 = vmatpush1.bf16.msra.mxu0 %v3615
    %3663 = vmatprep.subr.bf16.mxu0 %v3619
    %3664 = vmatpush1.bf16.msra.mxu0 %v3618
    %3665 = vmatprep.subr.bf16.mxu0 %v3622
    %3666 = vmatpush1.bf16.msra.mxu0 %v3621
    %3667 = vmatprep.subr.bf16.mxu0 %v3625
    %3668 = vmatpush1.bf16.msra.mxu0 %v3624
    %3669 = vmatprep.subr.bf16.mxu0 %v3628
    %3670 = vmatpush1.bf16.msra.mxu0 %v3627
    %3671 = vmatprep.subr.bf16.mxu0 %v3631
    %3672 = vmatpush1.bf16.msra.mxu0 %v3630
    %3673 = vmatprep.subr.bf16.mxu0 0
    %3674 = vmatpush1.bf16.msra.mxu0 0
    %3675 = vmatprep.subr.bf16.mxu0 0
    %3676 = vmatpush1.bf16.msra.mxu0 0
    %3677 = vmatprep.subr.bf16.mxu0 0
    %3678 = vmatpush1.bf16.msra.mxu0 0
    %3679 = vmatprep.subr.bf16.mxu0 0
    %3680 = vmatpush1.bf16.msra.mxu0 0
    %3681 = vmatprep.subr.bf16.mxu0 0
    %3682 = vmatpush1.bf16.msra.mxu0 0
    %3683 = vmatprep.subr.bf16.mxu0 0
    %3684 = vmatpush1.bf16.msra.mxu0 0
    %3685 = vmatprep.subr.bf16.mxu0 0
    %3686 = vmatpush1.bf16.msra.mxu0 0
    %3687 = vmatprep.subr.bf16.mxu0 0
    %3688 = vmatpush1.bf16.msra.mxu0 0
    %3689 = vmatprep.mubr.bf16.mxu0 0
    %3690 = vmatmul.mubr.bf16.gmra.mrb[0].mxu0 %v3496
    %v3691 = vpop.f32.mrb[0].mxu0
    %v3692 = vadd.f32 0.0, %v3691
    %v3693 = vpop.f32.mrb[0].mxu0
    %v3694 = vadd.f32 0.0, %v3693
    %v3695 = vpop.f32.mrb[0].mxu0
    %v3696 = vpop.f32.mrb[0].mxu0
    %3697 = vdwg.mxu0
    %3698 = vmatprep.subr.bf16.mxu0 0
    %3699 = vmatpush1.bf16.msra.mxu0 %v3611
    %3700 = vmatprep.subr.bf16.mxu0 0
    %3701 = vmatpush1.bf16.msra.mxu0 %v3614
    %3702 = vmatprep.subr.bf16.mxu0 0
    %3703 = vmatpush1.bf16.msra.mxu0 %v3617
    %3704 = vmatprep.subr.bf16.mxu0 0
    %3705 = vmatpush1.bf16.msra.mxu0 %v3620
    %3706 = vmatprep.subr.bf16.mxu0 0
    %3707 = vmatpush1.bf16.msra.mxu0 %v3623
    %3708 = vmatprep.subr.bf16.mxu0 0
    %3709 = vmatpush1.bf16.msra.mxu0 %v3626
    %3710 = vmatprep.subr.bf16.mxu0 0
    %3711 = vmatpush1.bf16.msra.mxu0 %v3629
    %3712 = vmatprep.subr.bf16.mxu0 0
    %3713 = vmatpush1.bf16.msra.mxu0 %v3632
    %3714 = vmatprep.subr.bf16.mxu0 0
    %3715 = vmatpush1.bf16.msra.mxu0 0
    %3716 = vmatprep.subr.bf16.mxu0 0
    %3717 = vmatpush1.bf16.msra.mxu0 0
    %3718 = vmatprep.subr.bf16.mxu0 0
    %3719 = vmatpush1.bf16.msra.mxu0 0
    %3720 = vmatprep.subr.bf16.mxu0 0
    %3721 = vmatpush1.bf16.msra.mxu0 0
    %3722 = vmatprep.subr.bf16.mxu0 0
    %3723 = vmatpush1.bf16.msra.mxu0 0
    %3724 = vmatprep.subr.bf16.mxu0 0
    %3725 = vmatpush1.bf16.msra.mxu0 0
    %3726 = vmatprep.subr.bf16.mxu0 0
    %3727 = vmatpush1.bf16.msra.mxu0 0
    %3728 = vmatprep.subr.bf16.mxu0 0
    %3729 = vmatpush1.bf16.msra.mxu0 0
    %3730 = vmatprep.mubr.bf16.mxu0 0
    %3731 = vmatmul.mubr.bf16.gmra.mrb[0].mxu0 %v3496
    %v3732 = vpop.f32.mrb[0].mxu0
    %v3733 = vadd.f32 0.0, %v3732
    %v3734 = vpop.f32.mrb[0].mxu0
    %v3735 = vpop.f32.mrb[0].mxu0
    %v3736 = vpop.f32.mrb[0].mxu0
    %3737 = vdwg.mxu0
    %v3738 = vld [vmem:[%s51] sm:$0xff]
    %v3739 = vld [vmem:[%s51 + $0x8] sm:$0x3f]
    %s3740 = scalar_lea.vmem %s51, 16
    %v3741 = vld [vmem:[%s3740] sm:$0xff]
    %v3742 = vld [vmem:[%s3740 + $0x8] sm:$0x3f]
    %v3744 = vsel %vm2555, %v3741, 0
    %v3747 = vsel %vm2555, %v3742, 0
    %v3750 = vsel %vm545, %v3694, 0
    %3752 = vmatprep.subr.mxu0 0.0
    %3753 = vmatpush1.msra.mxu0 %v3750
    %3754 = vmatprep.subr.mxu0 0.0
    %3755 = vmatpush1.msra.mxu0 0.0
    %3756 = vmatprep.subr.mxu0 0.0
    %3757 = vmatpush1.msra.mxu0 0.0
    %3758 = vmatprep.subr.mxu0 0.0
    %3759 = vmatpush1.msra.mxu0 0.0
    %3760 = vmatprep.subr.mxu0 0.0
    %3761 = vmatpush1.msra.mxu0 0.0
    %3762 = vmatprep.subr.mxu0 0.0
    %3763 = vmatpush1.msra.mxu0 0.0
    %3764 = vmatprep.subr.mxu0 0.0
    %3765 = vmatpush1.msra.mxu0 0.0
    %3766 = vmatprep.subr.mxu0 0.0
    %3767 = vmatpush1.msra.mxu0 0.0
    %3768 = vmatprep.subr.mxu0 0.0
    %3769 = vmatpush1.msra.mxu0 0.0
    %3770 = vmatprep.subr.mxu0 0.0
    %3771 = vmatpush1.msra.mxu0 0.0
    %3772 = vmatprep.subr.mxu0 0.0
    %3773 = vmatpush1.msra.mxu0 0.0
    %3774 = vmatprep.subr.mxu0 0.0
    %3775 = vmatpush1.msra.mxu0 0.0
    %3776 = vmatprep.subr.mxu0 0.0
    %3777 = vmatpush1.msra.mxu0 0.0
    %3778 = vmatprep.subr.mxu0 0.0
    %3779 = vmatpush1.msra.mxu0 0.0
    %3780 = vmatprep.subr.mxu0 0.0
    %3781 = vmatpush1.msra.mxu0 0.0
    %3782 = vmatprep.subr.mxu0 0.0
    %3783 = vmatpush1.msra.mxu0 0.0
    %3784 = vmatprep.subr.mxu0 0.0
    %3785 = vmatpush1.msra.mxu0 0.0
    %3786 = vmatprep.subr.mxu0 0.0
    %3787 = vmatpush1.msra.mxu0 0.0
    %3788 = vmatprep.subr.mxu0 0.0
    %3789 = vmatpush1.msra.mxu0 0.0
    %3790 = vmatprep.subr.mxu0 0.0
    %3791 = vmatpush1.msra.mxu0 0.0
    %3792 = vmatprep.subr.mxu0 0.0
    %3793 = vmatpush1.msra.mxu0 0.0
    %3794 = vmatprep.subr.mxu0 0.0
    %3795 = vmatpush1.msra.mxu0 0.0
    %3796 = vmatprep.subr.mxu0 0.0
    %3797 = vmatpush1.msra.mxu0 0.0
    %3798 = vmatprep.subr.mxu0 0.0
    %3799 = vmatpush1.msra.mxu0 0.0
    %3800 = vmatprep.subr.mxu0 0.0
    %3801 = vmatpush1.msra.mxu0 0.0
    %3802 = vmatprep.subr.mxu0 0.0
    %3803 = vmatpush1.msra.mxu0 0.0
    %3804 = vmatprep.subr.mxu0 0.0
    %3805 = vmatpush1.msra.mxu0 0.0
    %3806 = vmatprep.subr.mxu0 0.0
    %3807 = vmatpush1.msra.mxu0 0.0
    %3808 = vmatprep.subr.mxu0 0.0
    %3809 = vmatpush1.msra.mxu0 0.0
    %3810 = vmatprep.subr.mxu0 0.0
    %3811 = vmatpush1.msra.mxu0 0.0
    %3812 = vmatprep.subr.mxu0 0.0
    %3813 = vmatpush1.msra.mxu0 0.0
    %3814 = vmatprep.subr.mxu0 0.0
    %3815 = vmatpush1.msra.mxu0 0.0
    %3816 = vmatprep.mubr.f32.mxu0 0.0
    %3817 = vmatmul.mubr.f32.gmra.mrb[0].mxu0 %v3744
    %v3818 = vpop.f32.mrb[0].mxu0
    %v3819 = vadd.f32 0.0, %v3818
    %v3820 = vpop.f32.mrb[0].mxu0
    %3821 = vmatprep.mubr.f32.mxu0 0.0
    %3822 = vmatmul.mubr.f32.gmra.mrb[0].mxu0 %v3747
    %v3823 = vpop.f32.mrb[0].mxu0
    %v3824 = vadd.f32 0.0, %v3823
    %v3825 = vpop.f32.mrb[0].mxu0
    %3826 = vdwg.mxu0
    %v3828 = vsel %vm2555, %v3738, 0
    %v3831 = vsel %vm2555, %v3739, 0
    %v3834 = vsel %vm545, %v3692, 0
    %3836 = vmatprep.subr.mxu0 0.0
    %3837 = vmatpush1.msra.mxu0 %v3834
    %3838 = vmatprep.subr.mxu0 0.0
    %3839 = vmatpush1.msra.mxu0 0.0
    %3840 = vmatprep.subr.mxu0 0.0
    %3841 = vmatpush1.msra.mxu0 0.0
    %3842 = vmatprep.subr.mxu0 0.0
    %3843 = vmatpush1.msra.mxu0 0.0
    %3844 = vmatprep.subr.mxu0 0.0
    %3845 = vmatpush1.msra.mxu0 0.0
    %3846 = vmatprep.subr.mxu0 0.0
    %3847 = vmatpush1.msra.mxu0 0.0
    %3848 = vmatprep.subr.mxu0 0.0
    %3849 = vmatpush1.msra.mxu0 0.0
    %3850 = vmatprep.subr.mxu0 0.0
    %3851 = vmatpush1.msra.mxu0 0.0
    %3852 = vmatprep.subr.mxu0 0.0
    %3853 = vmatpush1.msra.mxu0 0.0
    %3854 = vmatprep.subr.mxu0 0.0
    %3855 = vmatpush1.msra.mxu0 0.0
    %3856 = vmatprep.subr.mxu0 0.0
    %3857 = vmatpush1.msra.mxu0 0.0
    %3858 = vmatprep.subr.mxu0 0.0
    %3859 = vmatpush1.msra.mxu0 0.0
    %3860 = vmatprep.subr.mxu0 0.0
    %3861 = vmatpush1.msra.mxu0 0.0
    %3862 = vmatprep.subr.mxu0 0.0
    %3863 = vmatpush1.msra.mxu0 0.0
    %3864 = vmatprep.subr.mxu0 0.0
    %3865 = vmatpush1.msra.mxu0 0.0
    %3866 = vmatprep.subr.mxu0 0.0
    %3867 = vmatpush1.msra.mxu0 0.0
    %3868 = vmatprep.subr.mxu0 0.0
    %3869 = vmatpush1.msra.mxu0 0.0
    %3870 = vmatprep.subr.mxu0 0.0
    %3871 = vmatpush1.msra.mxu0 0.0
    %3872 = vmatprep.subr.mxu0 0.0
    %3873 = vmatpush1.msra.mxu0 0.0
    %3874 = vmatprep.subr.mxu0 0.0
    %3875 = vmatpush1.msra.mxu0 0.0
    %3876 = vmatprep.subr.mxu0 0.0
    %3877 = vmatpush1.msra.mxu0 0.0
    %3878 = vmatprep.subr.mxu0 0.0
    %3879 = vmatpush1.msra.mxu0 0.0
    %3880 = vmatprep.subr.mxu0 0.0
    %3881 = vmatpush1.msra.mxu0 0.0
    %3882 = vmatprep.subr.mxu0 0.0
    %3883 = vmatpush1.msra.mxu0 0.0
    %3884 = vmatprep.subr.mxu0 0.0
    %3885 = vmatpush1.msra.mxu0 0.0
    %3886 = vmatprep.subr.mxu0 0.0
    %3887 = vmatpush1.msra.mxu0 0.0
    %3888 = vmatprep.subr.mxu0 0.0
    %3889 = vmatpush1.msra.mxu0 0.0
    %3890 = vmatprep.subr.mxu0 0.0
    %3891 = vmatpush1.msra.mxu0 0.0
    %3892 = vmatprep.subr.mxu0 0.0
    %3893 = vmatpush1.msra.mxu0 0.0
    %3894 = vmatprep.subr.mxu0 0.0
    %3895 = vmatpush1.msra.mxu0 0.0
    %3896 = vmatprep.subr.mxu0 0.0
    %3897 = vmatpush1.msra.mxu0 0.0
    %3898 = vmatprep.subr.mxu0 0.0
    %3899 = vmatpush1.msra.mxu0 0.0
    %3900 = vmatprep.mubr.f32.mxu0 0.0
    %3901 = vmatmul.mubr.f32.gmra.mrb[0].mxu0 %v3828
    %v3902 = vpop.f32.mrb[0].mxu0
    %v3903 = vadd.f32 %v3819, %v3902
    %v3904 = vpop.f32.mrb[0].mxu0
    %3905 = vmatprep.mubr.f32.mxu0 0.0
    %3906 = vmatmul.mubr.f32.gmra.mrb[0].mxu0 %v3831
    %v3907 = vpop.f32.mrb[0].mxu0
    %v3908 = vadd.f32 %v3824, %v3907
    %v3909 = vpop.f32.mrb[0].mxu0
    %3910 = vdwg.mxu0
    %s3911 = scalar_lea.vmem %s51, 32
    %v3912 = vld [vmem:[%s3911] sm:$0xff]
    %v3913 = vld [vmem:[%s3911 + $0x8] sm:$0x3f]
    %v3915 = vsel %vm2555, %v3912, 0
    %v3918 = vsel %vm2555, %v3913, 0
    %v3921 = vsel %vm545, %v3733, 0
    %3923 = vmatprep.subr.mxu0 0.0
    %3924 = vmatpush1.msra.mxu0 %v3921
    %3925 = vmatprep.subr.mxu0 0.0
    %3926 = vmatpush1.msra.mxu0 0.0
    %3927 = vmatprep.subr.mxu0 0.0
    %3928 = vmatpush1.msra.mxu0 0.0
    %3929 = vmatprep.subr.mxu0 0.0
    %3930 = vmatpush1.msra.mxu0 0.0
    %3931 = vmatprep.subr.mxu0 0.0
    %3932 = vmatpush1.msra.mxu0 0.0
    %3933 = vmatprep.subr.mxu0 0.0
    %3934 = vmatpush1.msra.mxu0 0.0
    %3935 = vmatprep.subr.mxu0 0.0
    %3936 = vmatpush1.msra.mxu0 0.0
    %3937 = vmatprep.subr.mxu0 0.0
    %3938 = vmatpush1.msra.mxu0 0.0
    %3939 = vmatprep.subr.mxu0 0.0
    %3940 = vmatpush1.msra.mxu0 0.0
    %3941 = vmatprep.subr.mxu0 0.0
    %3942 = vmatpush1.msra.mxu0 0.0
    %3943 = vmatprep.subr.mxu0 0.0
    %3944 = vmatpush1.msra.mxu0 0.0
    %3945 = vmatprep.subr.mxu0 0.0
    %3946 = vmatpush1.msra.mxu0 0.0
    %3947 = vmatprep.subr.mxu0 0.0
    %3948 = vmatpush1.msra.mxu0 0.0
    %3949 = vmatprep.subr.mxu0 0.0
    %3950 = vmatpush1.msra.mxu0 0.0
    %3951 = vmatprep.subr.mxu0 0.0
    %3952 = vmatpush1.msra.mxu0 0.0
    %3953 = vmatprep.subr.mxu0 0.0
    %3954 = vmatpush1.msra.mxu0 0.0
    %3955 = vmatprep.subr.mxu0 0.0
    %3956 = vmatpush1.msra.mxu0 0.0
    %3957 = vmatprep.subr.mxu0 0.0
    %3958 = vmatpush1.msra.mxu0 0.0
    %3959 = vmatprep.subr.mxu0 0.0
    %3960 = vmatpush1.msra.mxu0 0.0
    %3961 = vmatprep.subr.mxu0 0.0
    %3962 = vmatpush1.msra.mxu0 0.0
    %3963 = vmatprep.subr.mxu0 0.0
    %3964 = vmatpush1.msra.mxu0 0.0
    %3965 = vmatprep.subr.mxu0 0.0
    %3966 = vmatpush1.msra.mxu0 0.0
    %3967 = vmatprep.subr.mxu0 0.0
    %3968 = vmatpush1.msra.mxu0 0.0
    %3969 = vmatprep.subr.mxu0 0.0
    %3970 = vmatpush1.msra.mxu0 0.0
    %3971 = vmatprep.subr.mxu0 0.0
    %3972 = vmatpush1.msra.mxu0 0.0
    %3973 = vmatprep.subr.mxu0 0.0
    %3974 = vmatpush1.msra.mxu0 0.0
    %3975 = vmatprep.subr.mxu0 0.0
    %3976 = vmatpush1.msra.mxu0 0.0
    %3977 = vmatprep.subr.mxu0 0.0
    %3978 = vmatpush1.msra.mxu0 0.0
    %3979 = vmatprep.subr.mxu0 0.0
    %3980 = vmatpush1.msra.mxu0 0.0
    %3981 = vmatprep.subr.mxu0 0.0
    %3982 = vmatpush1.msra.mxu0 0.0
    %3983 = vmatprep.subr.mxu0 0.0
    %3984 = vmatpush1.msra.mxu0 0.0
    %3985 = vmatprep.subr.mxu0 0.0
    %3986 = vmatpush1.msra.mxu0 0.0
    %3987 = vmatprep.mubr.f32.mxu0 0.0
    %3988 = vmatmul.mubr.f32.gmra.mrb[0].mxu0 %v3915
    %v3989 = vpop.f32.mrb[0].mxu0
    %v3990 = vadd.f32 0.0, %v3989
    %v3991 = vpop.f32.mrb[0].mxu0
    %3992 = vmatprep.mubr.f32.mxu0 0.0
    %3993 = vmatmul.mubr.f32.gmra.mrb[0].mxu0 %v3918
    %v3994 = vpop.f32.mrb[0].mxu0
    %v3995 = vadd.f32 0.0, %v3994
    %v3996 = vpop.f32.mrb[0].mxu0
    %3997 = vdwg.mxu0
    %v3998 = vadd.f32 %v3903, %v3990
    %v3999 = vadd.f32 %v3908, %v3995
    %v4000 = vld [vmem:[#allocation31] sm:$0x1]
    %v4001 = vlaneseq
    %v4002 = vshrl.u32 %v4001, 7
    %v4003 = vsub.s32 0, %v4002
    %v4004 = vrot.slane %v4000, %v4003
    %v4005 = vadd.f32 %v3998, %v4004
    %v4006 = vadd.f32 %v3999, %v4004
    %v4007 = vsel %vm545, %v4006, 0.0
    %v4008 = vadd.f32 %v4005, %v4007
    %v4009 = vrot.slane %v4008, 4
    %v4010 = vadd.f32 %v4008, %v4009
    %v4011 = vrot.slane %v4010, 2
    %v4012 = vadd.f32 %v4010, %v4011
    %v4013 = vrot.slane %v4012, 1
    %v4014 = vadd.f32 %v4012, %v4013
    %v4015 = vmul.f32 %v4005, %v4005
    %v4016 = vmul.f32 %v4006, %v4006
    %v4017 = vsel %vm545, %v4016, 0.0
    %v4018 = vadd.f32 %v4015, %v4017
    %v4019 = vrot.slane %v4018, 4
    %v4020 = vadd.f32 %v4018, %v4019
    %v4021 = vrot.slane %v4020, 2
    %v4022 = vadd.f32 %v4020, %v4021
    %v4023 = vrot.slane %v4022, 1
    %v4024 = vadd.f32 %v4022, %v4023
    %v4025 = vsel %vm1567, %v4014, %v4024
    %v4026 = vld [vmem:[#allocation32] sm:$0xff]
    %v4027 = vld [vmem:[#allocation32 + $0x8] sm:$0xff]
    %v4028 = vld [vmem:[#allocation32 + $0x10] sm:$0xff]
    %v4029 = vld [vmem:[#allocation32 + $0x18] sm:$0xff]
    %v4030 = vld [vmem:[#allocation32 + $0x20] sm:$0xff]
    %v4031 = vld [vmem:[#allocation32 + $0x28] sm:$0xff]
    %v4032 = vld [vmem:[#allocation32 + $0x30] sm:$0xff]
    %v4033 = vld [vmem:[#allocation32 + $0x38] sm:$0xff]
    %v4034 = vld [vmem:[#allocation32 + $0x40] sm:$0xff]
    %v4035 = vld [vmem:[#allocation32 + $0x48] sm:$0xff]
    %v4036 = vld [vmem:[#allocation32 + $0x50] sm:$0xff]
    %v4037 = vld [vmem:[#allocation32 + $0x58] sm:$0xff]
    %v4038 = vld [vmem:[#allocation32 + $0x60] sm:$0xff]
    %v4039 = vld [vmem:[#allocation32 + $0x68] sm:$0xff]
    %v4040 = vld [vmem:[#allocation32 + $0x70] sm:$0xff]
    %v4041 = vld [vmem:[#allocation32 + $0x78] sm:$0xff]
    %4042 = vmatprep.subr.mxu0 0.0
    %4043 = vmatpush1.msra.mxu0 %v4026
    %4044 = vmatprep.subr.mxu0 0.0
    %4045 = vmatpush1.msra.mxu0 %v4027
    %4046 = vmatprep.subr.mxu0 0.0
    %4047 = vmatpush1.msra.mxu0 %v4028
    %4048 = vmatprep.subr.mxu0 0.0
    %4049 = vmatpush1.msra.mxu0 %v4029
    %4050 = vmatprep.subr.mxu0 0.0
    %4051 = vmatpush1.msra.mxu0 %v4030
    %4052 = vmatprep.subr.mxu0 0.0
    %4053 = vmatpush1.msra.mxu0 %v4031
    %4054 = vmatprep.subr.mxu0 0.0
    %4055 = vmatpush1.msra.mxu0 %v4032
    %4056 = vmatprep.subr.mxu0 0.0
    %4057 = vmatpush1.msra.mxu0 %v4033
    %4058 = vmatprep.subr.mxu0 0.0
    %4059 = vmatpush1.msra.mxu0 %v4034
    %4060 = vmatprep.subr.mxu0 0.0
    %4061 = vmatpush1.msra.mxu0 %v4035
    %4062 = vmatprep.subr.mxu0 0.0
    %4063 = vmatpush1.msra.mxu0 %v4036
    %4064 = vmatprep.subr.mxu0 0.0
    %4065 = vmatpush1.msra.mxu0 %v4037
    %4066 = vmatprep.subr.mxu0 0.0
    %4067 = vmatpush1.msra.mxu0 %v4038
    %4068 = vmatprep.subr.mxu0 0.0
    %4069 = vmatpush1.msra.mxu0 %v4039
    %4070 = vmatprep.subr.mxu0 0.0
    %4071 = vmatpush1.msra.mxu0 %v4040
    %4072 = vmatprep.subr.mxu0 0.0
    %4073 = vmatpush1.msra.mxu0 %v4041
    %4074 = vmatprep.subr.mxu0 0.0
    %4075 = vmatpush1.msra.mxu0 0.0
    %4076 = vmatprep.subr.mxu0 0.0
    %4077 = vmatpush1.msra.mxu0 0.0
    %4078 = vmatprep.subr.mxu0 0.0
    %4079 = vmatpush1.msra.mxu0 0.0
    %4080 = vmatprep.subr.mxu0 0.0
    %4081 = vmatpush1.msra.mxu0 0.0
    %4082 = vmatprep.subr.mxu0 0.0
    %4083 = vmatpush1.msra.mxu0 0.0
    %4084 = vmatprep.subr.mxu0 0.0
    %4085 = vmatpush1.msra.mxu0 0.0
    %4086 = vmatprep.subr.mxu0 0.0
    %4087 = vmatpush1.msra.mxu0 0.0
    %4088 = vmatprep.subr.mxu0 0.0
    %4089 = vmatpush1.msra.mxu0 0.0
    %4090 = vmatprep.subr.mxu0 0.0
    %4091 = vmatpush1.msra.mxu0 0.0
    %4092 = vmatprep.subr.mxu0 0.0
    %4093 = vmatpush1.msra.mxu0 0.0
    %4094 = vmatprep.subr.mxu0 0.0
    %4095 = vmatpush1.msra.mxu0 0.0
    %4096 = vmatprep.subr.mxu0 0.0
    %4097 = vmatpush1.msra.mxu0 0.0
    %4098 = vmatprep.subr.mxu0 0.0
    %4099 = vmatpush1.msra.mxu0 0.0
    %4100 = vmatprep.subr.mxu0 0.0
    %4101 = vmatpush1.msra.mxu0 0.0
    %4102 = vmatprep.subr.mxu0 0.0
    %4103 = vmatpush1.msra.mxu0 0.0
    %4104 = vmatprep.subr.mxu0 0.0
    %4105 = vmatpush1.msra.mxu0 0.0
    %4106 = vmatprep.mubr.f32.mxu0 0.0
    %4107 = vmatmul.mubr.f32.gmra.mrb[0].mxu0 %v4025
    %v4108 = vpop.f32.mrb[0].mxu0
    %v4109 = vadd.f32 0.0, %v4108
    %v4110 = vpop.f32.mrb[0].mxu0
    %4111 = vdwg.mxu0
    %v4112 = vmul.f32 %v4109, %v4109
    %v4114 = vrot.slane %v4112, 7
    %v4116 = vsub.f32 %v4109, %v4114
    %v4117 = vmax.f32 %v4116, 0.0
    %v4118 = vlaneseq
    %v4119 = vshrl.u32 %v4118, 7
    %v4120 = vsub.s32 0, %v4119
    %v4121 = vrot.slane %v4109, %v4120
    %v4122 = vsub.f32 %v4005, %v4121
    %v4123 = vsub.f32 %v4006, %v4121
    %v4124 = vadd.f32 %v4117, 1e-05
    %v4125 = vrsqrt.pop %v4124
    %v4126 = vlaneseq
    %v4127 = vshrl.u32 %v4126, 7
    %v4128 = vsub.s32 1, %v4127
    %v4129 = vrot.slane %v4125, %v4128
    %v4130 = vmul.f32 %v4122, %v4129
    %v4131 = vmul.f32 %v4123, %v4129
    %v4132 = vld [vmem:[#allocation31 + $0x1] sm:$0x1]
    %v4133 = vlaneseq
    %v4134 = vshrl.u32 %v4133, 7
    %v4135 = vsub.s32 0, %v4134
    %v4136 = vrot.slane %v4132, %v4135
    %v4137 = vmul.f32 %v4130, %v4136
    %v4138 = vmul.f32 %v4131, %v4136
    %v4139 = vld [vmem:[#allocation31 + $0x2] sm:$0x1]
    %v4140 = vlaneseq
    %v4141 = vshrl.u32 %v4140, 7
    %v4142 = vsub.s32 0, %v4141
    %v4143 = vrot.slane %v4139, %v4142
    %v4144 = vadd.f32 %v4137, %v4143
    %v4145 = vadd.f32 %v4138, %v4143
    %v4146 = vmax.f32 %v4144, 0.0
    %v4147 = vmax.f32 %v4145, 0.0
    %v4148 = vpack.c.bf16 %v4147, %v4146
    %v4149 = vld [vmem:[#allocation34] sm:$0xff]
    %v4150 = vld [vmem:[#allocation34 + $0x8] sm:$0xf]
    %v4151 = vld [vmem:[#allocation34 + $0xc] sm:$0xff]
    %v4152 = vld [vmem:[#allocation34 + $0x14] sm:$0xf]
    %v4153 = vld [vmem:[#allocation34 + $0x18] sm:$0xff]
    %v4154 = vld [vmem:[#allocation34 + $0x20] sm:$0xf]
    %v4155 = vld [vmem:[#allocation34 + $0x24] sm:$0xff]
    %v4156 = vld [vmem:[#allocation34 + $0x2c] sm:$0xf]
    %v4157 = vld [vmem:[#allocation34 + $0x30] sm:$0xff]
    %v4158 = vld [vmem:[#allocation34 + $0x38] sm:$0xf]
    %v4159 = vld [vmem:[#allocation34 + $0x3c] sm:$0xff]
    %v4160 = vld [vmem:[#allocation34 + $0x44] sm:$0xf]
    %v4161 = vld [vmem:[#allocation34 + $0x48] sm:$0xff]
    %v4162 = vld [vmem:[#allocation34 + $0x50] sm:$0xf]
    %v4163 = vld [vmem:[#allocation34 + $0x54] sm:$0xff]
    %v4164 = vld [vmem:[#allocation34 + $0x5c] sm:$0xf]
    %v4165 = vld [vmem:[#allocation34 + $0x60] sm:$0xff]
    %v4166 = vld [vmem:[#allocation34 + $0x68] sm:$0xf]
    %v4167 = vld [vmem:[#allocation34 + $0x6c] sm:$0xff]
    %v4168 = vld [vmem:[#allocation34 + $0x74] sm:$0xf]
    %v4169 = vld [vmem:[#allocation34 + $0x78] sm:$0xff]
    %v4170 = vld [vmem:[#allocation34 + $0x80] sm:$0xf]
    %v4171 = vld [vmem:[#allocation34 + $0x84] sm:$0xff]
    %v4172 = vld [vmem:[#allocation34 + $0x8c] sm:$0xf]
    %v4173 = vld [vmem:[#allocation34 + $0x90] sm:$0xff]
    %v4174 = vld [vmem:[#allocation34 + $0x98] sm:$0xf]
    %v4175 = vld [vmem:[#allocation34 + $0x9c] sm:$0xff]
    %v4176 = vld [vmem:[#allocation34 + $0xa4] sm:$0xf]
    %v4177 = vld [vmem:[#allocation34 + $0xa8] sm:$0xff]
    %v4178 = vld [vmem:[#allocation34 + $0xb0] sm:$0xf]
    %v4179 = vld [vmem:[#allocation34 + $0xb4] sm:$0xff]
    %v4180 = vld [vmem:[#allocation34 + $0xbc] sm:$0xf]
    %v4213 = vunpack.c.l.b16 %v4149
    %v4214 = vunpack.c.h.b16 %v4149
    %v4215 = vunpack.c.l.b16 %v4150
    %v4216 = vunpack.c.l.b16 %v4151
    %v4217 = vunpack.c.h.b16 %v4151
    %v4218 = vunpack.c.l.b16 %v4152
    %v4219 = vunpack.c.l.b16 %v4153
    %v4220 = vunpack.c.h.b16 %v4153
    %v4221 = vunpack.c.l.b16 %v4154
    %v4222 = vunpack.c.l.b16 %v4155
    %v4223 = vunpack.c.h.b16 %v4155
    %v4224 = vunpack.c.l.b16 %v4156
    %v4225 = vunpack.c.l.b16 %v4157
    %v4226 = vunpack.c.h.b16 %v4157
    %v4227 = vunpack.c.l.b16 %v4158
    %v4228 = vunpack.c.l.b16 %v4159
    %v4229 = vunpack.c.h.b16 %v4159
    %v4230 = vunpack.c.l.b16 %v4160
    %v4231 = vunpack.c.l.b16 %v4161
    %v4232 = vunpack.c.h.b16 %v4161
    %v4233 = vunpack.c.l.b16 %v4162
    %v4234 = vunpack.c.l.b16 %v4163
    %v4235 = vunpack.c.h.b16 %v4163
    %v4236 = vunpack.c.l.b16 %v4164
    %v4237 = vunpack.c.l.b16 %v4165
    %v4238 = vunpack.c.h.b16 %v4165
    %v4239 = vunpack.c.l.b16 %v4166
    %v4240 = vunpack.c.l.b16 %v4167
    %v4241 = vunpack.c.h.b16 %v4167
    %v4242 = vunpack.c.l.b16 %v4168
    %v4243 = vunpack.c.l.b16 %v4169
    %v4244 = vunpack.c.h.b16 %v4169
    %v4245 = vunpack.c.l.b16 %v4170
    %v4246 = vunpack.c.l.b16 %v4171
    %v4247 = vunpack.c.h.b16 %v4171
    %v4248 = vunpack.c.l.b16 %v4172
    %v4249 = vunpack.c.l.b16 %v4173
    %v4250 = vunpack.c.h.b16 %v4173
    %v4251 = vunpack.c.l.b16 %v4174
    %v4252 = vunpack.c.l.b16 %v4175
    %v4253 = vunpack.c.h.b16 %v4175
    %v4254 = vunpack.c.l.b16 %v4176
    %v4255 = vunpack.c.l.b16 %v4177
    %v4256 = vunpack.c.h.b16 %v4177
    %v4257 = vunpack.c.l.b16 %v4178
    %v4258 = vunpack.c.l.b16 %v4179
    %v4259 = vunpack.c.h.b16 %v4179
    %v4260 = vunpack.c.l.b16 %v4180
    %v4261 = vpack.c.b16 %v4216, %v4213
    %v4262 = vpack.c.b16 %v4217, %v4214
    %v4263 = vpack.c.b16 %v4218, %v4215
    %v4264 = vpack.c.b16 %v4222, %v4219
    %v4265 = vpack.c.b16 %v4223, %v4220
    %v4266 = vpack.c.b16 %v4224, %v4221
    %v4267 = vpack.c.b16 %v4228, %v4225
    %v4268 = vpack.c.b16 %v4229, %v4226
    %v4269 = vpack.c.b16 %v4230, %v4227
    %v4270 = vpack.c.b16 %v4234, %v4231
    %v4271 = vpack.c.b16 %v4235, %v4232
    %v4272 = vpack.c.b16 %v4236, %v4233
    %v4273 = vpack.c.b16 %v4240, %v4237
    %v4274 = vpack.c.b16 %v4241, %v4238
    %v4275 = vpack.c.b16 %v4242, %v4239
    %v4276 = vpack.c.b16 %v4246, %v4243
    %v4277 = vpack.c.b16 %v4247, %v4244
    %v4278 = vpack.c.b16 %v4248, %v4245
    %v4279 = vpack.c.b16 %v4252, %v4249
    %v4280 = vpack.c.b16 %v4253, %v4250
    %v4281 = vpack.c.b16 %v4254, %v4251
    %v4282 = vpack.c.b16 %v4258, %v4255
    %v4283 = vpack.c.b16 %v4259, %v4256
    %v4284 = vpack.c.b16 %v4260, %v4257
    %4309 = vmatprep.subr.bf16.mxu0 %v4262
    %4310 = vmatpush1.bf16.msra.mxu0 %v4261
    %4311 = vmatprep.subr.bf16.mxu0 %v4265
    %4312 = vmatpush1.bf16.msra.mxu0 %v4264
    %4313 = vmatprep.subr.bf16.mxu0 %v4268
    %4314 = vmatpush1.bf16.msra.mxu0 %v4267
    %4315 = vmatprep.subr.bf16.mxu0 %v4271
    %4316 = vmatpush1.bf16.msra.mxu0 %v4270
    %4317 = vmatprep.subr.bf16.mxu0 %v4274
    %4318 = vmatpush1.bf16.msra.mxu0 %v4273
    %4319 = vmatprep.subr.bf16.mxu0 %v4277
    %4320 = vmatpush1.bf16.msra.mxu0 %v4276
    %4321 = vmatprep.subr.bf16.mxu0 %v4280
    %4322 = vmatpush1.bf16.msra.mxu0 %v4279
    %4323 = vmatprep.subr.bf16.mxu0 %v4283
    %4324 = vmatpush1.bf16.msra.mxu0 %v4282
    %4325 = vmatprep.subr.bf16.mxu0 0
    %4326 = vmatpush1.bf16.msra.mxu0 0
    %4327 = vmatprep.subr.bf16.mxu0 0
    %4328 = vmatpush1.bf16.msra.mxu0 0
    %4329 = vmatprep.subr.bf16.mxu0 0
    %4330 = vmatpush1.bf16.msra.mxu0 0
    %4331 = vmatprep.subr.bf16.mxu0 0
    %4332 = vmatpush1.bf16.msra.mxu0 0
    %4333 = vmatprep.subr.bf16.mxu0 0
    %4334 = vmatpush1.bf16.msra.mxu0 0
    %4335 = vmatprep.subr.bf16.mxu0 0
    %4336 = vmatpush1.bf16.msra.mxu0 0
    %4337 = vmatprep.subr.bf16.mxu0 0
    %4338 = vmatpush1.bf16.msra.mxu0 0
    %4339 = vmatprep.subr.bf16.mxu0 0
    %4340 = vmatpush1.bf16.msra.mxu0 0
    %4341 = vmatprep.mubr.bf16.mxu0 0
    %4342 = vmatmul.mubr.bf16.gmra.mrb[0].mxu0 %v4148
    %v4343 = vpop.f32.mrb[0].mxu0
    %v4344 = vadd.f32 0.0, %v4343
    %v4345 = vpop.f32.mrb[0].mxu0
    %v4346 = vadd.f32 0.0, %v4345
    %v4347 = vpop.f32.mrb[0].mxu0
    %v4348 = vadd.f32 0.0, %v4347
    %v4349 = vpop.f32.mrb[0].mxu0
    %v4350 = vadd.f32 0.0, %v4349
    %4351 = vdwg.mxu0
    %4352 = vmatprep.subr.bf16.mxu0 0
    %4353 = vmatpush1.bf16.msra.mxu0 %v4263
    %4354 = vmatprep.subr.bf16.mxu0 0
    %4355 = vmatpush1.bf16.msra.mxu0 %v4266
    %4356 = vmatprep.subr.bf16.mxu0 0
    %4357 = vmatpush1.bf16.msra.mxu0 %v4269
    %4358 = vmatprep.subr.bf16.mxu0 0
    %4359 = vmatpush1.bf16.msra.mxu0 %v4272
    %4360 = vmatprep.subr.bf16.mxu0 0
    %4361 = vmatpush1.bf16.msra.mxu0 %v4275
    %4362 = vmatprep.subr.bf16.mxu0 0
    %4363 = vmatpush1.bf16.msra.mxu0 %v4278
    %4364 = vmatprep.subr.bf16.mxu0 0
    %4365 = vmatpush1.bf16.msra.mxu0 %v4281
    %4366 = vmatprep.subr.bf16.mxu0 0
    %4367 = vmatpush1.bf16.msra.mxu0 %v4284
    %4368 = vmatprep.subr.bf16.mxu0 0
    %4369 = vmatpush1.bf16.msra.mxu0 0
    %4370 = vmatprep.subr.bf16.mxu0 0
    %4371 = vmatpush1.bf16.msra.mxu0 0
    %4372 = vmatprep.subr.bf16.mxu0 0
    %4373 = vmatpush1.bf16.msra.mxu0 0
    %4374 = vmatprep.subr.bf16.mxu0 0
    %4375 = vmatpush1.bf16.msra.mxu0 0
    %4376 = vmatprep.subr.bf16.mxu0 0
    %4377 = vmatpush1.bf16.msra.mxu0 0
    %4378 = vmatprep.subr.bf16.mxu0 0
    %4379 = vmatpush1.bf16.msra.mxu0 0
    %4380 = vmatprep.subr.bf16.mxu0 0
    %4381 = vmatpush1.bf16.msra.mxu0 0
    %4382 = vmatprep.subr.bf16.mxu0 0
    %4383 = vmatpush1.bf16.msra.mxu0 0
    %4384 = vmatprep.mubr.bf16.mxu0 0
    %4385 = vmatmul.mubr.bf16.gmra.mrb[0].mxu0 %v4148
    %v4386 = vpop.f32.mrb[0].mxu0
    %v4387 = vadd.f32 0.0, %v4386
    %v4388 = vpop.f32.mrb[0].mxu0
    %v4389 = vpop.f32.mrb[0].mxu0
    %v4390 = vadd.f32 0.0, %v4389
    %v4391 = vpop.f32.mrb[0].mxu0
    %4392 = vdwg.mxu0
    %v4393 = vld [vmem:[%s59] sm:$0xff]
    %v4394 = vld [vmem:[%s59 + $0x8] sm:$0xff]
    %v4395 = vld [vmem:[%s59 + $0x10] sm:$0xff]
    %v4396 = vld [vmem:[%s59 + $0x18] sm:$0xf]
    %s4397 = scalar_lea.vmem %s59, 32
    %v4398 = vld [vmem:[%s4397] sm:$0xff]
    %v4399 = vld [vmem:[%s4397 + $0x8] sm:$0xff]
    %v4400 = vld [vmem:[%s4397 + $0x10] sm:$0xff]
    %v4401 = vld [vmem:[%s4397 + $0x18] sm:$0xf]
    %v4403 = vsel %vm1939, %v4398, 0
    %v4406 = vsel %vm1939, %v4399, 0
    %v4409 = vsel %vm1939, %v4400, 0
    %v4412 = vsel %vm1939, %v4401, 0
    %v4415 = vsel %vm545, %v4350, 0
    %4417 = vmatprep.subr.mxu0 0.0
    %4418 = vmatpush1.msra.mxu0 %v4346
    %4419 = vmatprep.subr.mxu0 0.0
    %4420 = vmatpush1.msra.mxu0 %v4415
    %4421 = vmatprep.subr.mxu0 0.0
    %4422 = vmatpush1.msra.mxu0 0.0
    %4423 = vmatprep.subr.mxu0 0.0
    %4424 = vmatpush1.msra.mxu0 0.0
    %4425 = vmatprep.subr.mxu0 0.0
    %4426 = vmatpush1.msra.mxu0 0.0
    %4427 = vmatprep.subr.mxu0 0.0
    %4428 = vmatpush1.msra.mxu0 0.0
    %4429 = vmatprep.subr.mxu0 0.0
    %4430 = vmatpush1.msra.mxu0 0.0
    %4431 = vmatprep.subr.mxu0 0.0
    %4432 = vmatpush1.msra.mxu0 0.0
    %4433 = vmatprep.subr.mxu0 0.0
    %4434 = vmatpush1.msra.mxu0 0.0
    %4435 = vmatprep.subr.mxu0 0.0
    %4436 = vmatpush1.msra.mxu0 0.0
    %4437 = vmatprep.subr.mxu0 0.0
    %4438 = vmatpush1.msra.mxu0 0.0
    %4439 = vmatprep.subr.mxu0 0.0
    %4440 = vmatpush1.msra.mxu0 0.0
    %4441 = vmatprep.subr.mxu0 0.0
    %4442 = vmatpush1.msra.mxu0 0.0
    %4443 = vmatprep.subr.mxu0 0.0
    %4444 = vmatpush1.msra.mxu0 0.0
    %4445 = vmatprep.subr.mxu0 0.0
    %4446 = vmatpush1.msra.mxu0 0.0
    %4447 = vmatprep.subr.mxu0 0.0
    %4448 = vmatpush1.msra.mxu0 0.0
    %4449 = vmatprep.subr.mxu0 0.0
    %4450 = vmatpush1.msra.mxu0 0.0
    %4451 = vmatprep.subr.mxu0 0.0
    %4452 = vmatpush1.msra.mxu0 0.0
    %4453 = vmatprep.subr.mxu0 0.0
    %4454 = vmatpush1.msra.mxu0 0.0
    %4455 = vmatprep.subr.mxu0 0.0
    %4456 = vmatpush1.msra.mxu0 0.0
    %4457 = vmatprep.subr.mxu0 0.0
    %4458 = vmatpush1.msra.mxu0 0.0
    %4459 = vmatprep.subr.mxu0 0.0
    %4460 = vmatpush1.msra.mxu0 0.0
    %4461 = vmatprep.subr.mxu0 0.0
    %4462 = vmatpush1.msra.mxu0 0.0
    %4463 = vmatprep.subr.mxu0 0.0
    %4464 = vmatpush1.msra.mxu0 0.0
    %4465 = vmatprep.subr.mxu0 0.0
    %4466 = vmatpush1.msra.mxu0 0.0
    %4467 = vmatprep.subr.mxu0 0.0
    %4468 = vmatpush1.msra.mxu0 0.0
    %4469 = vmatprep.subr.mxu0 0.0
    %4470 = vmatpush1.msra.mxu0 0.0
    %4471 = vmatprep.subr.mxu0 0.0
    %4472 = vmatpush1.msra.mxu0 0.0
    %4473 = vmatprep.subr.mxu0 0.0
    %4474 = vmatpush1.msra.mxu0 0.0
    %4475 = vmatprep.subr.mxu0 0.0
    %4476 = vmatpush1.msra.mxu0 0.0
    %4477 = vmatprep.subr.mxu0 0.0
    %4478 = vmatpush1.msra.mxu0 0.0
    %4479 = vmatprep.subr.mxu0 0.0
    %4480 = vmatpush1.msra.mxu0 0.0
    %4481 = vmatprep.mubr.f32.mxu0 0.0
    %4482 = vmatmul.mubr.f32.gmra.mrb[0].mxu0 %v4403
    %v4483 = vpop.f32.mrb[0].mxu0
    %v4484 = vadd.f32 0.0, %v4483
    %v4485 = vpop.f32.mrb[0].mxu0
    %4486 = vmatprep.mubr.f32.mxu0 0.0
    %4487 = vmatmul.mubr.f32.gmra.mrb[0].mxu0 %v4406
    %v4488 = vpop.f32.mrb[0].mxu0
    %v4489 = vadd.f32 0.0, %v4488
    %v4490 = vpop.f32.mrb[0].mxu0
    %4491 = vmatprep.mubr.f32.mxu0 0.0
    %4492 = vmatmul.mubr.f32.gmra.mrb[0].mxu0 %v4409
    %v4493 = vpop.f32.mrb[0].mxu0
    %v4494 = vadd.f32 0.0, %v4493
    %v4495 = vpop.f32.mrb[0].mxu0
    %4496 = vmatprep.mubr.f32.mxu0 0.0
    %4497 = vmatmul.mubr.f32.gmra.mrb[0].mxu0 %v4412
    %v4498 = vpop.f32.mrb[0].mxu0
    %v4499 = vadd.f32 0.0, %v4498
    %v4500 = vpop.f32.mrb[0].mxu0
    %4501 = vdwg.mxu0
    %v4503 = vsel %vm1939, %v4393, 0
    %v4506 = vsel %vm1939, %v4394, 0
    %v4509 = vsel %vm1939, %v4395, 0
    %v4512 = vsel %vm1939, %v4396, 0
    %v4515 = vsel %vm545, %v4348, 0
    %4517 = vmatprep.subr.mxu0 0.0
    %4518 = vmatpush1.msra.mxu0 %v4344
    %4519 = vmatprep.subr.mxu0 0.0
    %4520 = vmatpush1.msra.mxu0 %v4515
    %4521 = vmatprep.subr.mxu0 0.0
    %4522 = vmatpush1.msra.mxu0 0.0
    %4523 = vmatprep.subr.mxu0 0.0
    %4524 = vmatpush1.msra.mxu0 0.0
    %4525 = vmatprep.subr.mxu0 0.0
    %4526 = vmatpush1.msra.mxu0 0.0
    %4527 = vmatprep.subr.mxu0 0.0
    %4528 = vmatpush1.msra.mxu0 0.0
    %4529 = vmatprep.subr.mxu0 0.0
    %4530 = vmatpush1.msra.mxu0 0.0
    %4531 = vmatprep.subr.mxu0 0.0
    %4532 = vmatpush1.msra.mxu0 0.0
    %4533 = vmatprep.subr.mxu0 0.0
    %4534 = vmatpush1.msra.mxu0 0.0
    %4535 = vmatprep.subr.mxu0 0.0
    %4536 = vmatpush1.msra.mxu0 0.0
    %4537 = vmatprep.subr.mxu0 0.0
    %4538 = vmatpush1.msra.mxu0 0.0
    %4539 = vmatprep.subr.mxu0 0.0
    %4540 = vmatpush1.msra.mxu0 0.0
    %4541 = vmatprep.subr.mxu0 0.0
    %4542 = vmatpush1.msra.mxu0 0.0
    %4543 = vmatprep.subr.mxu0 0.0
    %4544 = vmatpush1.msra.mxu0 0.0
    %4545 = vmatprep.subr.mxu0 0.0
    %4546 = vmatpush1.msra.mxu0 0.0
    %4547 = vmatprep.subr.mxu0 0.0
    %4548 = vmatpush1.msra.mxu0 0.0
    %4549 = vmatprep.subr.mxu0 0.0
    %4550 = vmatpush1.msra.mxu0 0.0
    %4551 = vmatprep.subr.mxu0 0.0
    %4552 = vmatpush1.msra.mxu0 0.0
    %4553 = vmatprep.subr.mxu0 0.0
    %4554 = vmatpush1.msra.mxu0 0.0
    %4555 = vmatprep.subr.mxu0 0.0
    %4556 = vmatpush1.msra.mxu0 0.0
    %4557 = vmatprep.subr.mxu0 0.0
    %4558 = vmatpush1.msra.mxu0 0.0
    %4559 = vmatprep.subr.mxu0 0.0
    %4560 = vmatpush1.msra.mxu0 0.0
    %4561 = vmatprep.subr.mxu0 0.0
    %4562 = vmatpush1.msra.mxu0 0.0
    %4563 = vmatprep.subr.mxu0 0.0
    %4564 = vmatpush1.msra.mxu0 0.0
    %4565 = vmatprep.subr.mxu0 0.0
    %4566 = vmatpush1.msra.mxu0 0.0
    %4567 = vmatprep.subr.mxu0 0.0
    %4568 = vmatpush1.msra.mxu0 0.0
    %4569 = vmatprep.subr.mxu0 0.0
    %4570 = vmatpush1.msra.mxu0 0.0
    %4571 = vmatprep.subr.mxu0 0.0
    %4572 = vmatpush1.msra.mxu0 0.0
    %4573 = vmatprep.subr.mxu0 0.0
    %4574 = vmatpush1.msra.mxu0 0.0
    %4575 = vmatprep.subr.mxu0 0.0
    %4576 = vmatpush1.msra.mxu0 0.0
    %4577 = vmatprep.subr.mxu0 0.0
    %4578 = vmatpush1.msra.mxu0 0.0
    %4579 = vmatprep.subr.mxu0 0.0
    %4580 = vmatpush1.msra.mxu0 0.0
    %4581 = vmatprep.mubr.f32.mxu0 0.0
    %4582 = vmatmul.mubr.f32.gmra.mrb[0].mxu0 %v4503
    %v4583 = vpop.f32.mrb[0].mxu0
    %v4584 = vadd.f32 %v4484, %v4583
    %v4585 = vpop.f32.mrb[0].mxu0
    %4586 = vmatprep.mubr.f32.mxu0 0.0
    %4587 = vmatmul.mubr.f32.gmra.mrb[0].mxu0 %v4506
    %v4588 = vpop.f32.mrb[0].mxu0
    %v4589 = vadd.f32 %v4489, %v4588
    %v4590 = vpop.f32.mrb[0].mxu0
    %4591 = vmatprep.mubr.f32.mxu0 0.0
    %4592 = vmatmul.mubr.f32.gmra.mrb[0].mxu0 %v4509
    %v4593 = vpop.f32.mrb[0].mxu0
    %v4594 = vadd.f32 %v4494, %v4593
    %v4595 = vpop.f32.mrb[0].mxu0
    %4596 = vmatprep.mubr.f32.mxu0 0.0
    %4597 = vmatmul.mubr.f32.gmra.mrb[0].mxu0 %v4512
    %v4598 = vpop.f32.mrb[0].mxu0
    %v4599 = vadd.f32 %v4499, %v4598
    %v4600 = vpop.f32.mrb[0].mxu0
    %4601 = vdwg.mxu0
    %s4602 = scalar_lea.vmem %s59, 64
    %v4603 = vld [vmem:[%s4602] sm:$0xff]
    %v4604 = vld [vmem:[%s4602 + $0x8] sm:$0xff]
    %v4605 = vld [vmem:[%s4602 + $0x10] sm:$0xff]
    %v4606 = vld [vmem:[%s4602 + $0x18] sm:$0xf]
    %v4608 = vsel %vm1939, %v4603, 0
    %v4611 = vsel %vm1939, %v4604, 0
    %v4614 = vsel %vm1939, %v4605, 0
    %v4617 = vsel %vm1939, %v4606, 0
    %v4620 = vsel %vm545, %v4390, 0
    %4622 = vmatprep.subr.mxu0 0.0
    %4623 = vmatpush1.msra.mxu0 %v4387
    %4624 = vmatprep.subr.mxu0 0.0
    %4625 = vmatpush1.msra.mxu0 %v4620
    %4626 = vmatprep.subr.mxu0 0.0
    %4627 = vmatpush1.msra.mxu0 0.0
    %4628 = vmatprep.subr.mxu0 0.0
    %4629 = vmatpush1.msra.mxu0 0.0
    %4630 = vmatprep.subr.mxu0 0.0
    %4631 = vmatpush1.msra.mxu0 0.0
    %4632 = vmatprep.subr.mxu0 0.0
    %4633 = vmatpush1.msra.mxu0 0.0
    %4634 = vmatprep.subr.mxu0 0.0
    %4635 = vmatpush1.msra.mxu0 0.0
    %4636 = vmatprep.subr.mxu0 0.0
    %4637 = vmatpush1.msra.mxu0 0.0
    %4638 = vmatprep.subr.mxu0 0.0
    %4639 = vmatpush1.msra.mxu0 0.0
    %4640 = vmatprep.subr.mxu0 0.0
    %4641 = vmatpush1.msra.mxu0 0.0
    %4642 = vmatprep.subr.mxu0 0.0
    %4643 = vmatpush1.msra.mxu0 0.0
    %4644 = vmatprep.subr.mxu0 0.0
    %4645 = vmatpush1.msra.mxu0 0.0
    %4646 = vmatprep.subr.mxu0 0.0
    %4647 = vmatpush1.msra.mxu0 0.0
    %4648 = vmatprep.subr.mxu0 0.0
    %4649 = vmatpush1.msra.mxu0 0.0
    %4650 = vmatprep.subr.mxu0 0.0
    %4651 = vmatpush1.msra.mxu0 0.0
    %4652 = vmatprep.subr.mxu0 0.0
    %4653 = vmatpush1.msra.mxu0 0.0
    %4654 = vmatprep.subr.mxu0 0.0
    %4655 = vmatpush1.msra.mxu0 0.0
    %4656 = vmatprep.subr.mxu0 0.0
    %4657 = vmatpush1.msra.mxu0 0.0
    %4658 = vmatprep.subr.mxu0 0.0
    %4659 = vmatpush1.msra.mxu0 0.0
    %4660 = vmatprep.subr.mxu0 0.0
    %4661 = vmatpush1.msra.mxu0 0.0
    %4662 = vmatprep.subr.mxu0 0.0
    %4663 = vmatpush1.msra.mxu0 0.0
    %4664 = vmatprep.subr.mxu0 0.0
    %4665 = vmatpush1.msra.mxu0 0.0
    %4666 = vmatprep.subr.mxu0 0.0
    %4667 = vmatpush1.msra.mxu0 0.0
    %4668 = vmatprep.subr.mxu0 0.0
    %4669 = vmatpush1.msra.mxu0 0.0
    %4670 = vmatprep.subr.mxu0 0.0
    %4671 = vmatpush1.msra.mxu0 0.0
    %4672 = vmatprep.subr.mxu0 0.0
    %4673 = vmatpush1.msra.mxu0 0.0
    %4674 = vmatprep.subr.mxu0 0.0
    %4675 = vmatpush1.msra.mxu0 0.0
    %4676 = vmatprep.subr.mxu0 0.0
    %4677 = vmatpush1.msra.mxu0 0.0
    %4678 = vmatprep.subr.mxu0 0.0
    %4679 = vmatpush1.msra.mxu0 0.0
    %4680 = vmatprep.subr.mxu0 0.0
    %4681 = vmatpush1.msra.mxu0 0.0
    %4682 = vmatprep.subr.mxu0 0.0
    %4683 = vmatpush1.msra.mxu0 0.0
    %4684 = vmatprep.subr.mxu0 0.0
    %4685 = vmatpush1.msra.mxu0 0.0
    %4686 = vmatprep.mubr.f32.mxu0 0.0
    %4687 = vmatmul.mubr.f32.gmra.mrb[0].mxu0 %v4608
    %v4688 = vpop.f32.mrb[0].mxu0
    %v4689 = vadd.f32 0.0, %v4688
    %v4690 = vpop.f32.mrb[0].mxu0
    %4691 = vmatprep.mubr.f32.mxu0 0.0
    %4692 = vmatmul.mubr.f32.gmra.mrb[0].mxu0 %v4611
    %v4693 = vpop.f32.mrb[0].mxu0
    %v4694 = vadd.f32 0.0, %v4693
    %v4695 = vpop.f32.mrb[0].mxu0
    %4696 = vmatprep.mubr.f32.mxu0 0.0
    %4697 = vmatmul.mubr.f32.gmra.mrb[0].mxu0 %v4614
    %v4698 = vpop.f32.mrb[0].mxu0
    %v4699 = vadd.f32 0.0, %v4698
    %v4700 = vpop.f32.mrb[0].mxu0
    %4701 = vmatprep.mubr.f32.mxu0 0.0
    %4702 = vmatmul.mubr.f32.gmra.mrb[0].mxu0 %v4617
    %v4703 = vpop.f32.mrb[0].mxu0
    %v4704 = vadd.f32 0.0, %v4703
    %v4705 = vpop.f32.mrb[0].mxu0
    %4706 = vdwg.mxu0
    %v4707 = vadd.f32 %v4584, %v4689
    %v4708 = vadd.f32 %v4589, %v4694
    %v4709 = vadd.f32 %v4594, %v4699
    %v4710 = vadd.f32 %v4599, %v4704
    %v4711 = vld [vmem:[#allocation35] sm:$0x1]
    %v4712 = vlaneseq
    %v4713 = vshrl.u32 %v4712, 7
    %v4714 = vsub.s32 0, %v4713
    %v4715 = vrot.slane %v4711, %v4714
    %v4716 = vadd.f32 %v4707, %v4715
    %v4717 = vadd.f32 %v4708, %v4715
    %v4718 = vadd.f32 %v4709, %v4715
    %v4719 = vadd.f32 %v4710, %v4715
    %v4720 = vadd.f32 %v4716, %v4717
    %v4721 = vadd.f32 %v4720, %v4718
    %v4722 = vsel %vm1290, %v4719, 0.0
    %v4723 = vadd.f32 %v4721, %v4722
    %v4724 = vrot.slane %v4723, 4
    %v4725 = vadd.f32 %v4723, %v4724
    %v4726 = vrot.slane %v4725, 2
    %v4727 = vadd.f32 %v4725, %v4726
    %v4728 = vrot.slane %v4727, 1
    %v4729 = vadd.f32 %v4727, %v4728
    %v4730 = vmul.f32 %v4716, %v4716
    %v4731 = vmul.f32 %v4717, %v4717
    %v4732 = vmul.f32 %v4718, %v4718
    %v4733 = vmul.f32 %v4719, %v4719
    %v4734 = vadd.f32 %v4730, %v4731
    %v4735 = vadd.f32 %v4734, %v4732
    %v4736 = vsel %vm1290, %v4733, 0.0
    %v4737 = vadd.f32 %v4735, %v4736
    %v4738 = vrot.slane %v4737, 4
    %v4739 = vadd.f32 %v4737, %v4738
    %v4740 = vrot.slane %v4739, 2
    %v4741 = vadd.f32 %v4739, %v4740
    %v4742 = vrot.slane %v4741, 1
    %v4743 = vadd.f32 %v4741, %v4742
    %v4744 = vsel %vm1567, %v4729, %v4743
    %v4745 = vld [vmem:[#allocation37] sm:$0xff]
    %v4746 = vld [vmem:[#allocation37 + $0x8] sm:$0xff]
    %v4747 = vld [vmem:[#allocation37 + $0x10] sm:$0xff]
    %v4748 = vld [vmem:[#allocation37 + $0x18] sm:$0xff]
    %v4749 = vld [vmem:[#allocation37 + $0x20] sm:$0xff]
    %v4750 = vld [vmem:[#allocation37 + $0x28] sm:$0xff]
    %v4751 = vld [vmem:[#allocation37 + $0x30] sm:$0xff]
    %v4752 = vld [vmem:[#allocation37 + $0x38] sm:$0xff]
    %v4753 = vld [vmem:[#allocation37 + $0x40] sm:$0xff]
    %v4754 = vld [vmem:[#allocation37 + $0x48] sm:$0xff]
    %v4755 = vld [vmem:[#allocation37 + $0x50] sm:$0xff]
    %v4756 = vld [vmem:[#allocation37 + $0x58] sm:$0xff]
    %v4757 = vld [vmem:[#allocation37 + $0x60] sm:$0xff]
    %v4758 = vld [vmem:[#allocation37 + $0x68] sm:$0xff]
    %v4759 = vld [vmem:[#allocation37 + $0x70] sm:$0xff]
    %v4760 = vld [vmem:[#allocation37 + $0x78] sm:$0xff]
    %4761 = vmatprep.subr.mxu0 0.0
    %4762 = vmatpush1.msra.mxu0 %v4745
    %4763 = vmatprep.subr.mxu0 0.0
    %4764 = vmatpush1.msra.mxu0 %v4746
    %4765 = vmatprep.subr.mxu0 0.0
    %4766 = vmatpush1.msra.mxu0 %v4747
    %4767 = vmatprep.subr.mxu0 0.0
    %4768 = vmatpush1.msra.mxu0 %v4748
    %4769 = vmatprep.subr.mxu0 0.0
    %4770 = vmatpush1.msra.mxu0 %v4749
    %4771 = vmatprep.subr.mxu0 0.0
    %4772 = vmatpush1.msra.mxu0 %v4750
    %4773 = vmatprep.subr.mxu0 0.0
    %4774 = vmatpush1.msra.mxu0 %v4751
    %4775 = vmatprep.subr.mxu0 0.0
    %4776 = vmatpush1.msra.mxu0 %v4752
    %4777 = vmatprep.subr.mxu0 0.0
    %4778 = vmatpush1.msra.mxu0 %v4753
    %4779 = vmatprep.subr.mxu0 0.0
    %4780 = vmatpush1.msra.mxu0 %v4754
    %4781 = vmatprep.subr.mxu0 0.0
    %4782 = vmatpush1.msra.mxu0 %v4755
    %4783 = vmatprep.subr.mxu0 0.0
    %4784 = vmatpush1.msra.mxu0 %v4756
    %4785 = vmatprep.subr.mxu0 0.0
    %4786 = vmatpush1.msra.mxu0 %v4757
    %4787 = vmatprep.subr.mxu0 0.0
    %4788 = vmatpush1.msra.mxu0 %v4758
    %4789 = vmatprep.subr.mxu0 0.0
    %4790 = vmatpush1.msra.mxu0 %v4759
    %4791 = vmatprep.subr.mxu0 0.0
    %4792 = vmatpush1.msra.mxu0 %v4760
    %4793 = vmatprep.subr.mxu0 0.0
    %4794 = vmatpush1.msra.mxu0 0.0
    %4795 = vmatprep.subr.mxu0 0.0
    %4796 = vmatpush1.msra.mxu0 0.0
    %4797 = vmatprep.subr.mxu0 0.0
    %4798 = vmatpush1.msra.mxu0 0.0
    %4799 = vmatprep.subr.mxu0 0.0
    %4800 = vmatpush1.msra.mxu0 0.0
    %4801 = vmatprep.subr.mxu0 0.0
    %4802 = vmatpush1.msra.mxu0 0.0
    %4803 = vmatprep.subr.mxu0 0.0
    %4804 = vmatpush1.msra.mxu0 0.0
    %4805 = vmatprep.subr.mxu0 0.0
    %4806 = vmatpush1.msra.mxu0 0.0
    %4807 = vmatprep.subr.mxu0 0.0
    %4808 = vmatpush1.msra.mxu0 0.0
    %4809 = vmatprep.subr.mxu0 0.0
    %4810 = vmatpush1.msra.mxu0 0.0
    %4811 = vmatprep.subr.mxu0 0.0
    %4812 = vmatpush1.msra.mxu0 0.0
    %4813 = vmatprep.subr.mxu0 0.0
    %4814 = vmatpush1.msra.mxu0 0.0
    %4815 = vmatprep.subr.mxu0 0.0
    %4816 = vmatpush1.msra.mxu0 0.0
    %4817 = vmatprep.subr.mxu0 0.0
    %4818 = vmatpush1.msra.mxu0 0.0
    %4819 = vmatprep.subr.mxu0 0.0
    %4820 = vmatpush1.msra.mxu0 0.0
    %4821 = vmatprep.subr.mxu0 0.0
    %4822 = vmatpush1.msra.mxu0 0.0
    %4823 = vmatprep.subr.mxu0 0.0
    %4824 = vmatpush1.msra.mxu0 0.0
    %4825 = vmatprep.mubr.f32.mxu0 0.0
    %4826 = vmatmul.mubr.f32.gmra.mrb[0].mxu0 %v4744
    %v4827 = vpop.f32.mrb[0].mxu0
    %v4828 = vadd.f32 0.0, %v4827
    %v4829 = vpop.f32.mrb[0].mxu0
    %4830 = vdwg.mxu0
    %v4831 = vmul.f32 %v4828, %v4828
    %v4833 = vrot.slane %v4831, 7
    %v4835 = vsub.f32 %v4828, %v4833
    %v4836 = vmax.f32 %v4835, 0.0
    %v4837 = vlaneseq
    %v4838 = vshrl.u32 %v4837, 7
    %v4839 = vsub.s32 0, %v4838
    %v4840 = vrot.slane %v4828, %v4839
    %v4841 = vsub.f32 %v4716, %v4840
    %v4842 = vsub.f32 %v4717, %v4840
    %v4843 = vsub.f32 %v4718, %v4840
    %v4844 = vsub.f32 %v4719, %v4840
    %v4845 = vadd.f32 %v4836, 1e-05
    %v4846 = vrsqrt.pop %v4845
    %v4847 = vlaneseq
    %v4848 = vshrl.u32 %v4847, 7
    %v4849 = vsub.s32 1, %v4848
    %v4850 = vrot.slane %v4846, %v4849
    %v4851 = vmul.f32 %v4841, %v4850
    %v4852 = vmul.f32 %v4842, %v4850
    %v4853 = vmul.f32 %v4843, %v4850
    %v4854 = vmul.f32 %v4844, %v4850
    %v4855 = vld [vmem:[#allocation35 + $0x1] sm:$0x1]
    %v4856 = vlaneseq
    %v4857 = vshrl.u32 %v4856, 7
    %v4858 = vsub.s32 0, %v4857
    %v4859 = vrot.slane %v4855, %v4858
    %v4860 = vmul.f32 %v4851, %v4859
    %v4861 = vmul.f32 %v4852, %v4859
    %v4862 = vmul.f32 %v4853, %v4859
    %v4863 = vmul.f32 %v4854, %v4859
    %v4864 = vld [vmem:[#allocation35 + $0x2] sm:$0x1]
    %v4865 = vlaneseq
    %v4866 = vshrl.u32 %v4865, 7
    %v4867 = vsub.s32 0, %v4866
    %v4868 = vrot.slane %v4864, %v4867
    %v4869 = vadd.f32 %v4860, %v4868
    %v4870 = vadd.f32 %v4861, %v4868
    %v4871 = vadd.f32 %v4862, %v4868
    %v4872 = vadd.f32 %v4863, %v4868
    %v4873 = vmax.f32 %v4869, 0.0
    %v4874 = vmax.f32 %v4870, 0.0
    %v4875 = vmax.f32 %v4871, 0.0
    %v4876 = vmax.f32 %v4872, 0.0
    %v4877 = vpack.c.bf16 %v4874, %v4873
    %v4878 = vpack.c.bf16 %v4876, %v4875
    %v4879 = vld [vmem:[%s69] sm:$0xff]
    %v4880 = vld [vmem:[%s69 + $0x8] sm:$0xf]
    %v4881 = vld [vmem:[%s69 + $0xc] sm:$0xff]
    %v4882 = vld [vmem:[%s69 + $0x14] sm:$0xf]
    %v4883 = vld [vmem:[%s69 + $0x18] sm:$0xff]
    %v4884 = vld [vmem:[%s69 + $0x20] sm:$0xf]
    %v4885 = vld [vmem:[%s69 + $0x24] sm:$0xff]
    %v4886 = vld [vmem:[%s69 + $0x2c] sm:$0xf]
    %v4887 = vld [vmem:[%s69 + $0x30] sm:$0xff]
    %v4888 = vld [vmem:[%s69 + $0x38] sm:$0xf]
    %v4889 = vld [vmem:[%s69 + $0x3c] sm:$0xff]
    %v4890 = vld [vmem:[%s69 + $0x44] sm:$0xf]
    %v4891 = vld [vmem:[%s69 + $0x48] sm:$0xff]
    %v4892 = vld [vmem:[%s69 + $0x50] sm:$0xf]
    %v4893 = vld [vmem:[%s69 + $0x54] sm:$0xff]
    %v4894 = vld [vmem:[%s69 + $0x5c] sm:$0xf]
    %v4895 = vld [vmem:[%s69 + $0x60] sm:$0xff]
    %v4896 = vld [vmem:[%s69 + $0x68] sm:$0xf]
    %v4897 = vld [vmem:[%s69 + $0x6c] sm:$0xff]
    %v4898 = vld [vmem:[%s69 + $0x74] sm:$0xf]
    %v4899 = vld [vmem:[%s69 + $0x78] sm:$0xff]
    %v4900 = vld [vmem:[%s69 + $0x80] sm:$0xf]
    %v4901 = vld [vmem:[%s69 + $0x84] sm:$0xff]
    %v4902 = vld [vmem:[%s69 + $0x8c] sm:$0xf]
    %v4903 = vld [vmem:[%s69 + $0x90] sm:$0xff]
    %v4904 = vld [vmem:[%s69 + $0x98] sm:$0xf]
    %v4905 = vld [vmem:[%s69 + $0x9c] sm:$0xff]
    %v4906 = vld [vmem:[%s69 + $0xa4] sm:$0xf]
    %v4907 = vld [vmem:[%s69 + $0xa8] sm:$0xff]
    %v4908 = vld [vmem:[%s69 + $0xb0] sm:$0xf]
    %v4909 = vld [vmem:[%s69 + $0xb4] sm:$0xff]
    %v4910 = vld [vmem:[%s69 + $0xbc] sm:$0xf]
    %v4943 = vunpack.c.l.b16 %v4879
    %v4944 = vunpack.c.h.b16 %v4879
    %v4945 = vunpack.c.l.b16 %v4880
    %v4946 = vunpack.c.l.b16 %v4881
    %v4947 = vunpack.c.h.b16 %v4881
    %v4948 = vunpack.c.l.b16 %v4882
    %v4949 = vunpack.c.l.b16 %v4883
    %v4950 = vunpack.c.h.b16 %v4883
    %v4951 = vunpack.c.l.b16 %v4884
    %v4952 = vunpack.c.l.b16 %v4885
    %v4953 = vunpack.c.h.b16 %v4885
    %v4954 = vunpack.c.l.b16 %v4886
    %v4955 = vunpack.c.l.b16 %v4887
    %v4956 = vunpack.c.h.b16 %v4887
    %v4957 = vunpack.c.l.b16 %v4888
    %v4958 = vunpack.c.l.b16 %v4889
    %v4959 = vunpack.c.h.b16 %v4889
    %v4960 = vunpack.c.l.b16 %v4890
    %v4961 = vunpack.c.l.b16 %v4891
    %v4962 = vunpack.c.h.b16 %v4891
    %v4963 = vunpack.c.l.b16 %v4892
    %v4964 = vunpack.c.l.b16 %v4893
    %v4965 = vunpack.c.h.b16 %v4893
    %v4966 = vunpack.c.l.b16 %v4894
    %v4967 = vunpack.c.l.b16 %v4895
    %v4968 = vunpack.c.h.b16 %v4895
    %v4969 = vunpack.c.l.b16 %v4896
    %v4970 = vunpack.c.l.b16 %v4897
    %v4971 = vunpack.c.h.b16 %v4897
    %v4972 = vunpack.c.l.b16 %v4898
    %v4973 = vunpack.c.l.b16 %v4899
    %v4974 = vunpack.c.h.b16 %v4899
    %v4975 = vunpack.c.l.b16 %v4900
    %v4976 = vunpack.c.l.b16 %v4901
    %v4977 = vunpack.c.h.b16 %v4901
    %v4978 = vunpack.c.l.b16 %v4902
    %v4979 = vunpack.c.l.b16 %v4903
    %v4980 = vunpack.c.h.b16 %v4903
    %v4981 = vunpack.c.l.b16 %v4904
    %v4982 = vunpack.c.l.b16 %v4905
    %v4983 = vunpack.c.h.b16 %v4905
    %v4984 = vunpack.c.l.b16 %v4906
    %v4985 = vunpack.c.l.b16 %v4907
    %v4986 = vunpack.c.h.b16 %v4907
    %v4987 = vunpack.c.l.b16 %v4908
    %v4988 = vunpack.c.l.b16 %v4909
    %v4989 = vunpack.c.h.b16 %v4909
    %v4990 = vunpack.c.l.b16 %v4910
    %v4991 = vpack.c.b16 %v4946, %v4943
    %v4992 = vpack.c.b16 %v4947, %v4944
    %v4993 = vpack.c.b16 %v4948, %v4945
    %v4994 = vpack.c.b16 %v4952, %v4949
    %v4995 = vpack.c.b16 %v4953, %v4950
    %v4996 = vpack.c.b16 %v4954, %v4951
    %v4997 = vpack.c.b16 %v4958, %v4955
    %v4998 = vpack.c.b16 %v4959, %v4956
    %v4999 = vpack.c.b16 %v4960, %v4957
    %v5000 = vpack.c.b16 %v4964, %v4961
    %v5001 = vpack.c.b16 %v4965, %v4962
    %v5002 = vpack.c.b16 %v4966, %v4963
    %v5003 = vpack.c.b16 %v4970, %v4967
    %v5004 = vpack.c.b16 %v4971, %v4968
    %v5005 = vpack.c.b16 %v4972, %v4969
    %v5006 = vpack.c.b16 %v4976, %v4973
    %v5007 = vpack.c.b16 %v4977, %v4974
    %v5008 = vpack.c.b16 %v4978, %v4975
    %v5009 = vpack.c.b16 %v4982, %v4979
    %v5010 = vpack.c.b16 %v4983, %v4980
    %v5011 = vpack.c.b16 %v4984, %v4981
    %v5012 = vpack.c.b16 %v4988, %v4985
    %v5013 = vpack.c.b16 %v4989, %v4986
    %v5014 = vpack.c.b16 %v4990, %v4987
    %5039 = vmatprep.subr.bf16.mxu0 %v4992
    %5040 = vmatpush1.bf16.msra.mxu0 %v4991
    %5041 = vmatprep.subr.bf16.mxu0 %v4995
    %5042 = vmatpush1.bf16.msra.mxu0 %v4994
    %5043 = vmatprep.subr.bf16.mxu0 %v4998
    %5044 = vmatpush1.bf16.msra.mxu0 %v4997
    %5045 = vmatprep.subr.bf16.mxu0 %v5001
    %5046 = vmatpush1.bf16.msra.mxu0 %v5000
    %5047 = vmatprep.subr.bf16.mxu0 %v5004
    %5048 = vmatpush1.bf16.msra.mxu0 %v5003
    %5049 = vmatprep.subr.bf16.mxu0 %v5007
    %5050 = vmatpush1.bf16.msra.mxu0 %v5006
    %5051 = vmatprep.subr.bf16.mxu0 %v5010
    %5052 = vmatpush1.bf16.msra.mxu0 %v5009
    %5053 = vmatprep.subr.bf16.mxu0 %v5013
    %5054 = vmatpush1.bf16.msra.mxu0 %v5012
    %5055 = vmatprep.subr.bf16.mxu0 0
    %5056 = vmatpush1.bf16.msra.mxu0 0
    %5057 = vmatprep.subr.bf16.mxu0 0
    %5058 = vmatpush1.bf16.msra.mxu0 0
    %5059 = vmatprep.subr.bf16.mxu0 0
    %5060 = vmatpush1.bf16.msra.mxu0 0
    %5061 = vmatprep.subr.bf16.mxu0 0
    %5062 = vmatpush1.bf16.msra.mxu0 0
    %5063 = vmatprep.subr.bf16.mxu0 0
    %5064 = vmatpush1.bf16.msra.mxu0 0
    %5065 = vmatprep.subr.bf16.mxu0 0
    %5066 = vmatpush1.bf16.msra.mxu0 0
    %5067 = vmatprep.subr.bf16.mxu0 0
    %5068 = vmatpush1.bf16.msra.mxu0 0
    %5069 = vmatprep.subr.bf16.mxu0 0
    %5070 = vmatpush1.bf16.msra.mxu0 0
    %5071 = vmatprep.mubr.bf16.mxu0 0
    %5072 = vmatmul.mubr.bf16.gmra.mrb[0].mxu0 %v4877
    %v5073 = vpop.f32.mrb[0].mxu0
    %v5074 = vadd.f32 0.0, %v5073
    %v5075 = vpop.f32.mrb[0].mxu0
    %v5076 = vadd.f32 0.0, %v5075
    %v5077 = vpop.f32.mrb[0].mxu0
    %v5078 = vadd.f32 0.0, %v5077
    %v5079 = vpop.f32.mrb[0].mxu0
    %v5080 = vadd.f32 0.0, %v5079
    %5081 = vmatprep.mubr.bf16.mxu0 0
    %5082 = vmatmul.mubr.bf16.gmra.mrb[0].mxu0 %v4878
    %v5083 = vpop.f32.mrb[0].mxu0
    %v5084 = vadd.f32 0.0, %v5083
    %v5085 = vpop.f32.mrb[0].mxu0
    %v5086 = vadd.f32 0.0, %v5085
    %v5087 = vpop.f32.mrb[0].mxu0
    %v5088 = vadd.f32 0.0, %v5087
    %v5089 = vpop.f32.mrb[0].mxu0
    %v5090 = vadd.f32 0.0, %v5089
    %5091 = vdwg.mxu0
    %5092 = vmatprep.subr.bf16.mxu0 0
    %5093 = vmatpush1.bf16.msra.mxu0 %v4993
    %5094 = vmatprep.subr.bf16.mxu0 0
    %5095 = vmatpush1.bf16.msra.mxu0 %v4996
    %5096 = vmatprep.subr.bf16.mxu0 0
    %5097 = vmatpush1.bf16.msra.mxu0 %v4999
    %5098 = vmatprep.subr.bf16.mxu0 0
    %5099 = vmatpush1.bf16.msra.mxu0 %v5002
    %5100 = vmatprep.subr.bf16.mxu0 0
    %5101 = vmatpush1.bf16.msra.mxu0 %v5005
    %5102 = vmatprep.subr.bf16.mxu0 0
    %5103 = vmatpush1.bf16.msra.mxu0 %v5008
    %5104 = vmatprep.subr.bf16.mxu0 0
    %5105 = vmatpush1.bf16.msra.mxu0 %v5011
    %5106 = vmatprep.subr.bf16.mxu0 0
    %5107 = vmatpush1.bf16.msra.mxu0 %v5014
    %5108 = vmatprep.subr.bf16.mxu0 0
    %5109 = vmatpush1.bf16.msra.mxu0 0
    %5110 = vmatprep.subr.bf16.mxu0 0
    %5111 = vmatpush1.bf16.msra.mxu0 0
    %5112 = vmatprep.subr.bf16.mxu0 0
    %5113 = vmatpush1.bf16.msra.mxu0 0
    %5114 = vmatprep.subr.bf16.mxu0 0
    %5115 = vmatpush1.bf16.msra.mxu0 0
    %5116 = vmatprep.subr.bf16.mxu0 0
    %5117 = vmatpush1.bf16.msra.mxu0 0
    %5118 = vmatprep.subr.bf16.mxu0 0
    %5119 = vmatpush1.bf16.msra.mxu0 0
    %5120 = vmatprep.subr.bf16.mxu0 0
    %5121 = vmatpush1.bf16.msra.mxu0 0
    %5122 = vmatprep.subr.bf16.mxu0 0
    %5123 = vmatpush1.bf16.msra.mxu0 0
    %5124 = vmatprep.mubr.bf16.mxu0 0
    %5125 = vmatmul.mubr.bf16.gmra.mrb[0].mxu0 %v4877
    %v5126 = vpop.f32.mrb[0].mxu0
    %v5127 = vadd.f32 0.0, %v5126
    %v5128 = vpop.f32.mrb[0].mxu0
    %v5129 = vpop.f32.mrb[0].mxu0
    %v5130 = vadd.f32 0.0, %v5129
    %v5131 = vpop.f32.mrb[0].mxu0
    %5132 = vmatprep.mubr.bf16.mxu0 0
    %5133 = vmatmul.mubr.bf16.gmra.mrb[0].mxu0 %v4878
    %v5134 = vpop.f32.mrb[0].mxu0
    %v5135 = vadd.f32 0.0, %v5134
    %v5136 = vpop.f32.mrb[0].mxu0
    %v5137 = vpop.f32.mrb[0].mxu0
    %v5138 = vadd.f32 0.0, %v5137
    %v5139 = vpop.f32.mrb[0].mxu0
    %5140 = vdwg.mxu0
    %v5141 = vld [vmem:[%s67] sm:$0xff]
    %v5142 = vld [vmem:[%s67 + $0x8] sm:$0xff]
    %v5143 = vld [vmem:[%s67 + $0x10] sm:$0xff]
    %v5144 = vld [vmem:[%s67 + $0x18] sm:$0xff]
    %v5145 = vld [vmem:[%s67 + $0x20] sm:$0xff]
    %v5146 = vld [vmem:[%s67 + $0x28] sm:$0xff]
    %v5147 = vld [vmem:[%s67 + $0x30] sm:$0xff]
    %s5148 = scalar_lea.vmem %s67, 56
    %v5149 = vld [vmem:[%s5148] sm:$0xff]
    %v5150 = vld [vmem:[%s5148 + $0x8] sm:$0xff]
    %v5151 = vld [vmem:[%s5148 + $0x10] sm:$0xff]
    %v5152 = vld [vmem:[%s5148 + $0x18] sm:$0xff]
    %v5153 = vld [vmem:[%s5148 + $0x20] sm:$0xff]
    %v5154 = vld [vmem:[%s5148 + $0x28] sm:$0xff]
    %v5155 = vld [vmem:[%s5148 + $0x30] sm:$0xff]
    %v5157 = vsel %vm532, %v5149, 0
    %v5160 = vsel %vm532, %v5150, 0
    %v5163 = vsel %vm532, %v5151, 0
    %v5166 = vsel %vm532, %v5152, 0
    %v5169 = vsel %vm532, %v5153, 0
    %v5172 = vsel %vm532, %v5154, 0
    %v5175 = vsel %vm532, %v5155, 0
    %v5178 = vsel %vm1290, %v5090, 0
    %5180 = vmatprep.subr.mxu0 0.0
    %5181 = vmatpush1.msra.mxu0 %v5076
    %5182 = vmatprep.subr.mxu0 0.0
    %5183 = vmatpush1.msra.mxu0 %v5080
    %5184 = vmatprep.subr.mxu0 0.0
    %5185 = vmatpush1.msra.mxu0 %v5086
    %5186 = vmatprep.subr.mxu0 0.0
    %5187 = vmatpush1.msra.mxu0 %v5178
    %5188 = vmatprep.subr.mxu0 0.0
    %5189 = vmatpush1.msra.mxu0 0.0
    %5190 = vmatprep.subr.mxu0 0.0
    %5191 = vmatpush1.msra.mxu0 0.0
    %5192 = vmatprep.subr.mxu0 0.0
    %5193 = vmatpush1.msra.mxu0 0.0
    %5194 = vmatprep.subr.mxu0 0.0
    %5195 = vmatpush1.msra.mxu0 0.0
    %5196 = vmatprep.subr.mxu0 0.0
    %5197 = vmatpush1.msra.mxu0 0.0
    %5198 = vmatprep.subr.mxu0 0.0
    %5199 = vmatpush1.msra.mxu0 0.0
    %5200 = vmatprep.subr.mxu0 0.0
    %5201 = vmatpush1.msra.mxu0 0.0
    %5202 = vmatprep.subr.mxu0 0.0
    %5203 = vmatpush1.msra.mxu0 0.0
    %5204 = vmatprep.subr.mxu0 0.0
    %5205 = vmatpush1.msra.mxu0 0.0
    %5206 = vmatprep.subr.mxu0 0.0
    %5207 = vmatpush1.msra.mxu0 0.0
    %5208 = vmatprep.subr.mxu0 0.0
    %5209 = vmatpush1.msra.mxu0 0.0
    %5210 = vmatprep.subr.mxu0 0.0
    %5211 = vmatpush1.msra.mxu0 0.0
    %5212 = vmatprep.subr.mxu0 0.0
    %5213 = vmatpush1.msra.mxu0 0.0
    %5214 = vmatprep.subr.mxu0 0.0
    %5215 = vmatpush1.msra.mxu0 0.0
    %5216 = vmatprep.subr.mxu0 0.0
    %5217 = vmatpush1.msra.mxu0 0.0
    %5218 = vmatprep.subr.mxu0 0.0
    %5219 = vmatpush1.msra.mxu0 0.0
    %5220 = vmatprep.subr.mxu0 0.0
    %5221 = vmatpush1.msra.mxu0 0.0
    %5222 = vmatprep.subr.mxu0 0.0
    %5223 = vmatpush1.msra.mxu0 0.0
    %5224 = vmatprep.subr.mxu0 0.0
    %5225 = vmatpush1.msra.mxu0 0.0
    %5226 = vmatprep.subr.mxu0 0.0
    %5227 = vmatpush1.msra.mxu0 0.0
    %5228 = vmatprep.subr.mxu0 0.0
    %5229 = vmatpush1.msra.mxu0 0.0
    %5230 = vmatprep.subr.mxu0 0.0
    %5231 = vmatpush1.msra.mxu0 0.0
    %5232 = vmatprep.subr.mxu0 0.0
    %5233 = vmatpush1.msra.mxu0 0.0
    %5234 = vmatprep.subr.mxu0 0.0
    %5235 = vmatpush1.msra.mxu0 0.0
    %5236 = vmatprep.subr.mxu0 0.0
    %5237 = vmatpush1.msra.mxu0 0.0
    %5238 = vmatprep.subr.mxu0 0.0
    %5239 = vmatpush1.msra.mxu0 0.0
    %5240 = vmatprep.subr.mxu0 0.0
    %5241 = vmatpush1.msra.mxu0 0.0
    %5242 = vmatprep.subr.mxu0 0.0
    %5243 = vmatpush1.msra.mxu0 0.0
    %5244 = vmatprep.mubr.f32.mxu0 0.0
    %5245 = vmatmul.mubr.f32.gmra.mrb[0].mxu0 %v5157
    %v5246 = vpop.f32.mrb[0].mxu0
    %v5247 = vadd.f32 0.0, %v5246
    %v5248 = vpop.f32.mrb[0].mxu0
    %5249 = vmatprep.mubr.f32.mxu0 0.0
    %5250 = vmatmul.mubr.f32.gmra.mrb[0].mxu0 %v5160
    %v5251 = vpop.f32.mrb[0].mxu0
    %v5252 = vadd.f32 0.0, %v5251
    %v5253 = vpop.f32.mrb[0].mxu0
    %5254 = vmatprep.mubr.f32.mxu0 0.0
    %5255 = vmatmul.mubr.f32.gmra.mrb[0].mxu0 %v5163
    %v5256 = vpop.f32.mrb[0].mxu0
    %v5257 = vadd.f32 0.0, %v5256
    %v5258 = vpop.f32.mrb[0].mxu0
    %5259 = vmatprep.mubr.f32.mxu0 0.0
    %5260 = vmatmul.mubr.f32.gmra.mrb[0].mxu0 %v5166
    %v5261 = vpop.f32.mrb[0].mxu0
    %v5262 = vadd.f32 0.0, %v5261
    %v5263 = vpop.f32.mrb[0].mxu0
    %5264 = vmatprep.mubr.f32.mxu0 0.0
    %5265 = vmatmul.mubr.f32.gmra.mrb[0].mxu0 %v5169
    %v5266 = vpop.f32.mrb[0].mxu0
    %v5267 = vadd.f32 0.0, %v5266
    %v5268 = vpop.f32.mrb[0].mxu0
    %5269 = vmatprep.mubr.f32.mxu0 0.0
    %5270 = vmatmul.mubr.f32.gmra.mrb[0].mxu0 %v5172
    %v5271 = vpop.f32.mrb[0].mxu0
    %v5272 = vadd.f32 0.0, %v5271
    %v5273 = vpop.f32.mrb[0].mxu0
    %5274 = vmatprep.mubr.f32.mxu0 0.0
    %5275 = vmatmul.mubr.f32.gmra.mrb[0].mxu0 %v5175
    %v5276 = vpop.f32.mrb[0].mxu0
    %v5277 = vadd.f32 0.0, %v5276
    %v5278 = vpop.f32.mrb[0].mxu0
    %5279 = vdwg.mxu0
    %v5281 = vsel %vm532, %v5141, 0
    %v5284 = vsel %vm532, %v5142, 0
    %v5287 = vsel %vm532, %v5143, 0
    %v5290 = vsel %vm532, %v5144, 0
    %v5293 = vsel %vm532, %v5145, 0
    %v5296 = vsel %vm532, %v5146, 0
    %v5299 = vsel %vm532, %v5147, 0
    %v5302 = vsel %vm1290, %v5088, 0
    %5304 = vmatprep.subr.mxu0 0.0
    %5305 = vmatpush1.msra.mxu0 %v5074
    %5306 = vmatprep.subr.mxu0 0.0
    %5307 = vmatpush1.msra.mxu0 %v5078
    %5308 = vmatprep.subr.mxu0 0.0
    %5309 = vmatpush1.msra.mxu0 %v5084
    %5310 = vmatprep.subr.mxu0 0.0
    %5311 = vmatpush1.msra.mxu0 %v5302
    %5312 = vmatprep.subr.mxu0 0.0
    %5313 = vmatpush1.msra.mxu0 0.0
    %5314 = vmatprep.subr.mxu0 0.0
    %5315 = vmatpush1.msra.mxu0 0.0
    %5316 = vmatprep.subr.mxu0 0.0
    %5317 = vmatpush1.msra.mxu0 0.0
    %5318 = vmatprep.subr.mxu0 0.0
    %5319 = vmatpush1.msra.mxu0 0.0
    %5320 = vmatprep.subr.mxu0 0.0
    %5321 = vmatpush1.msra.mxu0 0.0
    %5322 = vmatprep.subr.mxu0 0.0
    %5323 = vmatpush1.msra.mxu0 0.0
    %5324 = vmatprep.subr.mxu0 0.0
    %5325 = vmatpush1.msra.mxu0 0.0
    %5326 = vmatprep.subr.mxu0 0.0
    %5327 = vmatpush1.msra.mxu0 0.0
    %5328 = vmatprep.subr.mxu0 0.0
    %5329 = vmatpush1.msra.mxu0 0.0
    %5330 = vmatprep.subr.mxu0 0.0
    %5331 = vmatpush1.msra.mxu0 0.0
    %5332 = vmatprep.subr.mxu0 0.0
    %5333 = vmatpush1.msra.mxu0 0.0
    %5334 = vmatprep.subr.mxu0 0.0
    %5335 = vmatpush1.msra.mxu0 0.0
    %5336 = vmatprep.subr.mxu0 0.0
    %5337 = vmatpush1.msra.mxu0 0.0
    %5338 = vmatprep.subr.mxu0 0.0
    %5339 = vmatpush1.msra.mxu0 0.0
    %5340 = vmatprep.subr.mxu0 0.0
    %5341 = vmatpush1.msra.mxu0 0.0
    %5342 = vmatprep.subr.mxu0 0.0
    %5343 = vmatpush1.msra.mxu0 0.0
    %5344 = vmatprep.subr.mxu0 0.0
    %5345 = vmatpush1.msra.mxu0 0.0
    %5346 = vmatprep.subr.mxu0 0.0
    %5347 = vmatpush1.msra.mxu0 0.0
    %5348 = vmatprep.subr.mxu0 0.0
    %5349 = vmatpush1.msra.mxu0 0.0
    %5350 = vmatprep.subr.mxu0 0.0
    %5351 = vmatpush1.msra.mxu0 0.0
    %5352 = vmatprep.subr.mxu0 0.0
    %5353 = vmatpush1.msra.mxu0 0.0
    %5354 = vmatprep.subr.mxu0 0.0
    %5355 = vmatpush1.msra.mxu0 0.0
    %5356 = vmatprep.subr.mxu0 0.0
    %5357 = vmatpush1.msra.mxu0 0.0
    %5358 = vmatprep.subr.mxu0 0.0
    %5359 = vmatpush1.msra.mxu0 0.0
    %5360 = vmatprep.subr.mxu0 0.0
    %5361 = vmatpush1.msra.mxu0 0.0
    %5362 = vmatprep.subr.mxu0 0.0
    %5363 = vmatpush1.msra.mxu0 0.0
    %5364 = vmatprep.subr.mxu0 0.0
    %5365 = vmatpush1.msra.mxu0 0.0
    %5366 = vmatprep.subr.mxu0 0.0
    %5367 = vmatpush1.msra.mxu0 0.0
    %5368 = vmatprep.mubr.f32.mxu0 0.0
    %5369 = vmatmul.mubr.f32.gmra.mrb[0].mxu0 %v5281
    %v5370 = vpop.f32.mrb[0].mxu0
    %v5371 = vadd.f32 %v5247, %v5370
    %v5372 = vpop.f32.mrb[0].mxu0
    %5373 = vmatprep.mubr.f32.mxu0 0.0
    %5374 = vmatmul.mubr.f32.gmra.mrb[0].mxu0 %v5284
    %v5375 = vpop.f32.mrb[0].mxu0
    %v5376 = vadd.f32 %v5252, %v5375
    %v5377 = vpop.f32.mrb[0].mxu0
    %5378 = vmatprep.mubr.f32.mxu0 0.0
    %5379 = vmatmul.mubr.f32.gmra.mrb[0].mxu0 %v5287
    %v5380 = vpop.f32.mrb[0].mxu0
    %v5381 = vadd.f32 %v5257, %v5380
    %v5382 = vpop.f32.mrb[0].mxu0
    %5383 = vmatprep.mubr.f32.mxu0 0.0
    %5384 = vmatmul.mubr.f32.gmra.mrb[0].mxu0 %v5290
    %v5385 = vpop.f32.mrb[0].mxu0
    %v5386 = vadd.f32 %v5262, %v5385
    %v5387 = vpop.f32.mrb[0].mxu0
    %5388 = vmatprep.mubr.f32.mxu0 0.0
    %5389 = vmatmul.mubr.f32.gmra.mrb[0].mxu0 %v5293
    %v5390 = vpop.f32.mrb[0].mxu0
    %v5391 = vadd.f32 %v5267, %v5390
    %v5392 = vpop.f32.mrb[0].mxu0
    %5393 = vmatprep.mubr.f32.mxu0 0.0
    %5394 = vmatmul.mubr.f32.gmra.mrb[0].mxu0 %v5296
    %v5395 = vpop.f32.mrb[0].mxu0
    %v5396 = vadd.f32 %v5272, %v5395
    %v5397 = vpop.f32.mrb[0].mxu0
    %5398 = vmatprep.mubr.f32.mxu0 0.0
    %5399 = vmatmul.mubr.f32.gmra.mrb[0].mxu0 %v5299
    %v5400 = vpop.f32.mrb[0].mxu0
    %v5401 = vadd.f32 %v5277, %v5400
    %v5402 = vpop.f32.mrb[0].mxu0
    %5403 = vdwg.mxu0
    %s5404 = scalar_lea.vmem %s67, 112
    %v5405 = vld [vmem:[%s5404] sm:$0xff]
    %v5406 = vld [vmem:[%s5404 + $0x8] sm:$0xff]
    %v5407 = vld [vmem:[%s5404 + $0x10] sm:$0xff]
    %v5408 = vld [vmem:[%s5404 + $0x18] sm:$0xff]
    %v5409 = vld [vmem:[%s5404 + $0x20] sm:$0xff]
    %v5410 = vld [vmem:[%s5404 + $0x28] sm:$0xff]
    %v5411 = vld [vmem:[%s5404 + $0x30] sm:$0xff]
    %v5413 = vsel %vm532, %v5405, 0
    %v5416 = vsel %vm532, %v5406, 0
    %v5419 = vsel %vm532, %v5407, 0
    %v5422 = vsel %vm532, %v5408, 0
    %v5425 = vsel %vm532, %v5409, 0
    %v5428 = vsel %vm532, %v5410, 0
    %v5431 = vsel %vm532, %v5411, 0
    %v5434 = vsel %vm1290, %v5138, 0
    %5436 = vmatprep.subr.mxu0 0.0
    %5437 = vmatpush1.msra.mxu0 %v5127
    %5438 = vmatprep.subr.mxu0 0.0
    %5439 = vmatpush1.msra.mxu0 %v5130
    %5440 = vmatprep.subr.mxu0 0.0
    %5441 = vmatpush1.msra.mxu0 %v5135
    %5442 = vmatprep.subr.mxu0 0.0
    %5443 = vmatpush1.msra.mxu0 %v5434
    %5444 = vmatprep.subr.mxu0 0.0
    %5445 = vmatpush1.msra.mxu0 0.0
    %5446 = vmatprep.subr.mxu0 0.0
    %5447 = vmatpush1.msra.mxu0 0.0
    %5448 = vmatprep.subr.mxu0 0.0
    %5449 = vmatpush1.msra.mxu0 0.0
    %5450 = vmatprep.subr.mxu0 0.0
    %5451 = vmatpush1.msra.mxu0 0.0
    %5452 = vmatprep.subr.mxu0 0.0
    %5453 = vmatpush1.msra.mxu0 0.0
    %5454 = vmatprep.subr.mxu0 0.0
    %5455 = vmatpush1.msra.mxu0 0.0
    %5456 = vmatprep.subr.mxu0 0.0
    %5457 = vmatpush1.msra.mxu0 0.0
    %5458 = vmatprep.subr.mxu0 0.0
    %5459 = vmatpush1.msra.mxu0 0.0
    %5460 = vmatprep.subr.mxu0 0.0
    %5461 = vmatpush1.msra.mxu0 0.0
    %5462 = vmatprep.subr.mxu0 0.0
    %5463 = vmatpush1.msra.mxu0 0.0
    %5464 = vmatprep.subr.mxu0 0.0
    %5465 = vmatpush1.msra.mxu0 0.0
    %5466 = vmatprep.subr.mxu0 0.0
    %5467 = vmatpush1.msra.mxu0 0.0
    %5468 = vmatprep.subr.mxu0 0.0
    %5469 = vmatpush1.msra.mxu0 0.0
    %5470 = vmatprep.subr.mxu0 0.0
    %5471 = vmatpush1.msra.mxu0 0.0
    %5472 = vmatprep.subr.mxu0 0.0
    %5473 = vmatpush1.msra.mxu0 0.0
    %5474 = vmatprep.subr.mxu0 0.0
    %5475 = vmatpush1.msra.mxu0 0.0
    %5476 = vmatprep.subr.mxu0 0.0
    %5477 = vmatpush1.msra.mxu0 0.0
    %5478 = vmatprep.subr.mxu0 0.0
    %5479 = vmatpush1.msra.mxu0 0.0
    %5480 = vmatprep.subr.mxu0 0.0
    %5481 = vmatpush1.msra.mxu0 0.0
    %5482 = vmatprep.subr.mxu0 0.0
    %5483 = vmatpush1.msra.mxu0 0.0
    %5484 = vmatprep.subr.mxu0 0.0
    %5485 = vmatpush1.msra.mxu0 0.0
    %5486 = vmatprep.subr.mxu0 0.0
    %5487 = vmatpush1.msra.mxu0 0.0
    %5488 = vmatprep.subr.mxu0 0.0
    %5489 = vmatpush1.msra.mxu0 0.0
    %5490 = vmatprep.subr.mxu0 0.0
    %5491 = vmatpush1.msra.mxu0 0.0
    %5492 = vmatprep.subr.mxu0 0.0
    %5493 = vmatpush1.msra.mxu0 0.0
    %5494 = vmatprep.subr.mxu0 0.0
    %5495 = vmatpush1.msra.mxu0 0.0
    %5496 = vmatprep.subr.mxu0 0.0
    %5497 = vmatpush1.msra.mxu0 0.0
    %5498 = vmatprep.subr.mxu0 0.0
    %5499 = vmatpush1.msra.mxu0 0.0
    %5500 = vmatprep.mubr.f32.mxu0 0.0
    %5501 = vmatmul.mubr.f32.gmra.mrb[0].mxu0 %v5413
    %v5502 = vpop.f32.mrb[0].mxu0
    %v5503 = vadd.f32 0.0, %v5502
    %v5504 = vpop.f32.mrb[0].mxu0
    %5505 = vmatprep.mubr.f32.mxu0 0.0
    %5506 = vmatmul.mubr.f32.gmra.mrb[0].mxu0 %v5416
    %v5507 = vpop.f32.mrb[0].mxu0
    %v5508 = vadd.f32 0.0, %v5507
    %v5509 = vpop.f32.mrb[0].mxu0
    %5510 = vmatprep.mubr.f32.mxu0 0.0
    %5511 = vmatmul.mubr.f32.gmra.mrb[0].mxu0 %v5419
    %v5512 = vpop.f32.mrb[0].mxu0
    %v5513 = vadd.f32 0.0, %v5512
    %v5514 = vpop.f32.mrb[0].mxu0
    %5515 = vmatprep.mubr.f32.mxu0 0.0
    %5516 = vmatmul.mubr.f32.gmra.mrb[0].mxu0 %v5422
    %v5517 = vpop.f32.mrb[0].mxu0
    %v5518 = vadd.f32 0.0, %v5517
    %v5519 = vpop.f32.mrb[0].mxu0
    %5520 = vmatprep.mubr.f32.mxu0 0.0
    %5521 = vmatmul.mubr.f32.gmra.mrb[0].mxu0 %v5425
    %v5522 = vpop.f32.mrb[0].mxu0
    %v5523 = vadd.f32 0.0, %v5522
    %v5524 = vpop.f32.mrb[0].mxu0
    %5525 = vmatprep.mubr.f32.mxu0 0.0
    %5526 = vmatmul.mubr.f32.gmra.mrb[0].mxu0 %v5428
    %v5527 = vpop.f32.mrb[0].mxu0
    %v5528 = vadd.f32 0.0, %v5527
    %v5529 = vpop.f32.mrb[0].mxu0
    %5530 = vmatprep.mubr.f32.mxu0 0.0
    %5531 = vmatmul.mubr.f32.gmra.mrb[0].mxu0 %v5431
    %v5532 = vpop.f32.mrb[0].mxu0
    %v5533 = vadd.f32 0.0, %v5532
    %v5534 = vpop.f32.mrb[0].mxu0
    %5535 = vdwg.mxu0
    %v5536 = vadd.f32 %v5371, %v5503
    %v5537 = vadd.f32 %v5376, %v5508
    %v5538 = vadd.f32 %v5381, %v5513
    %v5539 = vadd.f32 %v5386, %v5518
    %v5540 = vadd.f32 %v5391, %v5523
    %v5541 = vadd.f32 %v5396, %v5528
    %v5542 = vadd.f32 %v5401, %v5533
    %v5543 = vld [vmem:[#allocation38] sm:$0x1]
    %v5545 = vlaneseq
    %v5546 = vshrl.u32 %v5545, 7
    %v5547 = vsub.s32 0, %v5546
    %v5548 = vrot.slane %v5543, %v5547
    %v5550 = vadd.f32 %v5536, %v5548
    %v5551 = vadd.f32 %v5537, %v5548
    %v5552 = vadd.f32 %v5538, %v5548
    %v5553 = vadd.f32 %v5539, %v5548
    %v5554 = vadd.f32 %v5540, %v5548
    %v5555 = vadd.f32 %v5541, %v5548
    %v5556 = vadd.f32 %v5542, %v5548
    %v5557 = vxor.u32 %v5550, 2147483648
    %v5558 = vxor.u32 %v5551, 2147483648
    %v5559 = vxor.u32 %v5552, 2147483648
    %v5560 = vxor.u32 %v5553, 2147483648
    %v5561 = vxor.u32 %v5554, 2147483648
    %v5562 = vxor.u32 %v5555, 2147483648
    %v5563 = vxor.u32 %v5556, 2147483648
    %v5564 = vmul.f32 %v5557, 1.442695
    %v5565 = vpow.pop %v5564
    %v5566 = vmul.f32 %v5558, 1.442695
    %v5567 = vpow.pop %v5566
    %v5568 = vmul.f32 %v5559, 1.442695
    %v5569 = vpow.pop %v5568
    %v5570 = vmul.f32 %v5560, 1.442695
    %v5571 = vpow.pop %v5570
    %v5572 = vmul.f32 %v5561, 1.442695
    %v5573 = vpow.pop %v5572
    %v5574 = vmul.f32 %v5562, 1.442695
    %v5575 = vpow.pop %v5574
    %v5576 = vmul.f32 %v5563, 1.442695
    %v5577 = vpow.pop %v5576
    %v5578 = vadd.f32 %v5565, 1.0
    %v5579 = vadd.f32 %v5567, 1.0
    %v5580 = vadd.f32 %v5569, 1.0
    %v5581 = vadd.f32 %v5571, 1.0
    %v5582 = vadd.f32 %v5573, 1.0
    %v5583 = vadd.f32 %v5575, 1.0
    %v5584 = vadd.f32 %v5577, 1.0
    %v5585 = vrcp.pop %v5578
    %v5586 = vmul.f32 1.0, %v5585
    %v5587 = vrcp.pop %v5579
    %v5588 = vmul.f32 1.0, %v5587
    %v5589 = vrcp.pop %v5580
    %v5590 = vmul.f32 1.0, %v5589
    %v5591 = vrcp.pop %v5581
    %v5592 = vmul.f32 1.0, %v5591
    %v5593 = vrcp.pop %v5582
    %v5594 = vmul.f32 1.0, %v5593
    %v5595 = vrcp.pop %v5583
    %v5596 = vmul.f32 1.0, %v5595
    %v5597 = vrcp.pop %v5584
    %v5598 = vmul.f32 1.0, %v5597
    %5599 = vst.msk [vmem:[#allocation41] sm:$0xff] %vm532, %v5586
    %5600 = vst.msk [vmem:[#allocation41 + $0x8] sm:$0xff] %vm532, %v5588
    %5601 = vst.msk [vmem:[#allocation41 + $0x10] sm:$0xff] %vm532, %v5590
    %5602 = vst.msk [vmem:[#allocation41 + $0x18] sm:$0xff] %vm532, %v5592
    %5603 = vst.msk [vmem:[#allocation41 + $0x20] sm:$0xff] %vm532, %v5594
    %5604 = vst.msk [vmem:[#allocation41 + $0x28] sm:$0xff] %vm532, %v5596
    %5605 = vst.msk [vmem:[#allocation41 + $0x30] sm:$0xff] %vm532, %v5598
    // Predicated region
    $region242: #{forward.1} parent=1 // pred_check
      _
    $region243: #{forward.1} parent=1 // pred_check_branch
      %5607 = sbr.rel (0) target = $region245
    $region244: #{forward.1} parent=1 // pred_region
      %s5609 = ssub.s32 32, 32
      %5610 = vsyncadd [#allocation4], %s5609
      %s5612 = sshll.u32 [#allocation40], 4
      %s5613 = int_to_ptr.vmem [resolvable:$true] %s5612
      %5615 = dma.vmem_to_hbm [thread:$0]  %s5613, 32, %s73, [#allocation4]
    $region245: #{forward.1} parent=1 // pred_fallthru
      _
    // Predicated region
    $region246: #{forward.1} parent=1 // pred_check
      _
    $region247: #{forward.1} parent=1 // pred_check_branch
      %5617 = sbr.rel (0) target = $region249
    $region248: #{forward.1} parent=1 // pred_region
      %s5619 = ssub.s32 896, 896
      %5620 = vsyncadd [#allocation42], %s5619
      %s5621 = sshll.u32 [#allocation41], 4
      %s5622 = int_to_ptr.vmem [resolvable:$true] %s5621
      %5627 = dma.vmem_to_hbm [thread:$0]  %s5622, 896, %s75, [#allocation42], 128, 128, 8
    $region249: #{forward.1} parent=1 // pred_fallthru
      _
    // Predicated region
    $region250: #{forward.1} parent=1 // pred_check
      _
    $region251: #{forward.1} parent=1 // pred_check_branch
      %5629 = sbr.rel (0) target = $region253
    $region252: #{forward.1} parent=1 // pred_region
      %5630 = dma.done [#allocation4], 32
    $region253: #{forward.1} parent=1 // pred_fallthru
      _
    // Predicated region
    $region254: #{forward.1} parent=1 // pred_check
      _
    $region255: #{forward.1} parent=1 // pred_check_branch
      %5632 = sbr.rel (0) target = $region257
    $region256: #{forward.1} parent=1 // pred_region
      %5633 = dma.done [#allocation42], 896
    $region257: #{forward.1} parent=1 // pred_fallthru
      _
    %5634 = vsyncpa [#allocation3], 1
    %5635 = vsyncpa [#allocation6], 1
    %5636 = vsyncpa [#allocation9], 1
    %5637 = vsyncpa [#allocation12], 1
    %5638 = vsyncpa [#allocation15], 1
    %5639 = vsyncpa [#allocation18], 1
    %5640 = vsyncpa [#allocation21], 1
    %5641 = vsyncpa [#allocation24], 1
    %5642 = vsyncpa [#allocation27], 1
    %5643 = vsyncpa [#allocation30], 1
    %5644 = vsyncpa [#allocation33], 1
    %5645 = vsyncpa [#allocation36], 1
    %5646 = vsyncpa [#allocation39], 1
    %5647 = vsyncpa [#allocation4], 1
    %5648 = vsyncpa [#allocation42], 1

</llo_original>
